<compile_context>
chip_gen: v7x
topology: tpu7x:2x2x1
jax: 0.10.0
libtpu: 0.0.40
codegen_flags: <defaults>
</compile_context>

<pallas_src>
import functools

import numpy as np
import jax
import jax.numpy as jnp
from jax.experimental import pallas as pl
from jax.experimental.pallas import tpu as pltpu


def _ru(a, m):
    return (a + m - 1) // m * m


def _device_tile_defaults():
    """Per-generation (tile_r, vmem_cap_bytes)."""
    try:
        kind = jax.devices()[0].device_kind.lower()
    except Exception:
        kind = ""
    if "v7" in kind or "7x" in kind:
        # 64 MiB VMEM per TensorCore, 2 TCs: smaller tiles => more grid steps
        # so the "parallel" axis actually splits across both cores.
        return 128, 56 << 20
    if "v6" in kind:
        return 256, 100 << 20
    if "v5" in kind:
        return 256, 100 << 20
    return 128, 64 << 20


# --------------------------------------------------------------------------
# Kernel A: fused 8-head matmul + ctx combine + class softmaxes, tiled over R.
# --------------------------------------------------------------------------
def _mist_heads_kernel(pooled_ref, ctx_ref, wh_ref, bh_ref, wctx_ref, bctx_ref,
                       cls_ref, det_ref, r1_ref, r2_ref, r3_ref,
                       b1_ref, b2_ref, b3_ref, *,
                       num_classes, cpad, n_ctx, num_branches,
                       comb_ctx_method, use_ctx, training, kp, bp):
    pooled = pooled_ref[...]                                   # (tr, C) bf16

    # One fused, lane-dense MXU matmul for all 8 x-heads (f32 accumulation).
    heads = jnp.dot(pooled, wh_ref[...],
                    preferred_element_type=jnp.float32) + bh_ref[...]

    def slab(idx, width):                     # 128-aligned lane slab, no relayout
        off = idx * kp if idx < 5 else 5 * kp + (idx - 5) * bp
        return heads[:, off:off + width]

    cls_logit = slab(0, kp)
    det_logit = slab(1, kp)
    ref_logits = [slab(2 + i, kp) for i in range(3)]
    bbox_preds = [slab(5 + i, bp) for i in range(3)]

    # ---- ctx branches ------------------------------------------------------
    ctx_flat = ctx_ref[...]                                    # (tr, n_ctx*Cpad) bf16
    if comb_ctx_method == "mean":
        # mean_i(ctx_i @ W_{i%nb} + b_{i%nb}) == (ctx_flat @ W_rep)/n_ctx + mean(b)
        ctx_comb = jnp.dot(ctx_flat, wctx_ref[...],
                           preferred_element_type=jnp.float32)
        ctx_comb = ctx_comb * jnp.float32(1.0 / n_ctx) + bctx_ref[...]
    elif comb_ctx_method in ("max", "min"):
        ctx_comb = None
        for i in range(n_ctx):
            br = i % num_branches
            xi = ctx_flat[:, i * cpad:(i + 1) * cpad]          # 128-aligned slab
            li = jnp.dot(xi, wctx_ref[br],
                         preferred_element_type=jnp.float32) + bctx_ref[br]
            if ctx_comb is None:
                ctx_comb = li
            elif comb_ctx_method == "max":
                ctx_comb = jnp.maximum(ctx_comb, li)
            else:
                ctx_comb = jnp.minimum(ctx_comb, li)
    else:
        raise NotImplementedError(comb_ctx_method)

    if use_ctx == "add":
        det_logit = det_logit + ctx_comb
    elif use_ctx == "sub":
        det_logit = det_logit - ctx_comb
    elif use_ctx == "mul":
        det_logit = det_logit * ctx_comb
    else:
        raise NotImplementedError(use_ctx)

    # ---- eval: class softmax over the real class lanes ----------------------
    if not training:
        lane = jax.lax.broadcasted_iota(jnp.int32, (1, kp), 1)
        valid = lane < num_classes

        def class_softmax(v):
            m = jnp.max(jnp.where(valid, v, jnp.float32(-1e30)),
                        axis=1, keepdims=True)
            e = jnp.where(valid, jnp.exp(v - m), jnp.float32(0.0))
            s = jnp.sum(e, axis=1, keepdims=True)
            return e * pl.reciprocal(s, approx=True)

        cls_out = class_softmax(cls_logit)
        ref_out = [class_softmax(r) for r in ref_logits]
    else:
        cls_out = cls_logit
        ref_out = ref_logits

    # ---- lane-dense full-block stores, one buffer per head ------------------
    cls_ref[...] = cls_out
    det_ref[...] = det_logit     # per-image softmax (eval) runs in kernel B
    r1_ref[...] = ref_out[0]
    r2_ref[...] = ref_out[1]
    r3_ref[...] = ref_out[2]
    b1_ref[...] = bbox_preds[0]
    b2_ref[...] = bbox_preds[1]
    b3_ref[...] = bbox_preds[2]


# --------------------------------------------------------------------------
# Kernel B (eval only): per-image softmax over the proposal axis.
# --------------------------------------------------------------------------
def _det_image_softmax_kernel(det_ref, out_ref, *, counts):
    # counts is static -> each image is a static row slab written straight into
    # out_ref (no concat / second VMEM copy).
    # TODO(synk): proposal counts are rarely sublane-aligned, so each slab
    # access is masked; for very large image batches bound the unroll.
    det = det_ref[...]                                         # (R, kp)
    off = 0
    for c in counts:
        d = det[off:off + c, :]
        m = jnp.max(d, axis=0, keepdims=True)
        e = jnp.exp(d - m)
        s = jnp.sum(e, axis=0, keepdims=True)
        out_ref[off:off + c, :] = e * pl.reciprocal(s, approx=True)
        off += c


# --------------------------------------------------------------------------
# Wrapper
# --------------------------------------------------------------------------
def mist_predictor_ctx(x, ctx, params, proposal_counts, *,
                       comb_ctx_method="mean", use_ctx="add",
                       training=False, tile_r=None, vmem_limit_bytes=None):
    """Returns (cls, final_det, [ref1,ref2,ref3], [bbox1,bbox2,bbox3])."""
    # AdaptiveAvgPool2d(1) as a plain XLA mean over (H,W) in native NCHW.
    if x.ndim == 4:
        R, C = x.shape[0], x.shape[1]
        pooled = jnp.mean(x.reshape(R, C, -1), axis=2)
    else:
        R, C = x.shape
        pooled = x

    assert int(np.sum(proposal_counts)) == R

    K = params["cls_w"].shape[1]
    bbox_dim = params["bbox1_w"].shape[1]
    nb = len(params["ctx_w"])

    # TODO(synk): the PyTorch module hardcodes the ctx feature dim to 4096; we
    # take it equal to in_channels (the only configuration in which the
    # module's Linear shapes are consistent).
    ctx3 = jnp.asarray(ctx, dtype=jnp.float32).reshape(R, -1, C)
    n_ctx = ctx3.shape[1]

    kp = _ru(K, 128)
    bp = _ru(bbox_dim, 128)
    D = 5 * kp + 3 * bp
    cpad = _ru(C, 128)            # lane-aligned per-ctx-slab feature width

    # bf16 streams (memory-bound kernel; MXU is native bf16), f32 accumulation.
    pooled = pooled.astype(jnp.bfloat16)
    if cpad != C:
        ctx3 = jnp.pad(ctx3, ((0, 0), (0, 0), (0, cpad - C)))
    ctx_flat = ctx3.reshape(R, n_ctx * cpad).astype(jnp.bfloat16)

    # ---- pack the 8 x-heads into one lane-dense (C, D) weight / (1, D) bias
    head_names = ("cls", "det", "ref1", "ref2", "ref3", "bbox1", "bbox2", "bbox3")
    offsets = [i * kp for i in range(5)] + [5 * kp + j * bp for j in range(3)]
    wh_np = np.zeros((C, D), np.float32)
    bh_np = np.zeros((1, D), np.float32)
    for idx, name in enumerate(head_names):
        w = np.asarray(params[name + "_w"], np.float32)
        b = np.asarray(params[name + "_b"], np.float32)
        wh_np[:, offsets[idx]:offsets[idx] + w.shape[1]] = w
        bh_np[0, offsets[idx]:offsets[idx] + b.shape[0]] = b
    wh = jnp.asarray(wh_np, dtype=jnp.bfloat16)
    bh = jnp.asarray(bh_np, dtype=jnp.float32)

    # ---- ctx branch weights --------------------------------------------------
    if comb_ctx_method == "mean":
        # Branch-replicated big-K weight: the whole ctx mean is ONE matmul.
        w_rep = np.zeros((n_ctx * cpad, kp), np.float32)
        b_acc = np.zeros((1, kp), np.float32)
        for i in range(n_ctx):
            br = i % nb
            w_rep[i * cpad:i * cpad + C, :K] = np.asarray(params["ctx_w"][br],
                                                          np.float32)
            b_acc[0, :K] += np.asarray(params["ctx_b"][br], np.float32)
        wctx = jnp.asarray(w_rep, dtype=jnp.bfloat16)
        bctx = jnp.asarray(b_acc / n_ctx, dtype=jnp.float32)
    else:
        w_b = np.zeros((nb, cpad, kp), np.float32)
        b_b = np.zeros((nb, 1, kp), np.float32)
        for br in range(nb):
            w_b[br, :C, :K] = np.asarray(params["ctx_w"][br], np.float32)
            b_b[br, 0, :K] = np.asarray(params["ctx_b"][br], np.float32)
        wctx = jnp.asarray(w_b, dtype=jnp.bfloat16)
        bctx = jnp.asarray(b_b, dtype=jnp.float32)

    # ---- row tiling ----------------------------------------------------------
    tr_default, vmem_cap = _device_tile_defaults()
    if tile_r is None:
        tile_r = tr_default
    tr = max(8, min(_ru(tile_r, 8), _ru(R, 8)))
    R_pad = _ru(R, tr)
    if R_pad != R:
        pooled = jnp.pad(pooled, ((0, R_pad - R), (0, 0)))
        ctx_flat = jnp.pad(ctx_flat, ((0, R_pad - R), (0, 0)))
    grid = (R_pad // tr,)

    # ---- explicit scoped-VMEM limit, sized from the actual tile footprint ----
    streamed = 2 * (tr * C * 2 + tr * n_ctx * cpad * 2 + tr * D * 4)
    resident = 2 * (wh.size * 2 + wctx.size * 2) + bh.size * 4 + bctx.size * 4
    if vmem_limit_bytes is None:
        vmem_limit_bytes = int(min(vmem_cap,
                                   max(16 << 20,
                                       (streamed + resident) * 5 // 4 + (2 << 20))))

    kern_a = functools.partial(
        _mist_heads_kernel, num_classes=K, cpad=cpad, n_ctx=n_ctx,
        num_branches=nb, comb_ctx_method=comb_ctx_method, use_ctx=use_ctx,
        training=training, kp=kp, bp=bp)

    widths = (kp, kp, kp, kp, kp, bp, bp, bp)
    out_shapes = tuple(jax.ShapeDtypeStruct((R_pad, w), jnp.float32)
                       for w in widths)
    out_specs = tuple(pl.BlockSpec((tr, w), lambda i: (i, 0)) for w in widths)

    cparams = pltpu.CompilerParams(
        dimension_semantics=("parallel",),
        vmem_limit_bytes=int(vmem_limit_bytes))

    def const_spec(shape, mode):
        ndim = len(shape)
        imap = lambda i: (0,) * ndim
        if mode is None:
            return pl.BlockSpec(shape, imap)
        return pl.BlockSpec(shape, imap, pipeline_mode=mode)

    def run(weight_mode):
        in_specs = [
            pl.BlockSpec((tr, C), lambda i: (i, 0)),             # pooled tile
            pl.BlockSpec((tr, n_ctx * cpad), lambda i: (i, 0)),  # flat ctx tile
            const_spec(wh.shape, weight_mode),                   # fused head W
            const_spec(bh.shape, weight_mode),                   # fused head b
            const_spec(wctx.shape, weight_mode),                 # ctx branch W
            const_spec(bctx.shape, weight_mode),                 # ctx branch b
        ]
        return pl.pallas_call(
            kern_a,
            out_shape=out_shapes,
            grid=grid,
            in_specs=in_specs,
            out_specs=out_specs,
            compiler_params=cparams,
        )(pooled, ctx_flat, wh, bh, wctx, bctx)

    try:
        # Weights have constant index_maps -> single-buffer them (double
        # buffering a resident operand is pure VMEM waste at C=4096).
        outs = run(pl.Buffered(1))
    except Exception:
        # TODO(synk): pipeline_mode=pl.Buffered(1) rejected by this jax build;
        # fall back to default double-buffered resident weights.
        outs = run(None)

    cls_f, det_f, r1_f, r2_f, r3_f, bb1_f, bb2_f, bb3_f = outs

    cls_out = cls_f[:R, :K]
    ref_out = [r1_f[:R, :K], r2_f[:R, :K], r3_f[:R, :K]]
    bbox_out = [bb1_f[:R, :bbox_dim], bb2_f[:R, :bbox_dim], bb3_f[:R, :bbox_dim]]

    if training:
        det_out = det_f[:R, :K]
    else:
        det_slab = det_f[:R]                                   # (R, kp) lane-dense
        kern_b = functools.partial(
            _det_image_softmax_kernel,
            counts=tuple(int(c) for c in proposal_counts))
        det_prob = pl.pallas_call(
            kern_b,
            out_shape=jax.ShapeDtypeStruct((R, kp), jnp.float32),
            compiler_params=pltpu.CompilerParams(
                vmem_limit_bytes=int(min(100 << 20,
                                         max(16 << 20, 6 * R * kp * 4)))),
        )(det_slab)
        det_out = det_prob[:, :K]

    return cls_out, det_out, ref_out, bbox_out


# --------------------------------------------------------------------------
# Parameter init mirroring the PyTorch module (_initialize_weights)
# --------------------------------------------------------------------------
def init_params(key, in_channels, num_classes, num_bbox_reg_classes,
                num_ctx_branches):
    keys = jax.random.split(key, 8 + num_ctx_branches)
    bbox_dim = 4 * num_bbox_reg_classes

    def lin(k, cout):
        # nn.init.normal_(weight, std=0.001); bias = 0.
        # Stored as (C, cout), i.e. transposed relative to PyTorch's (cout, C).
        w = 0.001 * jax.random.normal(k, (in_channels, cout), dtype=jnp.float32)
        return w, jnp.zeros((cout,), jnp.float32)

    p = {}
    p["cls_w"], p["cls_b"] = lin(keys[0], num_classes)
    p["det_w"], p["det_b"] = lin(keys[1], num_classes)
    p["ref1_w"], p["ref1_b"] = lin(keys[2], num_classes)
    p["bbox1_w"], p["bbox1_b"] = lin(keys[3], bbox_dim)
    p["ref2_w"], p["ref2_b"] = lin(keys[4], num_classes)
    p["bbox2_w"], p["bbox2_b"] = lin(keys[5], bbox_dim)
    p["ref3_w"], p["ref3_b"] = lin(keys[6], num_classes)
    p["bbox3_w"], p["bbox3_b"] = lin(keys[7], bbox_dim)
    p["ctx_w"], p["ctx_b"] = [], []
    for i in range(num_ctx_branches):
        w, b = lin(keys[8 + i], num_classes)
        p["ctx_w"].append(w)
        p["ctx_b"].append(b)
    return p


# --------------------------------------------------------------------------
# Pure-JAX f32 reference mirroring the PyTorch forward
# --------------------------------------------------------------------------
def _reference(x, ctx, params, proposal_counts, comb_ctx_method, use_ctx,
               training):
    pooled = jnp.mean(x, axis=(2, 3)) if x.ndim == 4 else x
    R, C = pooled.shape
    cls_logit = pooled @ params["cls_w"] + params["cls_b"]
    det_logit = pooled @ params["det_w"] + params["det_b"]

    ctx3 = ctx.reshape(R, -1, C)
    nb = len(params["ctx_w"])
    logits = []
    for i in range(ctx3.shape[1]):
        b = i % nb
        logits.append(ctx3[:, i, :] @ params["ctx_w"][b] + params["ctx_b"][b])
    st = jnp.stack(logits, axis=0)
    if comb_ctx_method == "mean":
        ctx_logit = st.mean(axis=0)
    elif comb_ctx_method == "max":
        ctx_logit = st.max(axis=0)
    else:
        ctx_logit = st.min(axis=0)

    if use_ctx == "add":
        det_logit = det_logit + ctx_logit
    elif use_ctx == "sub":
        det_logit = det_logit - ctx_logit
    else:
        det_logit = det_logit * ctx_logit

    ref_logits = [pooled @ params[f"ref{i}_w"] + params[f"ref{i}_b"]
                  for i in (1, 2, 3)]
    bbox_preds = [pooled @ params[f"bbox{i}_w"] + params[f"bbox{i}_b"]
                  for i in (1, 2, 3)]

    if not training:
        cls_logit = jax.nn.softmax(cls_logit, axis=1)
        parts, off = [], 0
        for c in proposal_counts:
            parts.append(jax.nn.softmax(det_logit[off:off + c], axis=0))
            off += c
        det_logit = jnp.concatenate(parts, axis=0)
        ref_logits = [jax.nn.softmax(r, axis=1) for r in ref_logits]
    return cls_logit, det_logit, ref_logits, bbox_preds


if __name__ == "__main__":
    key = jax.random.PRNGKey(0)
    k_x, k_ctx, k_p = jax.random.split(key, 3)

    # Small module-consistent shapes: 16 proposals over 2 images, 32 input
    # channels, 8x8 ROI maps, 21 classes (VOC), class-agnostic bbox (2*4),
    # 2 ctx branches, 3 ctx boxes per proposal.
    R, C, H, W = 16, 32, 8, 8
    K = 21
    NUM_BBOX_REG_CLASSES = 2
    NB_CTX_BRANCHES = 2
    N_CTX = 3
    proposal_counts = [9, 7]

    x = jax.random.normal(k_x, (R, C, H, W), dtype=jnp.float32)
    ctx = jax.random.normal(k_ctx, (R, N_CTX, C), dtype=jnp.float32)
    params = init_params(k_p, C, K, NUM_BBOX_REG_CLASSES, NB_CTX_BRANCHES)

    def check(a, b):
        # bf16 streams + approx EUP reciprocal -> loosened tolerance vs f32 ref.
        assert jnp.allclose(a, b, rtol=2e-2, atol=2e-3), \
            float(jnp.max(jnp.abs(a - b)))

    def compare(outs, refs):
        cls_o, det_o, ref_o, bb_o = outs
        cls_r, det_r, ref_r, bb_r = refs
        check(cls_o, cls_r)
        check(det_o, det_r)
        for a, b in zip(ref_o, ref_r):
            check(a, b)
        for a, b in zip(bb_o, bb_r):
            check(a, b)

    # ---- eval, mean/add (tile_r=8 -> 2 grid steps on the parallel axis) -----
    outs = mist_predictor_ctx(x, ctx, params, proposal_counts,
                              comb_ctx_method="mean", use_ctx="add",
                              training=False, tile_r=8)
    jax.block_until_ready(outs)
    compare(outs, _reference(x, ctx, params, proposal_counts, "mean", "add",
                             False))

    # ---- train, mean/add (raw logits) ---------------------------------------
    outs_t = mist_predictor_ctx(x, ctx, params, proposal_counts,
                                comb_ctx_method="mean", use_ctx="add",
                                training=True, tile_r=8)
    jax.block_until_ready(outs_t)
    compare(outs_t, _reference(x, ctx, params, proposal_counts, "mean", "add",
                               True))

    # ---- eval, max/sub (per-branch matmul path) -----------------------------
    outs_m = mist_predictor_ctx(x, ctx, params, proposal_counts,
                                comb_ctx_method="max", use_ctx="sub",
                                training=False, tile_r=16)
    jax.block_until_ready(outs_m)
    compare(outs_m, _reference(x, ctx, params, proposal_counts, "max", "sub",
                               False))

    print("KERNEL_OK")
</pallas_src>

<mosaic_0001>
module attributes {stable_mosaic.version = 11 : i64} {
  func.func @_mist_heads_kernel(%arg0: i32, %arg1: memref<8x32xbf16, #tpu.memory_space<vmem>>, %arg2: memref<8x384xbf16, #tpu.memory_space<vmem>>, %arg3: memref<32x1024xbf16, #tpu.memory_space<vmem>>, %arg4: memref<1x1024xf32, #tpu.memory_space<vmem>>, %arg5: memref<384x128xbf16, #tpu.memory_space<vmem>>, %arg6: memref<1x128xf32, #tpu.memory_space<vmem>>, %arg7: memref<8x128xf32, #tpu.memory_space<vmem>>, %arg8: memref<8x128xf32, #tpu.memory_space<vmem>>, %arg9: memref<8x128xf32, #tpu.memory_space<vmem>>, %arg10: memref<8x128xf32, #tpu.memory_space<vmem>>, %arg11: memref<8x128xf32, #tpu.memory_space<vmem>>, %arg12: memref<8x128xf32, #tpu.memory_space<vmem>>, %arg13: memref<8x128xf32, #tpu.memory_space<vmem>>, %arg14: memref<8x128xf32, #tpu.memory_space<vmem>>) attributes {dimension_semantics = [#tpu.dimension_semantics<parallel>], iteration_bounds = array<i64: 2>, scalar_prefetch = 0 : i64, scratch_operands = 0 : i64, tpu.core_type = #tpu.core_type<tc>, window_params = [{transform_indices = @transform_0, window_bounds = array<i64: 8, 32>}, {transform_indices = @transform_1, window_bounds = array<i64: 8, 384>}, {pipeline_mode = #tpu.pipeline_mode<synchronous>, transform_indices = @transform_2, window_bounds = array<i64: 32, 1024>}, {pipeline_mode = #tpu.pipeline_mode<synchronous>, transform_indices = @transform_3, window_bounds = array<i64: 1, 1024>}, {pipeline_mode = #tpu.pipeline_mode<synchronous>, transform_indices = @transform_4, window_bounds = array<i64: 384, 128>}, {pipeline_mode = #tpu.pipeline_mode<synchronous>, transform_indices = @transform_5, window_bounds = array<i64: 1, 128>}, {transform_indices = @transform_6, window_bounds = array<i64: 8, 128>}, {transform_indices = @transform_7, window_bounds = array<i64: 8, 128>}, {transform_indices = @transform_8, window_bounds = array<i64: 8, 128>}, {transform_indices = @transform_9, window_bounds = array<i64: 8, 128>}, {transform_indices = @transform_10, window_bounds = array<i64: 8, 128>}, {transform_indices = @transform_11, window_bounds = array<i64: 8, 128>}, {transform_indices = @transform_12, window_bounds = array<i64: 8, 128>}, {transform_indices = @transform_13, window_bounds = array<i64: 8, 128>}]} {
    %c0 = arith.constant 0 : index
    %c0_0 = arith.constant 0 : index
    %0 = vector.load %arg1[%c0, %c0_0] : memref<8x32xbf16, #tpu.memory_space<vmem>>, vector<8x32xbf16>
    %c0_1 = arith.constant 0 : index
    %c0_2 = arith.constant 0 : index
    %1 = vector.load %arg3[%c0_1, %c0_2] : memref<32x1024xbf16, #tpu.memory_space<vmem>>, vector<32x1024xbf16>
    %cst = arith.constant dense<0.000000e+00> : vector<8x1024xf32>
    %2 = tpu.matmul %0, %1, %cst {dimension_numbers = #tpu.dot_dimension_numbers<[1], [0], [0], [1], [0, 0, 1, 1], [], []>} : vector<8x32xbf16>, vector<32x1024xbf16>, vector<8x1024xf32> -> vector<8x1024xf32>
    %c0_3 = arith.constant 0 : index
    %c0_4 = arith.constant 0 : index
    %3 = vector.load %arg4[%c0_3, %c0_4] : memref<1x1024xf32, #tpu.memory_space<vmem>>, vector<1x1024xf32>
    %4 = vector.broadcast %3 : vector<1x1024xf32> to vector<8x1024xf32>
    %5 = arith.addf %2, %4 : vector<8x1024xf32>
    %6 = vector.extract_strided_slice %5 {offsets = [0, 0], sizes = [8, 128], strides = [1, 1]} : vector<8x1024xf32> to vector<8x128xf32>
    %7 = vector.extract_strided_slice %5 {offsets = [0, 128], sizes = [8, 128], strides = [1, 1]} : vector<8x1024xf32> to vector<8x128xf32>
    %8 = vector.extract_strided_slice %5 {offsets = [0, 256], sizes = [8, 128], strides = [1, 1]} : vector<8x1024xf32> to vector<8x128xf32>
    %9 = vector.extract_strided_slice %5 {offsets = [0, 384], sizes = [8, 128], strides = [1, 1]} : vector<8x1024xf32> to vector<8x128xf32>
    %10 = vector.extract_strided_slice %5 {offsets = [0, 512], sizes = [8, 128], strides = [1, 1]} : vector<8x1024xf32> to vector<8x128xf32>
    %11 = vector.extract_strided_slice %5 {offsets = [0, 640], sizes = [8, 128], strides = [1, 1]} : vector<8x1024xf32> to vector<8x128xf32>
    %12 = vector.extract_strided_slice %5 {offsets = [0, 768], sizes = [8, 128], strides = [1, 1]} : vector<8x1024xf32> to vector<8x128xf32>
    %13 = vector.extract_strided_slice %5 {offsets = [0, 896], sizes = [8, 128], strides = [1, 1]} : vector<8x1024xf32> to vector<8x128xf32>
    %c0_5 = arith.constant 0 : index
    %c0_6 = arith.constant 0 : index
    %14 = vector.load %arg2[%c0_5, %c0_6] : memref<8x384xbf16, #tpu.memory_space<vmem>>, vector<8x384xbf16>
    %c0_7 = arith.constant 0 : index
    %c0_8 = arith.constant 0 : index
    %15 = vector.load %arg5[%c0_7, %c0_8] : memref<384x128xbf16, #tpu.memory_space<vmem>>, vector<384x128xbf16>
    %cst_9 = arith.constant dense<0.000000e+00> : vector<8x128xf32>
    %16 = tpu.matmul %14, %15, %cst_9 {dimension_numbers = #tpu.dot_dimension_numbers<[1], [0], [0], [1], [0, 0, 1, 1], [], []>} : vector<8x384xbf16>, vector<384x128xbf16>, vector<8x128xf32> -> vector<8x128xf32>
    %cst_10 = arith.constant 0.333333343 : f32
    %17 = vector.broadcast %cst_10 : f32 to vector<8x128xf32>
    %18 = arith.mulf %16, %17 : vector<8x128xf32>
    %c0_11 = arith.constant 0 : index
    %c0_12 = arith.constant 0 : index
    %19 = vector.load %arg6[%c0_11, %c0_12] : memref<1x128xf32, #tpu.memory_space<vmem>>, vector<1x128xf32>
    %20 = vector.broadcast %19 : vector<1x128xf32> to vector<8x128xf32>
    %21 = arith.addf %18, %20 : vector<8x128xf32>
    %22 = arith.addf %7, %21 : vector<8x128xf32>
    %23 = tpu.iota {dimensions = array<i32: 1>} : vector<1x128xi32>
    %c21_i32 = arith.constant 21 : i32
    %24 = vector.broadcast %c21_i32 : i32 to vector<1x128xi32>
    %25 = arith.cmpi slt, %23, %24 : vector<1x128xi32>
    %cst_13 = arith.constant -1.000000e+30 : f32
    %26 = vector.shape_cast %25 : vector<1x128xi1> to vector<1x128xi1>
    %27 = vector.broadcast %26 : vector<1x128xi1> to vector<8x128xi1>
    %28 = vector.broadcast %cst_13 : f32 to vector<8x128xf32>
    %29 = arith.select %27, %6, %28 : vector<8x128xi1>, vector<8x128xf32>
    %cst_14 = arith.constant dense<0xFF800000> : vector<8xf32>
    %30 = vector.multi_reduction <maximumf>, %29, %cst_14 [1] : vector<8x128xf32> to vector<8xf32>
    %31 = vector.shape_cast %30 : vector<8xf32> to vector<8x1xf32>
    %32 = vector.broadcast %31 : vector<8x1xf32> to vector<8x128xf32>
    %33 = arith.subf %6, %32 : vector<8x128xf32>
    %34 = math.exp %33 : vector<8x128xf32>
    %cst_15 = arith.constant 0.000000e+00 : f32
    %35 = vector.shape_cast %25 : vector<1x128xi1> to vector<1x128xi1>
    %36 = vector.broadcast %35 : vector<1x128xi1> to vector<8x128xi1>
    %37 = vector.broadcast %cst_15 : f32 to vector<8x128xf32>
    %38 = arith.select %36, %34, %37 : vector<8x128xi1>, vector<8x128xf32>
    %cst_16 = arith.constant dense<0.000000e+00> : vector<8xf32>
    %39 = vector.multi_reduction <add>, %38, %cst_16 [1] : vector<8x128xf32> to vector<8xf32>
    %40 = vector.shape_cast %39 : vector<8xf32> to vector<8x1xf32>
    %41 = tpu.reciprocal %40 {approx = true} : vector<8x1xf32> -> vector<8x1xf32>
    %42 = vector.broadcast %41 : vector<8x1xf32> to vector<8x128xf32>
    %43 = arith.mulf %38, %42 : vector<8x128xf32>
    %cst_17 = arith.constant -1.000000e+30 : f32
    %44 = vector.shape_cast %25 : vector<1x128xi1> to vector<1x128xi1>
    %45 = vector.broadcast %44 : vector<1x128xi1> to vector<8x128xi1>
    %46 = vector.broadcast %cst_17 : f32 to vector<8x128xf32>
    %47 = arith.select %45, %8, %46 : vector<8x128xi1>, vector<8x128xf32>
    %cst_18 = arith.constant dense<0xFF800000> : vector<8xf32>
    %48 = vector.multi_reduction <maximumf>, %47, %cst_18 [1] : vector<8x128xf32> to vector<8xf32>
    %49 = vector.shape_cast %48 : vector<8xf32> to vector<8x1xf32>
    %50 = vector.broadcast %49 : vector<8x1xf32> to vector<8x128xf32>
    %51 = arith.subf %8, %50 : vector<8x128xf32>
    %52 = math.exp %51 : vector<8x128xf32>
    %cst_19 = arith.constant 0.000000e+00 : f32
    %53 = vector.shape_cast %25 : vector<1x128xi1> to vector<1x128xi1>
    %54 = vector.broadcast %53 : vector<1x128xi1> to vector<8x128xi1>
    %55 = vector.broadcast %cst_19 : f32 to vector<8x128xf32>
    %56 = arith.select %54, %52, %55 : vector<8x128xi1>, vector<8x128xf32>
    %cst_20 = arith.constant dense<0.000000e+00> : vector<8xf32>
    %57 = vector.multi_reduction <add>, %56, %cst_20 [1] : vector<8x128xf32> to vector<8xf32>
    %58 = vector.shape_cast %57 : vector<8xf32> to vector<8x1xf32>
    %59 = tpu.reciprocal %58 {approx = true} : vector<8x1xf32> -> vector<8x1xf32>
    %60 = vector.broadcast %59 : vector<8x1xf32> to vector<8x128xf32>
    %61 = arith.mulf %56, %60 : vector<8x128xf32>
    %cst_21 = arith.constant -1.000000e+30 : f32
    %62 = vector.shape_cast %25 : vector<1x128xi1> to vector<1x128xi1>
    %63 = vector.broadcast %62 : vector<1x128xi1> to vector<8x128xi1>
    %64 = vector.broadcast %cst_21 : f32 to vector<8x128xf32>
    %65 = arith.select %63, %9, %64 : vector<8x128xi1>, vector<8x128xf32>
    %cst_22 = arith.constant dense<0xFF800000> : vector<8xf32>
    %66 = vector.multi_reduction <maximumf>, %65, %cst_22 [1] : vector<8x128xf32> to vector<8xf32>
    %67 = vector.shape_cast %66 : vector<8xf32> to vector<8x1xf32>
    %68 = vector.broadcast %67 : vector<8x1xf32> to vector<8x128xf32>
    %69 = arith.subf %9, %68 : vector<8x128xf32>
    %70 = math.exp %69 : vector<8x128xf32>
    %cst_23 = arith.constant 0.000000e+00 : f32
    %71 = vector.shape_cast %25 : vector<1x128xi1> to vector<1x128xi1>
    %72 = vector.broadcast %71 : vector<1x128xi1> to vector<8x128xi1>
    %73 = vector.broadcast %cst_23 : f32 to vector<8x128xf32>
    %74 = arith.select %72, %70, %73 : vector<8x128xi1>, vector<8x128xf32>
    %cst_24 = arith.constant dense<0.000000e+00> : vector<8xf32>
    %75 = vector.multi_reduction <add>, %74, %cst_24 [1] : vector<8x128xf32> to vector<8xf32>
    %76 = vector.shape_cast %75 : vector<8xf32> to vector<8x1xf32>
    %77 = tpu.reciprocal %76 {approx = true} : vector<8x1xf32> -> vector<8x1xf32>
    %78 = vector.broadcast %77 : vector<8x1xf32> to vector<8x128xf32>
    %79 = arith.mulf %74, %78 : vector<8x128xf32>
    %cst_25 = arith.constant -1.000000e+30 : f32
    %80 = vector.shape_cast %25 : vector<1x128xi1> to vector<1x128xi1>
    %81 = vector.broadcast %80 : vector<1x128xi1> to vector<8x128xi1>
    %82 = vector.broadcast %cst_25 : f32 to vector<8x128xf32>
    %83 = arith.select %81, %10, %82 : vector<8x128xi1>, vector<8x128xf32>
    %cst_26 = arith.constant dense<0xFF800000> : vector<8xf32>
    %84 = vector.multi_reduction <maximumf>, %83, %cst_26 [1] : vector<8x128xf32> to vector<8xf32>
    %85 = vector.shape_cast %84 : vector<8xf32> to vector<8x1xf32>
    %86 = vector.broadcast %85 : vector<8x1xf32> to vector<8x128xf32>
    %87 = arith.subf %10, %86 : vector<8x128xf32>
    %88 = math.exp %87 : vector<8x128xf32>
    %cst_27 = arith.constant 0.000000e+00 : f32
    %89 = vector.shape_cast %25 : vector<1x128xi1> to vector<1x128xi1>
    %90 = vector.broadcast %89 : vector<1x128xi1> to vector<8x128xi1>
    %91 = vector.broadcast %cst_27 : f32 to vector<8x128xf32>
    %92 = arith.select %90, %88, %91 : vector<8x128xi1>, vector<8x128xf32>
    %cst_28 = arith.constant dense<0.000000e+00> : vector<8xf32>
    %93 = vector.multi_reduction <add>, %92, %cst_28 [1] : vector<8x128xf32> to vector<8xf32>
    %94 = vector.shape_cast %93 : vector<8xf32> to vector<8x1xf32>
    %95 = tpu.reciprocal %94 {approx = true} : vector<8x1xf32> -> vector<8x1xf32>
    %96 = vector.broadcast %95 : vector<8x1xf32> to vector<8x128xf32>
    %97 = arith.mulf %92, %96 : vector<8x128xf32>
    %c0_29 = arith.constant 0 : index
    %c0_30 = arith.constant 0 : index
    %98 = vector.load %arg7[%c0_29, %c0_30] : memref<8x128xf32, #tpu.memory_space<vmem>>, vector<8x128xf32>
    tpu.vector_store %arg7[%c0_29, %c0_30], %43 {strides = array<i32>} : memref<8x128xf32, #tpu.memory_space<vmem>>, vector<8x128xf32>,
    %c0_31 = arith.constant 0 : index
    %c0_32 = arith.constant 0 : index
    %99 = vector.load %arg8[%c0_31, %c0_32] : memref<8x128xf32, #tpu.memory_space<vmem>>, vector<8x128xf32>
    tpu.vector_store %arg8[%c0_31, %c0_32], %22 {strides = array<i32>} : memref<8x128xf32, #tpu.memory_space<vmem>>, vector<8x128xf32>,
    %c0_33 = arith.constant 0 : index
    %c0_34 = arith.constant 0 : index
    %100 = vector.load %arg9[%c0_33, %c0_34] : memref<8x128xf32, #tpu.memory_space<vmem>>, vector<8x128xf32>
    tpu.vector_store %arg9[%c0_33, %c0_34], %61 {strides = array<i32>} : memref<8x128xf32, #tpu.memory_space<vmem>>, vector<8x128xf32>,
    %c0_35 = arith.constant 0 : index
    %c0_36 = arith.constant 0 : index
    %101 = vector.load %arg10[%c0_35, %c0_36] : memref<8x128xf32, #tpu.memory_space<vmem>>, vector<8x128xf32>
    tpu.vector_store %arg10[%c0_35, %c0_36], %79 {strides = array<i32>} : memref<8x128xf32, #tpu.memory_space<vmem>>, vector<8x128xf32>,
    %c0_37 = arith.constant 0 : index
    %c0_38 = arith.constant 0 : index
    %102 = vector.load %arg11[%c0_37, %c0_38] : memref<8x128xf32, #tpu.memory_space<vmem>>, vector<8x128xf32>
    tpu.vector_store %arg11[%c0_37, %c0_38], %97 {strides = array<i32>} : memref<8x128xf32, #tpu.memory_space<vmem>>, vector<8x128xf32>,
    %c0_39 = arith.constant 0 : index
    %c0_40 = arith.constant 0 : index
    %103 = vector.load %arg12[%c0_39, %c0_40] : memref<8x128xf32, #tpu.memory_space<vmem>>, vector<8x128xf32>
    tpu.vector_store %arg12[%c0_39, %c0_40], %11 {strides = array<i32>} : memref<8x128xf32, #tpu.memory_space<vmem>>, vector<8x128xf32>,
    %c0_41 = arith.constant 0 : index
    %c0_42 = arith.constant 0 : index
    %104 = vector.load %arg13[%c0_41, %c0_42] : memref<8x128xf32, #tpu.memory_space<vmem>>, vector<8x128xf32>
    tpu.vector_store %arg13[%c0_41, %c0_42], %12 {strides = array<i32>} : memref<8x128xf32, #tpu.memory_space<vmem>>, vector<8x128xf32>,
    %c0_43 = arith.constant 0 : index
    %c0_44 = arith.constant 0 : index
    %105 = vector.load %arg14[%c0_43, %c0_44] : memref<8x128xf32, #tpu.memory_space<vmem>>, vector<8x128xf32>
    tpu.vector_store %arg14[%c0_43, %c0_44], %13 {strides = array<i32>} : memref<8x128xf32, #tpu.memory_space<vmem>>, vector<8x128xf32>,
    return
  }
  func.func @transform_0(%arg0: i32) -> (i32, i32) {
    %c0_i32 = arith.constant 0 : i32
    %c0_i32_0 = arith.constant 0 : i32
    return %arg0, %c0_i32 : i32, i32
  }
  func.func @transform_1(%arg0: i32) -> (i32, i32) {
    %c0_i32 = arith.constant 0 : i32
    %c0_i32_0 = arith.constant 0 : i32
    return %arg0, %c0_i32 : i32, i32
  }
  func.func @transform_2(%arg0: i32) -> (i32, i32) {
    %c0_i32 = arith.constant 0 : i32
    %c0_i32_0 = arith.constant 0 : i32
    %c0_i32_1 = arith.constant 0 : i32
    return %c0_i32, %c0_i32_0 : i32, i32
  }
  func.func @transform_3(%arg0: i32) -> (i32, i32) {
    %c0_i32 = arith.constant 0 : i32
    %c0_i32_0 = arith.constant 0 : i32
    %c0_i32_1 = arith.constant 0 : i32
    return %c0_i32, %c0_i32_0 : i32, i32
  }
  func.func @transform_4(%arg0: i32) -> (i32, i32) {
    %c0_i32 = arith.constant 0 : i32
    %c0_i32_0 = arith.constant 0 : i32
    %c0_i32_1 = arith.constant 0 : i32
    return %c0_i32, %c0_i32_0 : i32, i32
  }
  func.func @transform_5(%arg0: i32) -> (i32, i32) {
    %c0_i32 = arith.constant 0 : i32
    %c0_i32_0 = arith.constant 0 : i32
    %c0_i32_1 = arith.constant 0 : i32
    return %c0_i32, %c0_i32_0 : i32, i32
  }
  func.func @transform_6(%arg0: i32) -> (i32, i32) {
    %c0_i32 = arith.constant 0 : i32
    %c0_i32_0 = arith.constant 0 : i32
    return %arg0, %c0_i32 : i32, i32
  }
  func.func @transform_7(%arg0: i32) -> (i32, i32) {
    %c0_i32 = arith.constant 0 : i32
    %c0_i32_0 = arith.constant 0 : i32
    return %arg0, %c0_i32 : i32, i32
  }
  func.func @transform_8(%arg0: i32) -> (i32, i32) {
    %c0_i32 = arith.constant 0 : i32
    %c0_i32_0 = arith.constant 0 : i32
    return %arg0, %c0_i32 : i32, i32
  }
  func.func @transform_9(%arg0: i32) -> (i32, i32) {
    %c0_i32 = arith.constant 0 : i32
    %c0_i32_0 = arith.constant 0 : i32
    return %arg0, %c0_i32 : i32, i32
  }
  func.func @transform_10(%arg0: i32) -> (i32, i32) {
    %c0_i32 = arith.constant 0 : i32
    %c0_i32_0 = arith.constant 0 : i32
    return %arg0, %c0_i32 : i32, i32
  }
  func.func @transform_11(%arg0: i32) -> (i32, i32) {
    %c0_i32 = arith.constant 0 : i32
    %c0_i32_0 = arith.constant 0 : i32
    return %arg0, %c0_i32 : i32, i32
  }
  func.func @transform_12(%arg0: i32) -> (i32, i32) {
    %c0_i32 = arith.constant 0 : i32
    %c0_i32_0 = arith.constant 0 : i32
    return %arg0, %c0_i32 : i32, i32
  }
  func.func @transform_13(%arg0: i32) -> (i32, i32) {
    %c0_i32 = arith.constant 0 : i32
    %c0_i32_0 = arith.constant 0 : i32
    return %arg0, %c0_i32 : i32, i32
  }
}

module attributes {stable_mosaic.version = 11 : i64} {
  func.func @_mist_heads_kernel(%arg0: i32, %arg1: memref<8x32xbf16, #tpu.memory_space<vmem>>, %arg2: memref<8x384xbf16, #tpu.memory_space<vmem>>, %arg3: memref<32x1024xbf16, #tpu.memory_space<vmem>>, %arg4: memref<1x1024xf32, #tpu.memory_space<vmem>>, %arg5: memref<384x128xbf16, #tpu.memory_space<vmem>>, %arg6: memref<1x128xf32, #tpu.memory_space<vmem>>, %arg7: memref<8x128xf32, #tpu.memory_space<vmem>>, %arg8: memref<8x128xf32, #tpu.memory_space<vmem>>, %arg9: memref<8x128xf32, #tpu.memory_space<vmem>>, %arg10: memref<8x128xf32, #tpu.memory_space<vmem>>, %arg11: memref<8x128xf32, #tpu.memory_space<vmem>>, %arg12: memref<8x128xf32, #tpu.memory_space<vmem>>, %arg13: memref<8x128xf32, #tpu.memory_space<vmem>>, %arg14: memref<8x128xf32, #tpu.memory_space<vmem>>) attributes {dimension_semantics = [#tpu.dimension_semantics<parallel>], iteration_bounds = array<i64: 2>, scalar_prefetch = 0 : i64, scratch_operands = 0 : i64, tpu.core_type = #tpu.core_type<tc>, window_params = [{transform_indices = @transform_0, window_bounds = array<i64: 8, 32>}, {transform_indices = @transform_1, window_bounds = array<i64: 8, 384>}, {pipeline_mode = #tpu.pipeline_mode<synchronous>, transform_indices = @transform_2, window_bounds = array<i64: 32, 1024>}, {pipeline_mode = #tpu.pipeline_mode<synchronous>, transform_indices = @transform_3, window_bounds = array<i64: 1, 1024>}, {pipeline_mode = #tpu.pipeline_mode<synchronous>, transform_indices = @transform_4, window_bounds = array<i64: 384, 128>}, {pipeline_mode = #tpu.pipeline_mode<synchronous>, transform_indices = @transform_5, window_bounds = array<i64: 1, 128>}, {transform_indices = @transform_6, window_bounds = array<i64: 8, 128>}, {transform_indices = @transform_7, window_bounds = array<i64: 8, 128>}, {transform_indices = @transform_8, window_bounds = array<i64: 8, 128>}, {transform_indices = @transform_9, window_bounds = array<i64: 8, 128>}, {transform_indices = @transform_10, window_bounds = array<i64: 8, 128>}, {transform_indices = @transform_11, window_bounds = array<i64: 8, 128>}, {transform_indices = @transform_12, window_bounds = array<i64: 8, 128>}, {transform_indices = @transform_13, window_bounds = array<i64: 8, 128>}]} {
    %c0 = arith.constant 0 : index
    %c0_0 = arith.constant 0 : index
    %0 = vector.load %arg1[%c0, %c0_0] : memref<8x32xbf16, #tpu.memory_space<vmem>>, vector<8x32xbf16>
    %c0_1 = arith.constant 0 : index
    %c0_2 = arith.constant 0 : index
    %1 = vector.load %arg3[%c0_1, %c0_2] : memref<32x1024xbf16, #tpu.memory_space<vmem>>, vector<32x1024xbf16>
    %cst = arith.constant dense<0.000000e+00> : vector<8x1024xf32>
    %2 = tpu.matmul %0, %1, %cst {dimension_numbers = #tpu.dot_dimension_numbers<[1], [0], [0], [1], [0, 0, 1, 1], [], []>} : vector<8x32xbf16>, vector<32x1024xbf16>, vector<8x1024xf32> -> vector<8x1024xf32>
    %c0_3 = arith.constant 0 : index
    %c0_4 = arith.constant 0 : index
    %3 = vector.load %arg4[%c0_3, %c0_4] : memref<1x1024xf32, #tpu.memory_space<vmem>>, vector<1x1024xf32>
    %4 = vector.broadcast %3 : vector<1x1024xf32> to vector<8x1024xf32>
    %5 = arith.addf %2, %4 : vector<8x1024xf32>
    %6 = vector.extract_strided_slice %5 {offsets = [0, 0], sizes = [8, 128], strides = [1, 1]} : vector<8x1024xf32> to vector<8x128xf32>
    %7 = vector.extract_strided_slice %5 {offsets = [0, 128], sizes = [8, 128], strides = [1, 1]} : vector<8x1024xf32> to vector<8x128xf32>
    %8 = vector.extract_strided_slice %5 {offsets = [0, 256], sizes = [8, 128], strides = [1, 1]} : vector<8x1024xf32> to vector<8x128xf32>
    %9 = vector.extract_strided_slice %5 {offsets = [0, 384], sizes = [8, 128], strides = [1, 1]} : vector<8x1024xf32> to vector<8x128xf32>
    %10 = vector.extract_strided_slice %5 {offsets = [0, 512], sizes = [8, 128], strides = [1, 1]} : vector<8x1024xf32> to vector<8x128xf32>
    %11 = vector.extract_strided_slice %5 {offsets = [0, 640], sizes = [8, 128], strides = [1, 1]} : vector<8x1024xf32> to vector<8x128xf32>
    %12 = vector.extract_strided_slice %5 {offsets = [0, 768], sizes = [8, 128], strides = [1, 1]} : vector<8x1024xf32> to vector<8x128xf32>
    %13 = vector.extract_strided_slice %5 {offsets = [0, 896], sizes = [8, 128], strides = [1, 1]} : vector<8x1024xf32> to vector<8x128xf32>
    %c0_5 = arith.constant 0 : index
    %c0_6 = arith.constant 0 : index
    %14 = vector.load %arg2[%c0_5, %c0_6] : memref<8x384xbf16, #tpu.memory_space<vmem>>, vector<8x384xbf16>
    %c0_7 = arith.constant 0 : index
    %c0_8 = arith.constant 0 : index
    %15 = vector.load %arg5[%c0_7, %c0_8] : memref<384x128xbf16, #tpu.memory_space<vmem>>, vector<384x128xbf16>
    %cst_9 = arith.constant dense<0.000000e+00> : vector<8x128xf32>
    %16 = tpu.matmul %14, %15, %cst_9 {dimension_numbers = #tpu.dot_dimension_numbers<[1], [0], [0], [1], [0, 0, 1, 1], [], []>} : vector<8x384xbf16>, vector<384x128xbf16>, vector<8x128xf32> -> vector<8x128xf32>
    %cst_10 = arith.constant 0.333333343 : f32
    %17 = vector.broadcast %cst_10 : f32 to vector<8x128xf32>
    %18 = arith.mulf %16, %17 : vector<8x128xf32>
    %c0_11 = arith.constant 0 : index
    %c0_12 = arith.constant 0 : index
    %19 = vector.load %arg6[%c0_11, %c0_12] : memref<1x128xf32, #tpu.memory_space<vmem>>, vector<1x128xf32>
    %20 = vector.broadcast %19 : vector<1x128xf32> to vector<8x128xf32>
    %21 = arith.addf %18, %20 : vector<8x128xf32>
    %22 = arith.addf %7, %21 : vector<8x128xf32>
    %23 = tpu.iota {dimensions = array<i32: 1>} : vector<1x128xi32>
    %c21_i32 = arith.constant 21 : i32
    %24 = vector.broadcast %c21_i32 : i32 to vector<1x128xi32>
    %25 = arith.cmpi slt, %23, %24 : vector<1x128xi32>
    %cst_13 = arith.constant -1.000000e+30 : f32
    %26 = vector.shape_cast %25 : vector<1x128xi1> to vector<1x128xi1>
    %27 = vector.broadcast %26 : vector<1x128xi1> to vector<8x128xi1>
    %28 = vector.broadcast %cst_13 : f32 to vector<8x128xf32>
    %29 = arith.select %27, %6, %28 : vector<8x128xi1>, vector<8x128xf32>
    %cst_14 = arith.constant dense<0xFF800000> : vector<8xf32>
    %30 = vector.multi_reduction <maximumf>, %29, %cst_14 [1] : vector<8x128xf32> to vector<8xf32>
    %31 = vector.shape_cast %30 : vector<8xf32> to vector<8x1xf32>
    %32 = vector.broadcast %31 : vector<8x1xf32> to vector<8x128xf32>
    %33 = arith.subf %6, %32 : vector<8x128xf32>
    %34 = math.exp %33 : vector<8x128xf32>
    %cst_15 = arith.constant 0.000000e+00 : f32
    %35 = vector.shape_cast %25 : vector<1x128xi1> to vector<1x128xi1>
    %36 = vector.broadcast %35 : vector<1x128xi1> to vector<8x128xi1>
    %37 = vector.broadcast %cst_15 : f32 to vector<8x128xf32>
    %38 = arith.select %36, %34, %37 : vector<8x128xi1>, vector<8x128xf32>
    %cst_16 = arith.constant dense<0.000000e+00> : vector<8xf32>
    %39 = vector.multi_reduction <add>, %38, %cst_16 [1] : vector<8x128xf32> to vector<8xf32>
    %40 = vector.shape_cast %39 : vector<8xf32> to vector<8x1xf32>
    %41 = tpu.reciprocal %40 {approx = true} : vector<8x1xf32> -> vector<8x1xf32>
    %42 = vector.broadcast %41 : vector<8x1xf32> to vector<8x128xf32>
    %43 = arith.mulf %38, %42 : vector<8x128xf32>
    %cst_17 = arith.constant -1.000000e+30 : f32
    %44 = vector.shape_cast %25 : vector<1x128xi1> to vector<1x128xi1>
    %45 = vector.broadcast %44 : vector<1x128xi1> to vector<8x128xi1>
    %46 = vector.broadcast %cst_17 : f32 to vector<8x128xf32>
    %47 = arith.select %45, %8, %46 : vector<8x128xi1>, vector<8x128xf32>
    %cst_18 = arith.constant dense<0xFF800000> : vector<8xf32>
    %48 = vector.multi_reduction <maximumf>, %47, %cst_18 [1] : vector<8x128xf32> to vector<8xf32>
    %49 = vector.shape_cast %48 : vector<8xf32> to vector<8x1xf32>
    %50 = vector.broadcast %49 : vector<8x1xf32> to vector<8x128xf32>
    %51 = arith.subf %8, %50 : vector<8x128xf32>
    %52 = math.exp %51 : vector<8x128xf32>
    %cst_19 = arith.constant 0.000000e+00 : f32
    %53 = vector.shape_cast %25 : vector<1x128xi1> to vector<1x128xi1>
    %54 = vector.broadcast %53 : vector<1x128xi1> to vector<8x128xi1>
    %55 = vector.broadcast %cst_19 : f32 to vector<8x128xf32>
    %56 = arith.select %54, %52, %55 : vector<8x128xi1>, vector<8x128xf32>
    %cst_20 = arith.constant dense<0.000000e+00> : vector<8xf32>
    %57 = vector.multi_reduction <add>, %56, %cst_20 [1] : vector<8x128xf32> to vector<8xf32>
    %58 = vector.shape_cast %57 : vector<8xf32> to vector<8x1xf32>
    %59 = tpu.reciprocal %58 {approx = true} : vector<8x1xf32> -> vector<8x1xf32>
    %60 = vector.broadcast %59 : vector<8x1xf32> to vector<8x128xf32>
    %61 = arith.mulf %56, %60 : vector<8x128xf32>
    %cst_21 = arith.constant -1.000000e+30 : f32
    %62 = vector.shape_cast %25 : vector<1x128xi1> to vector<1x128xi1>
    %63 = vector.broadcast %62 : vector<1x128xi1> to vector<8x128xi1>
    %64 = vector.broadcast %cst_21 : f32 to vector<8x128xf32>
    %65 = arith.select %63, %9, %64 : vector<8x128xi1>, vector<8x128xf32>
    %cst_22 = arith.constant dense<0xFF800000> : vector<8xf32>
    %66 = vector.multi_reduction <maximumf>, %65, %cst_22 [1] : vector<8x128xf32> to vector<8xf32>
    %67 = vector.shape_cast %66 : vector<8xf32> to vector<8x1xf32>
    %68 = vector.broadcast %67 : vector<8x1xf32> to vector<8x128xf32>
    %69 = arith.subf %9, %68 : vector<8x128xf32>
    %70 = math.exp %69 : vector<8x128xf32>
    %cst_23 = arith.constant 0.000000e+00 : f32
    %71 = vector.shape_cast %25 : vector<1x128xi1> to vector<1x128xi1>
    %72 = vector.broadcast %71 : vector<1x128xi1> to vector<8x128xi1>
    %73 = vector.broadcast %cst_23 : f32 to vector<8x128xf32>
    %74 = arith.select %72, %70, %73 : vector<8x128xi1>, vector<8x128xf32>
    %cst_24 = arith.constant dense<0.000000e+00> : vector<8xf32>
    %75 = vector.multi_reduction <add>, %74, %cst_24 [1] : vector<8x128xf32> to vector<8xf32>
    %76 = vector.shape_cast %75 : vector<8xf32> to vector<8x1xf32>
    %77 = tpu.reciprocal %76 {approx = true} : vector<8x1xf32> -> vector<8x1xf32>
    %78 = vector.broadcast %77 : vector<8x1xf32> to vector<8x128xf32>
    %79 = arith.mulf %74, %78 : vector<8x128xf32>
    %cst_25 = arith.constant -1.000000e+30 : f32
    %80 = vector.shape_cast %25 : vector<1x128xi1> to vector<1x128xi1>
    %81 = vector.broadcast %80 : vector<1x128xi1> to vector<8x128xi1>
    %82 = vector.broadcast %cst_25 : f32 to vector<8x128xf32>
    %83 = arith.select %81, %10, %82 : vector<8x128xi1>, vector<8x128xf32>
    %cst_26 = arith.constant dense<0xFF800000> : vector<8xf32>
    %84 = vector.multi_reduction <maximumf>, %83, %cst_26 [1] : vector<8x128xf32> to vector<8xf32>
    %85 = vector.shape_cast %84 : vector<8xf32> to vector<8x1xf32>
    %86 = vector.broadcast %85 : vector<8x1xf32> to vector<8x128xf32>
    %87 = arith.subf %10, %86 : vector<8x128xf32>
    %88 = math.exp %87 : vector<8x128xf32>
    %cst_27 = arith.constant 0.000000e+00 : f32
    %89 = vector.shape_cast %25 : vector<1x128xi1> to vector<1x128xi1>
    %90 = vector.broadcast %89 : vector<1x128xi1> to vector<8x128xi1>
    %91 = vector.broadcast %cst_27 : f32 to vector<8x128xf32>
    %92 = arith.select %90, %88, %91 : vector<8x128xi1>, vector<8x128xf32>
    %cst_28 = arith.constant dense<0.000000e+00> : vector<8xf32>
    %93 = vector.multi_reduction <add>, %92, %cst_28 [1] : vector<8x128xf32> to vector<8xf32>
    %94 = vector.shape_cast %93 : vector<8xf32> to vector<8x1xf32>
    %95 = tpu.reciprocal %94 {approx = true} : vector<8x1xf32> -> vector<8x1xf32>
    %96 = vector.broadcast %95 : vector<8x1xf32> to vector<8x128xf32>
    %97 = arith.mulf %92, %96 : vector<8x128xf32>
    %c0_29 = arith.constant 0 : index
    %c0_30 = arith.constant 0 : index
    %98 = vector.load %arg7[%c0_29, %c0_30] : memref<8x128xf32, #tpu.memory_space<vmem>>, vector<8x128xf32>
    tpu.vector_store %arg7[%c0_29, %c0_30], %43 {strides = array<i32>} : memref<8x128xf32, #tpu.memory_space<vmem>>, vector<8x128xf32>,
    %c0_31 = arith.constant 0 : index
    %c0_32 = arith.constant 0 : index
    %99 = vector.load %arg8[%c0_31, %c0_32] : memref<8x128xf32, #tpu.memory_space<vmem>>, vector<8x128xf32>
    tpu.vector_store %arg8[%c0_31, %c0_32], %22 {strides = array<i32>} : memref<8x128xf32, #tpu.memory_space<vmem>>, vector<8x128xf32>,
    %c0_33 = arith.constant 0 : index
    %c0_34 = arith.constant 0 : index
    %100 = vector.load %arg9[%c0_33, %c0_34] : memref<8x128xf32, #tpu.memory_space<vmem>>, vector<8x128xf32>
    tpu.vector_store %arg9[%c0_33, %c0_34], %61 {strides = array<i32>} : memref<8x128xf32, #tpu.memory_space<vmem>>, vector<8x128xf32>,
    %c0_35 = arith.constant 0 : index
    %c0_36 = arith.constant 0 : index
    %101 = vector.load %arg10[%c0_35, %c0_36] : memref<8x128xf32, #tpu.memory_space<vmem>>, vector<8x128xf32>
    tpu.vector_store %arg10[%c0_35, %c0_36], %79 {strides = array<i32>} : memref<8x128xf32, #tpu.memory_space<vmem>>, vector<8x128xf32>,
    %c0_37 = arith.constant 0 : index
    %c0_38 = arith.constant 0 : index
    %102 = vector.load %arg11[%c0_37, %c0_38] : memref<8x128xf32, #tpu.memory_space<vmem>>, vector<8x128xf32>
    tpu.vector_store %arg11[%c0_37, %c0_38], %97 {strides = array<i32>} : memref<8x128xf32, #tpu.memory_space<vmem>>, vector<8x128xf32>,
    %c0_39 = arith.constant 0 : index
    %c0_40 = arith.constant 0 : index
    %103 = vector.load %arg12[%c0_39, %c0_40] : memref<8x128xf32, #tpu.memory_space<vmem>>, vector<8x128xf32>
    tpu.vector_store %arg12[%c0_39, %c0_40], %11 {strides = array<i32>} : memref<8x128xf32, #tpu.memory_space<vmem>>, vector<8x128xf32>,
    %c0_41 = arith.constant 0 : index
    %c0_42 = arith.constant 0 : index
    %104 = vector.load %arg13[%c0_41, %c0_42] : memref<8x128xf32, #tpu.memory_space<vmem>>, vector<8x128xf32>
    tpu.vector_store %arg13[%c0_41, %c0_42], %12 {strides = array<i32>} : memref<8x128xf32, #tpu.memory_space<vmem>>, vector<8x128xf32>,
    %c0_43 = arith.constant 0 : index
    %c0_44 = arith.constant 0 : index
    %105 = vector.load %arg14[%c0_43, %c0_44] : memref<8x128xf32, #tpu.memory_space<vmem>>, vector<8x128xf32>
    tpu.vector_store %arg14[%c0_43, %c0_44], %13 {strides = array<i32>} : memref<8x128xf32, #tpu.memory_space<vmem>>, vector<8x128xf32>,
    return
  }
  func.func @transform_0(%arg0: i32) -> (i32, i32) {
    %c0_i32 = arith.constant 0 : i32
    %c0_i32_0 = arith.constant 0 : i32
    return %arg0, %c0_i32 : i32, i32
  }
  func.func @transform_1(%arg0: i32) -> (i32, i32) {
    %c0_i32 = arith.constant 0 : i32
    %c0_i32_0 = arith.constant 0 : i32
    return %arg0, %c0_i32 : i32, i32
  }
  func.func @transform_2(%arg0: i32) -> (i32, i32) {
    %c0_i32 = arith.constant 0 : i32
    %c0_i32_0 = arith.constant 0 : i32
    %c0_i32_1 = arith.constant 0 : i32
    return %c0_i32, %c0_i32_0 : i32, i32
  }
  func.func @transform_3(%arg0: i32) -> (i32, i32) {
    %c0_i32 = arith.constant 0 : i32
    %c0_i32_0 = arith.constant 0 : i32
    %c0_i32_1 = arith.constant 0 : i32
    return %c0_i32, %c0_i32_0 : i32, i32
  }
  func.func @transform_4(%arg0: i32) -> (i32, i32) {
    %c0_i32 = arith.constant 0 : i32
    %c0_i32_0 = arith.constant 0 : i32
    %c0_i32_1 = arith.constant 0 : i32
    return %c0_i32, %c0_i32_0 : i32, i32
  }
  func.func @transform_5(%arg0: i32) -> (i32, i32) {
    %c0_i32 = arith.constant 0 : i32
    %c0_i32_0 = arith.constant 0 : i32
    %c0_i32_1 = arith.constant 0 : i32
    return %c0_i32, %c0_i32_0 : i32, i32
  }
  func.func @transform_6(%arg0: i32) -> (i32, i32) {
    %c0_i32 = arith.constant 0 : i32
    %c0_i32_0 = arith.constant 0 : i32
    return %arg0, %c0_i32 : i32, i32
  }
  func.func @transform_7(%arg0: i32) -> (i32, i32) {
    %c0_i32 = arith.constant 0 : i32
    %c0_i32_0 = arith.constant 0 : i32
    return %arg0, %c0_i32 : i32, i32
  }
  func.func @transform_8(%arg0: i32) -> (i32, i32) {
    %c0_i32 = arith.constant 0 : i32
    %c0_i32_0 = arith.constant 0 : i32
    return %arg0, %c0_i32 : i32, i32
  }
  func.func @transform_9(%arg0: i32) -> (i32, i32) {
    %c0_i32 = arith.constant 0 : i32
    %c0_i32_0 = arith.constant 0 : i32
    return %arg0, %c0_i32 : i32, i32
  }
  func.func @transform_10(%arg0: i32) -> (i32, i32) {
    %c0_i32 = arith.constant 0 : i32
    %c0_i32_0 = arith.constant 0 : i32
    return %arg0, %c0_i32 : i32, i32
  }
  func.func @transform_11(%arg0: i32) -> (i32, i32) {
    %c0_i32 = arith.constant 0 : i32
    %c0_i32_0 = arith.constant 0 : i32
    return %arg0, %c0_i32 : i32, i32
  }
  func.func @transform_12(%arg0: i32) -> (i32, i32) {
    %c0_i32 = arith.constant 0 : i32
    %c0_i32_0 = arith.constant 0 : i32
    return %arg0, %c0_i32 : i32, i32
  }
  func.func @transform_13(%arg0: i32) -> (i32, i32) {
    %c0_i32 = arith.constant 0 : i32
    %c0_i32_0 = arith.constant 0 : i32
    return %arg0, %c0_i32 : i32, i32
  }
}

</mosaic_0001>

<llo_original>
// kernel: tpu_custom_call.1
$region0: #{tpu_custom_call.1}
  #allocation0 [shape = 'u32[]', space=smem, size = 0x4, offset = 0x4, fixed_abs, tag = 'smem constant byte address 0x4 - core index']
  #allocation1 [shape = 'u32[144,128]{1,0:T(1,128)}', space=vmem, size = 0x12000, scoped, tag = 'internal scratch']
  %s0 = inlined_call_operand.hbm [shape: bf16[16,32], index: 0, kind: input, shape index: {}]
  %s1 = inlined_call_operand.hbm [shape: bf16[16,384], index: 1, kind: input, shape index: {}]
  %s2 = inlined_call_operand.hbm [shape: bf16[32,1024], index: 2, kind: input, shape index: {}]
  %s3 = inlined_call_operand.vmem [shape: f32[1,1024], index: 3, kind: input, shape index: {}]
  %s4 = inlined_call_operand.hbm [shape: bf16[384,128], index: 4, kind: input, shape index: {}]
  %s5 = inlined_call_operand.vmem [shape: f32[1,128], index: 5, kind: input, shape index: {}]
  %s6 = inlined_call_operand.hbm [shape: f32[16,128], index: 6, kind: output, shape index: {0}]
  %s7 = inlined_call_operand.hbm [shape: f32[16,128], index: 7, kind: output, shape index: {1}]
  %s8 = inlined_call_operand.hbm [shape: f32[16,128], index: 8, kind: output, shape index: {2}]
  %s9 = inlined_call_operand.hbm [shape: f32[16,128], index: 9, kind: output, shape index: {3}]
  %s10 = inlined_call_operand.hbm [shape: f32[16,128], index: 10, kind: output, shape index: {4}]
  %s11 = inlined_call_operand.hbm [shape: f32[16,128], index: 11, kind: output, shape index: {5}]
  %s12 = inlined_call_operand.hbm [shape: f32[16,128], index: 12, kind: output, shape index: {6}]
  %s13 = inlined_call_operand.hbm [shape: f32[16,128], index: 13, kind: output, shape index: {7}]
  %14 = xla_tuple %s6, %s7, %s8, %s9, %s10, %s11, %s12, %s13
  %s15 = sld [smem:[#allocation0]]
  $region129: #{tpu_custom_call.1} parent=0
    _
  %s17 = ssub.s32 1, %s15
  %s18 = scalar_select 0, %s17, %s15
  $region1: #{tpu_custom_call.1} parent=0
    #allocation2 [shape = 'u8[4096]{0}', space=vmem, size = 0x1000, scoped, tag = 'input window, operand 0']
    #allocation3 [shape = 's32[2]{0}', space=sflag, size = 0x8, scoped, tag = 'scoped memory for tpu_custom_call.1']
    #allocation4 [shape = 's32[2]{0}', space=sflag, size = 0x8, scoped, tag = 'scoped memory for tpu_custom_call.1']
    #allocation5 [shape = 'u8[12288]{0}', space=vmem, size = 0x3000, scoped, tag = 'input window, operand 1']
    #allocation6 [shape = 's32[2]{0}', space=sflag, size = 0x8, scoped, tag = 'scoped memory for tpu_custom_call.1']
    #allocation7 [shape = 'u8[65536]{0}', space=vmem, size = 0x10000, scoped, tag = 'input window, operand 2, single buffered']
    #allocation8 [shape = 'u8[98304]{0}', space=vmem, size = 0x18000, scoped, tag = 'input window, operand 4, single buffered']
    #allocation9 [shape = 's32[1]{0}', space=sflag, size = 0x4, scoped, tag = 'scoped memory for tpu_custom_call.1']
    #allocation10 [shape = 'u8[8192]{0}', space=vmem, size = 0x2000, scoped, tag = 'output window, operand 0']
    #allocation11 [shape = 'u8[8192]{0}', space=vmem, size = 0x2000, scoped, tag = 'output window, operand 1']
    #allocation12 [shape = 's32[2]{0}', space=sflag, size = 0x8, scoped, tag = 'scoped memory for tpu_custom_call.1']
    #allocation13 [shape = 'u8[8192]{0}', space=vmem, size = 0x2000, scoped, tag = 'output window, operand 2']
    #allocation14 [shape = 'u8[8192]{0}', space=vmem, size = 0x2000, scoped, tag = 'output window, operand 3']
    #allocation15 [shape = 's32[2]{0}', space=sflag, size = 0x8, scoped, tag = 'scoped memory for tpu_custom_call.1']
    #allocation16 [shape = 'u8[8192]{0}', space=vmem, size = 0x2000, scoped, tag = 'output window, operand 4']
    #allocation17 [shape = 'u8[8192]{0}', space=vmem, size = 0x2000, scoped, tag = 'output window, operand 5']
    #allocation18 [shape = 's32[2]{0}', space=sflag, size = 0x8, scoped, tag = 'scoped memory for tpu_custom_call.1']
    #allocation19 [shape = 'u8[8192]{0}', space=vmem, size = 0x2000, scoped, tag = 'output window, operand 6']
    #allocation20 [shape = 'u8[8192]{0}', space=vmem, size = 0x2000, scoped, tag = 'output window, operand 7']
    #allocation21 [shape = 's32[2]{0}', space=sflag, size = 0x8, scoped, tag = 'scoped memory for tpu_custom_call.1']
    %19 = vsyncpa [#allocation3], 0
    %s20 = scalar_lea.sflag [#allocation3], 1
    %21 = vsyncpa %s20, 0
    %22 = vsyncpa [#allocation6], 0
    %s23 = scalar_lea.sflag [#allocation6], 1
    %24 = vsyncpa %s23, 0
    %25 = vsyncpa [#allocation9], 0
    %26 = vsyncpa [#allocation4], 0
    %s27 = scalar_lea.sflag [#allocation4], 1
    %28 = vsyncpa %s27, 0
    %29 = vsyncpa [#allocation12], 0
    %s30 = scalar_lea.sflag [#allocation12], 1
    %31 = vsyncpa %s30, 0
    %32 = vsyncpa [#allocation15], 0
    %s33 = scalar_lea.sflag [#allocation15], 1
    %34 = vsyncpa %s33, 0
    %35 = vsyncpa [#allocation18], 0
    %s36 = scalar_lea.sflag [#allocation18], 1
    %37 = vsyncpa %s36, 0
    %38 = vsyncpa [#allocation21], 0
    %s39 = scalar_lea.sflag [#allocation21], 1
    %40 = vsyncpa %s39, 0
    loop: start=0, step=1, limit=4
    $region2: #{tpu_custom_call.1} parent=1 // loop_pre_header
      _
    $region3: #{tpu_custom_call.1} parent=1 // loop_header
      %s42 = sphi 0, %s46
      %p43 = scmp.ge.s32.totalorder %s42, 4
      %s52 = sphi 0, %s54
      %s55 = sphi 0, %s52
      %s56 = sphi 0, %s55
      %s72 = sphi 0, %s56
      %s78 = sphi 0, %s80
      %s81 = sphi 0, %s78
      %s82 = sphi 0, %s81
      %s98 = sphi 0, %s82
      %s102 = sphi 0, %s102
      %s104 = sphi 0, %s102
      %s105 = sphi 0, %s104
      %s119 = sphi 0, %s105
      %s123 = sphi 0, %s123
      %s125 = sphi 0, %s123
      %s126 = sphi 0, %s125
      %s140 = sphi 0, %s126
      %s144 = sphi 0, %s144
      %s146 = sphi 0, %s144
      %s147 = sphi 0, %s146
      %s161 = sphi 0, %s147
      %s165 = sphi 0, %s165
      %s167 = sphi 0, %s165
      %s168 = sphi 0, %s167
      %s182 = sphi 0, %s168
      %s188 = sphi 0, %s190
      %s191 = sphi 0, %s188
      %s192 = sphi 0, %s191
      %s208 = sphi 0, %s192
      %s214 = sphi 0, %s216
      %s217 = sphi 0, %s214
      %s218 = sphi 0, %s217
      %s234 = sphi 0, %s218
      %s240 = sphi 0, %s242
      %s243 = sphi 0, %s240
      %s244 = sphi 0, %s243
      %s260 = sphi 0, %s244
      %s266 = sphi 0, %s268
      %s269 = sphi 0, %s266
      %s270 = sphi 0, %s269
      %s286 = sphi 0, %s270
      %s292 = sphi 0, %s294
      %s295 = sphi 0, %s292
      %s296 = sphi 0, %s295
      %s312 = sphi 0, %s296
      %s318 = sphi 0, %s320
      %s321 = sphi 0, %s318
      %s322 = sphi 0, %s321
      %s338 = sphi 0, %s322
      %s344 = sphi 0, %s346
      %s347 = sphi 0, %s344
      %s348 = sphi 0, %s347
      %s364 = sphi 0, %s348
      %s370 = sphi 0, %s372
      %s373 = sphi 0, %s370
      %s374 = sphi 0, %s373
      %s390 = sphi 0, %s374
    $region4: #{tpu_custom_call.1} parent=1 // loop_header_branch
      %45 = sbr.rel (%p43) target = $region8
    $region5: #{tpu_custom_call.1} parent=1 // loop_body
      %s47 = ssub.s32 %s42, 1
      %s48 = ssub.s32 %s42, 2
      %s49 = sadd.s32 %s42, 1
      %s50 = ssub.s32 %s42, %s49
      %p51 = scmp.eq.s32.totalorder %s50, 0
      %s53 = sadd.s32 %s52, 1
      %s54 = scalar_select %p51, %s52, %s53
      %p57 = pneg %p51
      %p58 = scmp.eq.s32.totalorder %s42, 1
      %p59 = por %p57, %p58
      %p60 = scmp.ne.s32.totalorder %s52, %s55
      %p61 = scmp.eq.s32.totalorder %s42, 0
      %p62 = por %p60, %p61
      %p63 = scmp.ne.s32.totalorder %s52, %s55
      %p64 = scmp.eq.s32.totalorder %s47, 1
      %p65 = por %p63, %p64
      %p66 = scmp.ne.s32.totalorder %s55, %s56
      %p67 = scmp.eq.s32.totalorder %s47, 0
      %p68 = por %p66, %p67
      %p69 = scmp.ne.s32.totalorder %s55, %s56
      %p70 = scmp.eq.s32.totalorder %s48, 1
      %p71 = por %p69, %p70
      %p73 = scmp.ne.s32.totalorder %s56, %s72
      %p74 = scmp.eq.s32.totalorder %s48, 0
      %p75 = por %p73, %p74
      %s76 = ssub.s32 %s42, %s49
      %p77 = scmp.eq.s32.totalorder %s76, 0
      %s79 = sadd.s32 %s78, 1
      %s80 = scalar_select %p77, %s78, %s79
      %p83 = pneg %p77
      %p84 = scmp.eq.s32.totalorder %s42, 1
      %p85 = por %p83, %p84
      %p86 = scmp.ne.s32.totalorder %s78, %s81
      %p87 = scmp.eq.s32.totalorder %s42, 0
      %p88 = por %p86, %p87
      %p89 = scmp.ne.s32.totalorder %s78, %s81
      %p90 = scmp.eq.s32.totalorder %s47, 1
      %p91 = por %p89, %p90
      %p92 = scmp.ne.s32.totalorder %s81, %s82
      %p93 = scmp.eq.s32.totalorder %s47, 0
      %p94 = por %p92, %p93
      %p95 = scmp.ne.s32.totalorder %s81, %s82
      %p96 = scmp.eq.s32.totalorder %s48, 1
      %p97 = por %p95, %p96
      %p99 = scmp.ne.s32.totalorder %s82, %s98
      %p100 = scmp.eq.s32.totalorder %s48, 0
      %p101 = por %p99, %p100
      %s103 = sadd.s32 %s102, 1
      %p106 = scmp.eq.s32.totalorder %s42, 1
      %p107 = scmp.ne.s32.totalorder %s102, %s104
      %p108 = scmp.eq.s32.totalorder %s42, 0
      %p109 = por %p107, %p108
      %p110 = scmp.ne.s32.totalorder %s102, %s104
      %p111 = scmp.eq.s32.totalorder %s47, 1
      %p112 = por %p110, %p111
      %p113 = scmp.ne.s32.totalorder %s104, %s105
      %p114 = scmp.eq.s32.totalorder %s47, 0
      %p115 = por %p113, %p114
      %p116 = scmp.ne.s32.totalorder %s104, %s105
      %p117 = scmp.eq.s32.totalorder %s48, 1
      %p118 = por %p116, %p117
      %p120 = scmp.ne.s32.totalorder %s105, %s119
      %p121 = scmp.eq.s32.totalorder %s48, 0
      %p122 = por %p120, %p121
      %s124 = sadd.s32 %s123, 1
      %p127 = scmp.eq.s32.totalorder %s42, 1
      %p128 = scmp.ne.s32.totalorder %s123, %s125
      %p129 = scmp.eq.s32.totalorder %s42, 0
      %p130 = por %p128, %p129
      %p131 = scmp.ne.s32.totalorder %s123, %s125
      %p132 = scmp.eq.s32.totalorder %s47, 1
      %p133 = por %p131, %p132
      %p134 = scmp.ne.s32.totalorder %s125, %s126
      %p135 = scmp.eq.s32.totalorder %s47, 0
      %p136 = por %p134, %p135
      %p137 = scmp.ne.s32.totalorder %s125, %s126
      %p138 = scmp.eq.s32.totalorder %s48, 1
      %p139 = por %p137, %p138
      %p141 = scmp.ne.s32.totalorder %s126, %s140
      %p142 = scmp.eq.s32.totalorder %s48, 0
      %p143 = por %p141, %p142
      %s145 = sadd.s32 %s144, 1
      %p148 = scmp.eq.s32.totalorder %s42, 1
      %p149 = scmp.ne.s32.totalorder %s144, %s146
      %p150 = scmp.eq.s32.totalorder %s42, 0
      %p151 = por %p149, %p150
      %p152 = scmp.ne.s32.totalorder %s144, %s146
      %p153 = scmp.eq.s32.totalorder %s47, 1
      %p154 = por %p152, %p153
      %p155 = scmp.ne.s32.totalorder %s146, %s147
      %p156 = scmp.eq.s32.totalorder %s47, 0
      %p157 = por %p155, %p156
      %p158 = scmp.ne.s32.totalorder %s146, %s147
      %p159 = scmp.eq.s32.totalorder %s48, 1
      %p160 = por %p158, %p159
      %p162 = scmp.ne.s32.totalorder %s147, %s161
      %p163 = scmp.eq.s32.totalorder %s48, 0
      %p164 = por %p162, %p163
      %s166 = sadd.s32 %s165, 1
      %p169 = scmp.eq.s32.totalorder %s42, 1
      %p170 = scmp.ne.s32.totalorder %s165, %s167
      %p171 = scmp.eq.s32.totalorder %s42, 0
      %p172 = por %p170, %p171
      %p173 = scmp.ne.s32.totalorder %s165, %s167
      %p174 = scmp.eq.s32.totalorder %s47, 1
      %p175 = por %p173, %p174
      %p176 = scmp.ne.s32.totalorder %s167, %s168
      %p177 = scmp.eq.s32.totalorder %s47, 0
      %p178 = por %p176, %p177
      %p179 = scmp.ne.s32.totalorder %s167, %s168
      %p180 = scmp.eq.s32.totalorder %s48, 1
      %p181 = por %p179, %p180
      %p183 = scmp.ne.s32.totalorder %s168, %s182
      %p184 = scmp.eq.s32.totalorder %s48, 0
      %p185 = por %p183, %p184
      %s186 = ssub.s32 %s42, %s49
      %p187 = scmp.eq.s32.totalorder %s186, 0
      %s189 = sadd.s32 %s188, 1
      %s190 = scalar_select %p187, %s188, %s189
      %p193 = pneg %p187
      %p194 = scmp.eq.s32.totalorder %s42, 1
      %p195 = por %p193, %p194
      %p196 = scmp.ne.s32.totalorder %s188, %s191
      %p197 = scmp.eq.s32.totalorder %s42, 0
      %p198 = por %p196, %p197
      %p199 = scmp.ne.s32.totalorder %s188, %s191
      %p200 = scmp.eq.s32.totalorder %s47, 1
      %p201 = por %p199, %p200
      %p202 = scmp.ne.s32.totalorder %s191, %s192
      %p203 = scmp.eq.s32.totalorder %s47, 0
      %p204 = por %p202, %p203
      %p205 = scmp.ne.s32.totalorder %s191, %s192
      %p206 = scmp.eq.s32.totalorder %s48, 1
      %p207 = por %p205, %p206
      %p209 = scmp.ne.s32.totalorder %s192, %s208
      %p210 = scmp.eq.s32.totalorder %s48, 0
      %p211 = por %p209, %p210
      %s212 = ssub.s32 %s42, %s49
      %p213 = scmp.eq.s32.totalorder %s212, 0
      %s215 = sadd.s32 %s214, 1
      %s216 = scalar_select %p213, %s214, %s215
      %p219 = pneg %p213
      %p220 = scmp.eq.s32.totalorder %s42, 1
      %p221 = por %p219, %p220
      %p222 = scmp.ne.s32.totalorder %s214, %s217
      %p223 = scmp.eq.s32.totalorder %s42, 0
      %p224 = por %p222, %p223
      %p225 = scmp.ne.s32.totalorder %s214, %s217
      %p226 = scmp.eq.s32.totalorder %s47, 1
      %p227 = por %p225, %p226
      %p228 = scmp.ne.s32.totalorder %s217, %s218
      %p229 = scmp.eq.s32.totalorder %s47, 0
      %p230 = por %p228, %p229
      %p231 = scmp.ne.s32.totalorder %s217, %s218
      %p232 = scmp.eq.s32.totalorder %s48, 1
      %p233 = por %p231, %p232
      %p235 = scmp.ne.s32.totalorder %s218, %s234
      %p236 = scmp.eq.s32.totalorder %s48, 0
      %p237 = por %p235, %p236
      %s238 = ssub.s32 %s42, %s49
      %p239 = scmp.eq.s32.totalorder %s238, 0
      %s241 = sadd.s32 %s240, 1
      %s242 = scalar_select %p239, %s240, %s241
      %p245 = pneg %p239
      %p246 = scmp.eq.s32.totalorder %s42, 1
      %p247 = por %p245, %p246
      %p248 = scmp.ne.s32.totalorder %s240, %s243
      %p249 = scmp.eq.s32.totalorder %s42, 0
      %p250 = por %p248, %p249
      %p251 = scmp.ne.s32.totalorder %s240, %s243
      %p252 = scmp.eq.s32.totalorder %s47, 1
      %p253 = por %p251, %p252
      %p254 = scmp.ne.s32.totalorder %s243, %s244
      %p255 = scmp.eq.s32.totalorder %s47, 0
      %p256 = por %p254, %p255
      %p257 = scmp.ne.s32.totalorder %s243, %s244
      %p258 = scmp.eq.s32.totalorder %s48, 1
      %p259 = por %p257, %p258
      %p261 = scmp.ne.s32.totalorder %s244, %s260
      %p262 = scmp.eq.s32.totalorder %s48, 0
      %p263 = por %p261, %p262
      %s264 = ssub.s32 %s42, %s49
      %p265 = scmp.eq.s32.totalorder %s264, 0
      %s267 = sadd.s32 %s266, 1
      %s268 = scalar_select %p265, %s266, %s267
      %p271 = pneg %p265
      %p272 = scmp.eq.s32.totalorder %s42, 1
      %p273 = por %p271, %p272
      %p274 = scmp.ne.s32.totalorder %s266, %s269
      %p275 = scmp.eq.s32.totalorder %s42, 0
      %p276 = por %p274, %p275
      %p277 = scmp.ne.s32.totalorder %s266, %s269
      %p278 = scmp.eq.s32.totalorder %s47, 1
      %p279 = por %p277, %p278
      %p280 = scmp.ne.s32.totalorder %s269, %s270
      %p281 = scmp.eq.s32.totalorder %s47, 0
      %p282 = por %p280, %p281
      %p283 = scmp.ne.s32.totalorder %s269, %s270
      %p284 = scmp.eq.s32.totalorder %s48, 1
      %p285 = por %p283, %p284
      %p287 = scmp.ne.s32.totalorder %s270, %s286
      %p288 = scmp.eq.s32.totalorder %s48, 0
      %p289 = por %p287, %p288
      %s290 = ssub.s32 %s42, %s49
      %p291 = scmp.eq.s32.totalorder %s290, 0
      %s293 = sadd.s32 %s292, 1
      %s294 = scalar_select %p291, %s292, %s293
      %p297 = pneg %p291
      %p298 = scmp.eq.s32.totalorder %s42, 1
      %p299 = por %p297, %p298
      %p300 = scmp.ne.s32.totalorder %s292, %s295
      %p301 = scmp.eq.s32.totalorder %s42, 0
      %p302 = por %p300, %p301
      %p303 = scmp.ne.s32.totalorder %s292, %s295
      %p304 = scmp.eq.s32.totalorder %s47, 1
      %p305 = por %p303, %p304
      %p306 = scmp.ne.s32.totalorder %s295, %s296
      %p307 = scmp.eq.s32.totalorder %s47, 0
      %p308 = por %p306, %p307
      %p309 = scmp.ne.s32.totalorder %s295, %s296
      %p310 = scmp.eq.s32.totalorder %s48, 1
      %p311 = por %p309, %p310
      %p313 = scmp.ne.s32.totalorder %s296, %s312
      %p314 = scmp.eq.s32.totalorder %s48, 0
      %p315 = por %p313, %p314
      %s316 = ssub.s32 %s42, %s49
      %p317 = scmp.eq.s32.totalorder %s316, 0
      %s319 = sadd.s32 %s318, 1
      %s320 = scalar_select %p317, %s318, %s319
      %p323 = pneg %p317
      %p324 = scmp.eq.s32.totalorder %s42, 1
      %p325 = por %p323, %p324
      %p326 = scmp.ne.s32.totalorder %s318, %s321
      %p327 = scmp.eq.s32.totalorder %s42, 0
      %p328 = por %p326, %p327
      %p329 = scmp.ne.s32.totalorder %s318, %s321
      %p330 = scmp.eq.s32.totalorder %s47, 1
      %p331 = por %p329, %p330
      %p332 = scmp.ne.s32.totalorder %s321, %s322
      %p333 = scmp.eq.s32.totalorder %s47, 0
      %p334 = por %p332, %p333
      %p335 = scmp.ne.s32.totalorder %s321, %s322
      %p336 = scmp.eq.s32.totalorder %s48, 1
      %p337 = por %p335, %p336
      %p339 = scmp.ne.s32.totalorder %s322, %s338
      %p340 = scmp.eq.s32.totalorder %s48, 0
      %p341 = por %p339, %p340
      %s342 = ssub.s32 %s42, %s49
      %p343 = scmp.eq.s32.totalorder %s342, 0
      %s345 = sadd.s32 %s344, 1
      %s346 = scalar_select %p343, %s344, %s345
      %p349 = pneg %p343
      %p350 = scmp.eq.s32.totalorder %s42, 1
      %p351 = por %p349, %p350
      %p352 = scmp.ne.s32.totalorder %s344, %s347
      %p353 = scmp.eq.s32.totalorder %s42, 0
      %p354 = por %p352, %p353
      %p355 = scmp.ne.s32.totalorder %s344, %s347
      %p356 = scmp.eq.s32.totalorder %s47, 1
      %p357 = por %p355, %p356
      %p358 = scmp.ne.s32.totalorder %s347, %s348
      %p359 = scmp.eq.s32.totalorder %s47, 0
      %p360 = por %p358, %p359
      %p361 = scmp.ne.s32.totalorder %s347, %s348
      %p362 = scmp.eq.s32.totalorder %s48, 1
      %p363 = por %p361, %p362
      %p365 = scmp.ne.s32.totalorder %s348, %s364
      %p366 = scmp.eq.s32.totalorder %s48, 0
      %p367 = por %p365, %p366
      %s368 = ssub.s32 %s42, %s49
      %p369 = scmp.eq.s32.totalorder %s368, 0
      %s371 = sadd.s32 %s370, 1
      %s372 = scalar_select %p369, %s370, %s371
      %p375 = pneg %p369
      %p376 = scmp.eq.s32.totalorder %s42, 1
      %p377 = por %p375, %p376
      %p378 = scmp.ne.s32.totalorder %s370, %s373
      %p379 = scmp.eq.s32.totalorder %s42, 0
      %p380 = por %p378, %p379
      %p381 = scmp.ne.s32.totalorder %s370, %s373
      %p382 = scmp.eq.s32.totalorder %s47, 1
      %p383 = por %p381, %p382
      %p384 = scmp.ne.s32.totalorder %s373, %s374
      %p385 = scmp.eq.s32.totalorder %s47, 0
      %p386 = por %p384, %p385
      %p387 = scmp.ne.s32.totalorder %s373, %s374
      %p388 = scmp.eq.s32.totalorder %s48, 1
      %p389 = por %p387, %p388
      %p391 = scmp.ne.s32.totalorder %s374, %s390
      %p392 = scmp.eq.s32.totalorder %s48, 0
      %p393 = por %p391, %p392
      %p394 = scmp.le.s32.totalorder 1, %s42
      %p395 = scmp.lt.s32.totalorder %s42, 3
      %p396 = pnand %p394, %p395
      %p397 = pneg %p396
      // Predicated region
      $region9: #{tpu_custom_call.1} parent=5 // pred_check
        _
      $region10: #{tpu_custom_call.1} parent=5 // pred_check_branch
        %399 = sbr.rel (%p396) target = $region12
      $region11: #{tpu_custom_call.1} parent=5 // pred_region
        %s400 = ssub.s32 %s42, 1
        // Predicated region
        $region13: #{tpu_custom_call.1} parent=11 // pred_check
          %p401 = pneg %p115
        $region14: #{tpu_custom_call.1} parent=11 // pred_check_branch
          %403 = sbr.rel (%p401) target = $region16
        $region15: #{tpu_custom_call.1} parent=11 // pred_region
          %s405 = ssub.s32 2048, 2048
          %406 = vsyncadd [#allocation6], %s405
          %s407 = sshll.u32 [#allocation7], 4
          %s408 = int_to_ptr.vmem [resolvable:$true] %s407
          %413 = dma.hbm_to_vmem [thread:$0]  %s2, 2048, %s408, [#allocation6], 512, 512, 32
        $region16: #{tpu_custom_call.1} parent=11 // pred_fallthru
          _
        // Predicated region
        $region17: #{tpu_custom_call.1} parent=11 // pred_check
          %p414 = pneg %p136
        $region18: #{tpu_custom_call.1} parent=11 // pred_check_branch
          %416 = sbr.rel (%p414) target = $region20
        $region19: #{tpu_custom_call.1} parent=11 // pred_region
          _
        $region20: #{tpu_custom_call.1} parent=11 // pred_fallthru
          _
        // Predicated region
        $region21: #{tpu_custom_call.1} parent=11 // pred_check
          %p417 = pneg %p157
        $region22: #{tpu_custom_call.1} parent=11 // pred_check_branch
          %419 = sbr.rel (%p417) target = $region24
        $region23: #{tpu_custom_call.1} parent=11 // pred_region
          %s421 = ssub.s32 3072, 3072
          %422 = vsyncadd [#allocation9], %s421
          %s423 = sshll.u32 [#allocation8], 4
          %s424 = int_to_ptr.vmem [resolvable:$true] %s423
          %429 = dma.hbm_to_vmem [thread:$0]  %s4, 3072, %s424, [#allocation9], 64, 64, 4
        $region24: #{tpu_custom_call.1} parent=11 // pred_fallthru
          _
        // Predicated region
        $region25: #{tpu_custom_call.1} parent=11 // pred_check
          %p430 = pneg %p178
        $region26: #{tpu_custom_call.1} parent=11 // pred_check_branch
          %432 = sbr.rel (%p430) target = $region28
        $region27: #{tpu_custom_call.1} parent=11 // pred_region
          _
        $region28: #{tpu_custom_call.1} parent=11 // pred_fallthru
          _
      $region12: #{tpu_custom_call.1} parent=5 // pred_fallthru
        _
      %p433 = scmp.lt.s32.totalorder %s42, 2
      // Predicated region
      $region29: #{tpu_custom_call.1} parent=5 // pred_check
        %p434 = pneg %p433
      $region30: #{tpu_custom_call.1} parent=5 // pred_check_branch
        %436 = sbr.rel (%p434) target = $region32
      $region31: #{tpu_custom_call.1} parent=5 // pred_region
        // Predicated region
        $region33: #{tpu_custom_call.1} parent=31 // pred_check
          %p437 = pneg %p62
        $region34: #{tpu_custom_call.1} parent=31 // pred_check_branch
          %439 = sbr.rel (%p437) target = $region36
        $region35: #{tpu_custom_call.1} parent=31 // pred_region
          %s440 = sand.u32 %s52, 1
          %s441 = scalar_lea.sflag [#allocation3], %s440
          %s442 = sand.u32 %s52, 1
          %s443 = smul.addr %s442, 4
          %s444 = scalar_lea.vmem [#allocation2], %s443
          %s446 = ssub.s32 64, 64
          %447 = vsyncadd %s441, %s446
          %s448 = smul.addr %s42, 64
          %s449 = scalar_lea.hbm %s0, %s448
          %s451 = sshll.u32 %s444, 4
          %s452 = int_to_ptr.vmem [resolvable:$true] %s451
          %454 = dma.hbm_to_vmem [thread:$0]  %s449, 64, %s452, %s441
        $region36: #{tpu_custom_call.1} parent=31 // pred_fallthru
          _
        // Predicated region
        $region37: #{tpu_custom_call.1} parent=31 // pred_check
          %p455 = pneg %p88
        $region38: #{tpu_custom_call.1} parent=31 // pred_check_branch
          %457 = sbr.rel (%p455) target = $region40
        $region39: #{tpu_custom_call.1} parent=31 // pred_region
          %s458 = sand.u32 %s42, 1
          %s459 = scalar_lea.sflag [#allocation6], %s458
          %s460 = sand.u32 %s78, 1
          %s461 = smul.addr %s460, 12
          %s462 = scalar_lea.vmem [#allocation5], %s461
          %s464 = ssub.s32 192, 192
          %465 = vsyncadd %s459, %s464
          %s466 = smul.addr %s42, 3
          %s467 = smul.addr %s466, 64
          %s468 = scalar_lea.hbm %s1, %s467
          %s470 = sshll.u32 %s462, 4
          %s471 = int_to_ptr.vmem [resolvable:$true] %s470
          %473 = dma.hbm_to_vmem [thread:$0]  %s468, 192, %s471, %s459
        $region40: #{tpu_custom_call.1} parent=31 // pred_fallthru
          _
      $region32: #{tpu_custom_call.1} parent=5 // pred_fallthru
        _
      %p474 = scmp.le.s32.totalorder 1, %s42
      %p475 = scmp.lt.s32.totalorder %s42, 3
      %p476 = pnand %p474, %p475
      %p477 = pneg %p476
      // Predicated region
      $region41: #{tpu_custom_call.1} parent=5 // pred_check
        _
      $region42: #{tpu_custom_call.1} parent=5 // pred_check_branch
        %479 = sbr.rel (%p476) target = $region44
      $region43: #{tpu_custom_call.1} parent=5 // pred_region
        %s480 = ssub.s32 %s42, 1
        %s481 = sand.u32 %s55, 1
        %s482 = scalar_lea.sflag [#allocation3], %s481
        %s483 = sand.u32 %s55, 1
        %s484 = smul.addr %s483, 4
        %s485 = scalar_lea.vmem [#allocation2], %s484
        // Predicated region
        $region45: #{tpu_custom_call.1} parent=43 // pred_check
          %p486 = pneg %p68
        $region46: #{tpu_custom_call.1} parent=43 // pred_check_branch
          %488 = sbr.rel (%p486) target = $region48
        $region47: #{tpu_custom_call.1} parent=43 // pred_region
          %489 = dma.done %s482, 64
        $region48: #{tpu_custom_call.1} parent=43 // pred_fallthru
          _
        %s490 = sand.u32 %s47, 1
        %s491 = scalar_lea.sflag [#allocation6], %s490
        %s492 = sand.u32 %s81, 1
        %s493 = smul.addr %s492, 12
        %s494 = scalar_lea.vmem [#allocation5], %s493
        // Predicated region
        $region49: #{tpu_custom_call.1} parent=43 // pred_check
          %p495 = pneg %p94
        $region50: #{tpu_custom_call.1} parent=43 // pred_check_branch
          %497 = sbr.rel (%p495) target = $region52
        $region51: #{tpu_custom_call.1} parent=43 // pred_region
          %498 = dma.done %s491, 192
        $region52: #{tpu_custom_call.1} parent=43 // pred_fallthru
          _
        // Predicated region
        $region53: #{tpu_custom_call.1} parent=43 // pred_check
          %p499 = pneg %p115
        $region54: #{tpu_custom_call.1} parent=43 // pred_check_branch
          %501 = sbr.rel (%p499) target = $region56
        $region55: #{tpu_custom_call.1} parent=43 // pred_region
          %502 = dma.done [#allocation6], 2048
        $region56: #{tpu_custom_call.1} parent=43 // pred_fallthru
          _
        // Predicated region
        $region57: #{tpu_custom_call.1} parent=43 // pred_check
          %p503 = pneg %p157
        $region58: #{tpu_custom_call.1} parent=43 // pred_check_branch
          %505 = sbr.rel (%p503) target = $region60
        $region59: #{tpu_custom_call.1} parent=43 // pred_region
          %506 = dma.done [#allocation9], 3072
        $region60: #{tpu_custom_call.1} parent=43 // pred_fallthru
          _
        %s507 = sand.u32 %s55, 1
        %s508 = scalar_lea.sflag [#allocation3], %s507
        %s509 = sand.u32 %s55, 1
        %s510 = smul.addr %s509, 4
        %s511 = scalar_lea.vmem [#allocation2], %s510
        %p512 = pneg %p68
        %p513 = pneg %p65
        %s514 = sand.u32 %s47, 1
        %s515 = scalar_lea.sflag [#allocation6], %s514
        %s516 = sand.u32 %s81, 1
        %s517 = smul.addr %s516, 12
        %s518 = scalar_lea.vmem [#allocation5], %s517
        %p519 = pneg %p94
        %p520 = pneg %p91
        %p521 = pneg %p115
        %p522 = pneg %p112
        %p523 = pneg %p136
        %p524 = pneg %p133
        %p525 = pneg %p157
        %p526 = pneg %p154
        %p527 = pneg %p178
        %p528 = pneg %p175
        %p529 = pneg %p204
        %p530 = pneg %p201
        %s531 = sand.u32 %s191, 1
        %s532 = scalar_lea.sflag [#allocation4], %s531
        %s533 = sand.u32 %s191, 1
        %s534 = smul.addr %s533, 8
        %s535 = scalar_lea.vmem [#allocation10], %s534
        %p536 = pneg %p230
        %p537 = pneg %p227
        %s538 = sand.u32 %s47, 1
        %s539 = scalar_lea.sflag [#allocation12], %s538
        %s540 = sand.u32 %s217, 1
        %s541 = smul.addr %s540, 8
        %s542 = scalar_lea.vmem [#allocation11], %s541
        %p543 = pneg %p256
        %p544 = pneg %p253
        %s545 = sand.u32 %s47, 1
        %s546 = scalar_lea.sflag [#allocation12], %s545
        %s547 = sand.u32 %s243, 1
        %s548 = smul.addr %s547, 8
        %s549 = scalar_lea.vmem [#allocation13], %s548
        %p550 = pneg %p282
        %p551 = pneg %p279
        %s552 = sand.u32 %s47, 1
        %s553 = scalar_lea.sflag [#allocation15], %s552
        %s554 = sand.u32 %s269, 1
        %s555 = smul.addr %s554, 8
        %s556 = scalar_lea.vmem [#allocation14], %s555
        %p557 = pneg %p308
        %p558 = pneg %p305
        %s559 = sand.u32 %s47, 1
        %s560 = scalar_lea.sflag [#allocation15], %s559
        %s561 = sand.u32 %s295, 1
        %s562 = smul.addr %s561, 8
        %s563 = scalar_lea.vmem [#allocation16], %s562
        %p564 = pneg %p334
        %p565 = pneg %p331
        %s566 = sand.u32 %s47, 1
        %s567 = scalar_lea.sflag [#allocation18], %s566
        %s568 = sand.u32 %s321, 1
        %s569 = smul.addr %s568, 8
        %s570 = scalar_lea.vmem [#allocation17], %s569
        %p571 = pneg %p360
        %p572 = pneg %p357
        %s573 = sand.u32 %s47, 1
        %s574 = scalar_lea.sflag [#allocation18], %s573
        %s575 = sand.u32 %s347, 1
        %s576 = smul.addr %s575, 8
        %s577 = scalar_lea.vmem [#allocation19], %s576
        %p578 = pneg %p386
        %p579 = pneg %p383
        %s580 = sand.u32 %s373, 1
        %s581 = scalar_lea.sflag [#allocation21], %s580
        %s582 = sand.u32 %s373, 1
        %s583 = smul.addr %s582, 8
        %s584 = scalar_lea.vmem [#allocation20], %s583
        %v586 = vld [vmem:[%s485] sm:$0xf]
        %v587 = vld [vmem:[#allocation7] sm:$0xff]
        %v588 = vld [vmem:[#allocation7 + $0x8] sm:$0xff]
        %v589 = vld [vmem:[#allocation7 + $0x10] sm:$0xff]
        %v590 = vld [vmem:[#allocation7 + $0x18] sm:$0xff]
        %v591 = vld [vmem:[#allocation7 + $0x20] sm:$0xff]
        %v592 = vld [vmem:[#allocation7 + $0x28] sm:$0xff]
        %v593 = vld [vmem:[#allocation7 + $0x30] sm:$0xff]
        %v594 = vld [vmem:[#allocation7 + $0x38] sm:$0xff]
        %v595 = vld [vmem:[#allocation7 + $0x40] sm:$0xff]
        %v596 = vld [vmem:[#allocation7 + $0x48] sm:$0xff]
        %v597 = vld [vmem:[#allocation7 + $0x50] sm:$0xff]
        %v598 = vld [vmem:[#allocation7 + $0x58] sm:$0xff]
        %v599 = vld [vmem:[#allocation7 + $0x60] sm:$0xff]
        %v600 = vld [vmem:[#allocation7 + $0x68] sm:$0xff]
        %v601 = vld [vmem:[#allocation7 + $0x70] sm:$0xff]
        %v602 = vld [vmem:[#allocation7 + $0x78] sm:$0xff]
        %v603 = vld [vmem:[%s3] sm:$0xff]
        %v605 = vlaneseq
        %v606 = vshrl.u32 %v605, 7
        %v607 = vsub.s32 0, %v606
        %v608 = vrot.slane %v603, %v607
        %v609 = vlaneseq
        %v610 = vshrl.u32 %v609, 7
        %v611 = vsub.s32 1, %v610
        %v612 = vrot.slane %v603, %v611
        %v613 = vlaneseq
        %v614 = vshrl.u32 %v613, 7
        %v615 = vsub.s32 2, %v614
        %v616 = vrot.slane %v603, %v615
        %v617 = vlaneseq
        %v618 = vshrl.u32 %v617, 7
        %v619 = vsub.s32 3, %v618
        %v620 = vrot.slane %v603, %v619
        %v621 = vlaneseq
        %v622 = vshrl.u32 %v621, 7
        %v623 = vsub.s32 4, %v622
        %v624 = vrot.slane %v603, %v623
        %v625 = vlaneseq
        %v626 = vshrl.u32 %v625, 7
        %v627 = vsub.s32 5, %v626
        %v628 = vrot.slane %v603, %v627
        %v629 = vlaneseq
        %v630 = vshrl.u32 %v629, 7
        %v631 = vsub.s32 6, %v630
        %v632 = vrot.slane %v603, %v631
        %v633 = vlaneseq
        %v634 = vshrl.u32 %v633, 7
        %v635 = vsub.s32 7, %v634
        %v636 = vrot.slane %v603, %v635
        %v661 = vunpack.c.l.b16 %v587
        %v662 = vunpack.c.h.b16 %v587
        %v663 = vunpack.c.l.b16 %v588
        %v664 = vunpack.c.h.b16 %v588
        %v665 = vunpack.c.l.b16 %v589
        %v666 = vunpack.c.h.b16 %v589
        %v667 = vunpack.c.l.b16 %v590
        %v668 = vunpack.c.h.b16 %v590
        %v669 = vunpack.c.l.b16 %v591
        %v670 = vunpack.c.h.b16 %v591
        %v671 = vunpack.c.l.b16 %v592
        %v672 = vunpack.c.h.b16 %v592
        %v673 = vunpack.c.l.b16 %v593
        %v674 = vunpack.c.h.b16 %v593
        %v675 = vunpack.c.l.b16 %v594
        %v676 = vunpack.c.h.b16 %v594
        %v677 = vunpack.c.l.b16 %v595
        %v678 = vunpack.c.h.b16 %v595
        %v679 = vunpack.c.l.b16 %v596
        %v680 = vunpack.c.h.b16 %v596
        %v681 = vunpack.c.l.b16 %v597
        %v682 = vunpack.c.h.b16 %v597
        %v683 = vunpack.c.l.b16 %v598
        %v684 = vunpack.c.h.b16 %v598
        %v685 = vunpack.c.l.b16 %v599
        %v686 = vunpack.c.h.b16 %v599
        %v687 = vunpack.c.l.b16 %v600
        %v688 = vunpack.c.h.b16 %v600
        %v689 = vunpack.c.l.b16 %v601
        %v690 = vunpack.c.h.b16 %v601
        %v691 = vunpack.c.l.b16 %v602
        %v692 = vunpack.c.h.b16 %v602
        %v693 = vpack.c.b16 %v669, %v661
        %v694 = vpack.c.b16 %v670, %v662
        %v695 = vpack.c.b16 %v671, %v663
        %v696 = vpack.c.b16 %v672, %v664
        %v697 = vpack.c.b16 %v673, %v665
        %v698 = vpack.c.b16 %v674, %v666
        %v699 = vpack.c.b16 %v675, %v667
        %v700 = vpack.c.b16 %v676, %v668
        %v701 = vpack.c.b16 %v685, %v677
        %v702 = vpack.c.b16 %v686, %v678
        %v703 = vpack.c.b16 %v687, %v679
        %v704 = vpack.c.b16 %v688, %v680
        %v705 = vpack.c.b16 %v689, %v681
        %v706 = vpack.c.b16 %v690, %v682
        %v707 = vpack.c.b16 %v691, %v683
        %v708 = vpack.c.b16 %v692, %v684
        %vm725 = vcmask 261120
        %v727 = vsel %vm725, %v586, 0
        %729 = vmatprep.subr.bf16.mxu0 %v694
        %730 = vmatpush1.bf16.msra.mxu0 %v693
        %731 = vmatprep.subr.bf16.mxu0 %v702
        %732 = vmatpush1.bf16.msra.mxu0 %v701
        %733 = vmatprep.subr.bf16.mxu0 0
        %734 = vmatpush1.bf16.msra.mxu0 0
        %735 = vmatprep.subr.bf16.mxu0 0
        %736 = vmatpush1.bf16.msra.mxu0 0
        %737 = vmatprep.subr.bf16.mxu0 0
        %738 = vmatpush1.bf16.msra.mxu0 0
        %739 = vmatprep.subr.bf16.mxu0 0
        %740 = vmatpush1.bf16.msra.mxu0 0
        %741 = vmatprep.subr.bf16.mxu0 0
        %742 = vmatpush1.bf16.msra.mxu0 0
        %743 = vmatprep.subr.bf16.mxu0 0
        %744 = vmatpush1.bf16.msra.mxu0 0
        %745 = vmatprep.subr.bf16.mxu0 0
        %746 = vmatpush1.bf16.msra.mxu0 0
        %747 = vmatprep.subr.bf16.mxu0 0
        %748 = vmatpush1.bf16.msra.mxu0 0
        %749 = vmatprep.subr.bf16.mxu0 0
        %750 = vmatpush1.bf16.msra.mxu0 0
        %751 = vmatprep.subr.bf16.mxu0 0
        %752 = vmatpush1.bf16.msra.mxu0 0
        %753 = vmatprep.subr.bf16.mxu0 0
        %754 = vmatpush1.bf16.msra.mxu0 0
        %755 = vmatprep.subr.bf16.mxu0 0
        %756 = vmatpush1.bf16.msra.mxu0 0
        %757 = vmatprep.subr.bf16.mxu0 0
        %758 = vmatpush1.bf16.msra.mxu0 0
        %759 = vmatprep.subr.bf16.mxu0 0
        %760 = vmatpush1.bf16.msra.mxu0 0
        %761 = vmatprep.mubr.bf16.mxu0 0
        %762 = vmatmul.mubr.bf16.gmra.mrb[0].mxu0 %v727
        %v763 = vpop.f32.mrb[0].mxu0
        %v764 = vadd.f32 %v608, %v763
        %v765 = vpop.f32.mrb[0].mxu0
        %v766 = vadd.f32 %v612, %v765
        %v767 = vpop.f32.mrb[0].mxu0
        %v768 = vpop.f32.mrb[0].mxu0
        %769 = vdwg.mxu0
        %770 = vmatprep.subr.bf16.mxu0 %v696
        %771 = vmatpush1.bf16.msra.mxu0 %v695
        %772 = vmatprep.subr.bf16.mxu0 %v704
        %773 = vmatpush1.bf16.msra.mxu0 %v703
        %774 = vmatprep.subr.bf16.mxu0 0
        %775 = vmatpush1.bf16.msra.mxu0 0
        %776 = vmatprep.subr.bf16.mxu0 0
        %777 = vmatpush1.bf16.msra.mxu0 0
        %778 = vmatprep.subr.bf16.mxu0 0
        %779 = vmatpush1.bf16.msra.mxu0 0
        %780 = vmatprep.subr.bf16.mxu0 0
        %781 = vmatpush1.bf16.msra.mxu0 0
        %782 = vmatprep.subr.bf16.mxu0 0
        %783 = vmatpush1.bf16.msra.mxu0 0
        %784 = vmatprep.subr.bf16.mxu0 0
        %785 = vmatpush1.bf16.msra.mxu0 0
        %786 = vmatprep.subr.bf16.mxu0 0
        %787 = vmatpush1.bf16.msra.mxu0 0
        %788 = vmatprep.subr.bf16.mxu0 0
        %789 = vmatpush1.bf16.msra.mxu0 0
        %790 = vmatprep.subr.bf16.mxu0 0
        %791 = vmatpush1.bf16.msra.mxu0 0
        %792 = vmatprep.subr.bf16.mxu0 0
        %793 = vmatpush1.bf16.msra.mxu0 0
        %794 = vmatprep.subr.bf16.mxu0 0
        %795 = vmatpush1.bf16.msra.mxu0 0
        %796 = vmatprep.subr.bf16.mxu0 0
        %797 = vmatpush1.bf16.msra.mxu0 0
        %798 = vmatprep.subr.bf16.mxu0 0
        %799 = vmatpush1.bf16.msra.mxu0 0
        %800 = vmatprep.subr.bf16.mxu0 0
        %801 = vmatpush1.bf16.msra.mxu0 0
        %802 = vmatprep.mubr.bf16.mxu0 0
        %803 = vmatmul.mubr.bf16.gmra.mrb[0].mxu0 %v727
        %v804 = vpop.f32.mrb[0].mxu0
        %v805 = vadd.f32 %v616, %v804
        %v806 = vpop.f32.mrb[0].mxu0
        %v807 = vadd.f32 %v620, %v806
        %v808 = vpop.f32.mrb[0].mxu0
        %v809 = vpop.f32.mrb[0].mxu0
        %810 = vdwg.mxu0
        %811 = vmatprep.subr.bf16.mxu0 %v698
        %812 = vmatpush1.bf16.msra.mxu0 %v697
        %813 = vmatprep.subr.bf16.mxu0 %v706
        %814 = vmatpush1.bf16.msra.mxu0 %v705
        %815 = vmatprep.subr.bf16.mxu0 0
        %816 = vmatpush1.bf16.msra.mxu0 0
        %817 = vmatprep.subr.bf16.mxu0 0
        %818 = vmatpush1.bf16.msra.mxu0 0
        %819 = vmatprep.subr.bf16.mxu0 0
        %820 = vmatpush1.bf16.msra.mxu0 0
        %821 = vmatprep.subr.bf16.mxu0 0
        %822 = vmatpush1.bf16.msra.mxu0 0
        %823 = vmatprep.subr.bf16.mxu0 0
        %824 = vmatpush1.bf16.msra.mxu0 0
        %825 = vmatprep.subr.bf16.mxu0 0
        %826 = vmatpush1.bf16.msra.mxu0 0
        %827 = vmatprep.subr.bf16.mxu0 0
        %828 = vmatpush1.bf16.msra.mxu0 0
        %829 = vmatprep.subr.bf16.mxu0 0
        %830 = vmatpush1.bf16.msra.mxu0 0
        %831 = vmatprep.subr.bf16.mxu0 0
        %832 = vmatpush1.bf16.msra.mxu0 0
        %833 = vmatprep.subr.bf16.mxu0 0
        %834 = vmatpush1.bf16.msra.mxu0 0
        %835 = vmatprep.subr.bf16.mxu0 0
        %836 = vmatpush1.bf16.msra.mxu0 0
        %837 = vmatprep.subr.bf16.mxu0 0
        %838 = vmatpush1.bf16.msra.mxu0 0
        %839 = vmatprep.subr.bf16.mxu0 0
        %840 = vmatpush1.bf16.msra.mxu0 0
        %841 = vmatprep.subr.bf16.mxu0 0
        %842 = vmatpush1.bf16.msra.mxu0 0
        %843 = vmatprep.mubr.bf16.mxu0 0
        %844 = vmatmul.mubr.bf16.gmra.mrb[0].mxu0 %v727
        %v845 = vpop.f32.mrb[0].mxu0
        %v846 = vadd.f32 %v624, %v845
        %v847 = vpop.f32.mrb[0].mxu0
        %v848 = vadd.f32 %v628, %v847
        %v849 = vpop.f32.mrb[0].mxu0
        %v850 = vpop.f32.mrb[0].mxu0
        %851 = vdwg.mxu0
        %852 = vmatprep.subr.bf16.mxu0 %v700
        %853 = vmatpush1.bf16.msra.mxu0 %v699
        %854 = vmatprep.subr.bf16.mxu0 %v708
        %855 = vmatpush1.bf16.msra.mxu0 %v707
        %856 = vmatprep.subr.bf16.mxu0 0
        %857 = vmatpush1.bf16.msra.mxu0 0
        %858 = vmatprep.subr.bf16.mxu0 0
        %859 = vmatpush1.bf16.msra.mxu0 0
        %860 = vmatprep.subr.bf16.mxu0 0
        %861 = vmatpush1.bf16.msra.mxu0 0
        %862 = vmatprep.subr.bf16.mxu0 0
        %863 = vmatpush1.bf16.msra.mxu0 0
        %864 = vmatprep.subr.bf16.mxu0 0
        %865 = vmatpush1.bf16.msra.mxu0 0
        %866 = vmatprep.subr.bf16.mxu0 0
        %867 = vmatpush1.bf16.msra.mxu0 0
        %868 = vmatprep.subr.bf16.mxu0 0
        %869 = vmatpush1.bf16.msra.mxu0 0
        %870 = vmatprep.subr.bf16.mxu0 0
        %871 = vmatpush1.bf16.msra.mxu0 0
        %872 = vmatprep.subr.bf16.mxu0 0
        %873 = vmatpush1.bf16.msra.mxu0 0
        %874 = vmatprep.subr.bf16.mxu0 0
        %875 = vmatpush1.bf16.msra.mxu0 0
        %876 = vmatprep.subr.bf16.mxu0 0
        %877 = vmatpush1.bf16.msra.mxu0 0
        %878 = vmatprep.subr.bf16.mxu0 0
        %879 = vmatpush1.bf16.msra.mxu0 0
        %880 = vmatprep.subr.bf16.mxu0 0
        %881 = vmatpush1.bf16.msra.mxu0 0
        %882 = vmatprep.subr.bf16.mxu0 0
        %883 = vmatpush1.bf16.msra.mxu0 0
        %884 = vmatprep.mubr.bf16.mxu0 0
        %885 = vmatmul.mubr.bf16.gmra.mrb[0].mxu0 %v727
        %v886 = vpop.f32.mrb[0].mxu0
        %v887 = vadd.f32 %v632, %v886
        %v888 = vpop.f32.mrb[0].mxu0
        %v889 = vadd.f32 %v636, %v888
        %v890 = vpop.f32.mrb[0].mxu0
        %v891 = vpop.f32.mrb[0].mxu0
        %892 = vdwg.mxu0
        %v893 = vld [vmem:[%s494] sm:$0xff]
        %v894 = vld [vmem:[%s494 + $0x8] sm:$0xf]
        %v895 = vld [vmem:[#allocation8] sm:$0xf]
        %v896 = vld [vmem:[#allocation8 + $0x4] sm:$0xf]
        %v897 = vld [vmem:[#allocation8 + $0x8] sm:$0xf]
        %v898 = vld [vmem:[#allocation8 + $0xc] sm:$0xf]
        %v899 = vld [vmem:[#allocation8 + $0x10] sm:$0xf]
        %v900 = vld [vmem:[#allocation8 + $0x14] sm:$0xf]
        %v901 = vld [vmem:[#allocation8 + $0x18] sm:$0xf]
        %v902 = vld [vmem:[#allocation8 + $0x1c] sm:$0xf]
        %v903 = vld [vmem:[#allocation8 + $0x20] sm:$0xf]
        %v904 = vld [vmem:[#allocation8 + $0x24] sm:$0xf]
        %v905 = vld [vmem:[#allocation8 + $0x28] sm:$0xf]
        %v906 = vld [vmem:[#allocation8 + $0x2c] sm:$0xf]
        %v907 = vld [vmem:[#allocation8 + $0x30] sm:$0xf]
        %v908 = vld [vmem:[#allocation8 + $0x34] sm:$0xf]
        %v909 = vld [vmem:[#allocation8 + $0x38] sm:$0xf]
        %v910 = vld [vmem:[#allocation8 + $0x3c] sm:$0xf]
        %v911 = vld [vmem:[#allocation8 + $0x40] sm:$0xf]
        %v912 = vld [vmem:[#allocation8 + $0x44] sm:$0xf]
        %v913 = vld [vmem:[#allocation8 + $0x48] sm:$0xf]
        %v914 = vld [vmem:[#allocation8 + $0x4c] sm:$0xf]
        %v915 = vld [vmem:[#allocation8 + $0x50] sm:$0xf]
        %v916 = vld [vmem:[#allocation8 + $0x54] sm:$0xf]
        %v917 = vld [vmem:[#allocation8 + $0x58] sm:$0xf]
        %v918 = vld [vmem:[#allocation8 + $0x5c] sm:$0xf]
        %v919 = vld [vmem:[#allocation8 + $0x60] sm:$0xf]
        %v920 = vld [vmem:[#allocation8 + $0x64] sm:$0xf]
        %v921 = vld [vmem:[#allocation8 + $0x68] sm:$0xf]
        %v922 = vld [vmem:[#allocation8 + $0x6c] sm:$0xf]
        %v923 = vld [vmem:[#allocation8 + $0x70] sm:$0xf]
        %v924 = vld [vmem:[#allocation8 + $0x74] sm:$0xf]
        %v925 = vld [vmem:[#allocation8 + $0x78] sm:$0xf]
        %v926 = vld [vmem:[#allocation8 + $0x7c] sm:$0xf]
        %v927 = vld [vmem:[#allocation8 + $0x80] sm:$0xf]
        %v928 = vld [vmem:[#allocation8 + $0x84] sm:$0xf]
        %v929 = vld [vmem:[#allocation8 + $0x88] sm:$0xf]
        %v930 = vld [vmem:[#allocation8 + $0x8c] sm:$0xf]
        %v931 = vld [vmem:[#allocation8 + $0x90] sm:$0xf]
        %v932 = vld [vmem:[#allocation8 + $0x94] sm:$0xf]
        %v933 = vld [vmem:[#allocation8 + $0x98] sm:$0xf]
        %v934 = vld [vmem:[#allocation8 + $0x9c] sm:$0xf]
        %v935 = vld [vmem:[#allocation8 + $0xa0] sm:$0xf]
        %v936 = vld [vmem:[#allocation8 + $0xa4] sm:$0xf]
        %v937 = vld [vmem:[#allocation8 + $0xa8] sm:$0xf]
        %v938 = vld [vmem:[#allocation8 + $0xac] sm:$0xf]
        %v939 = vld [vmem:[#allocation8 + $0xb0] sm:$0xf]
        %v940 = vld [vmem:[#allocation8 + $0xb4] sm:$0xf]
        %v941 = vld [vmem:[#allocation8 + $0xb8] sm:$0xf]
        %v942 = vld [vmem:[#allocation8 + $0xbc] sm:$0xf]
        %v945 = vunpack.c.l.b16 %v893
        %v946 = vunpack.c.h.b16 %v893
        %v947 = vunpack.c.l.b16 %v894
        %v948 = vpack.c.b16 %v945, %v945
        %v949 = vpack.c.b16 %v946, %v946
        %v950 = vpack.c.b16 %v947, %v947
        %v1002 = vunpack.c.l.b16 %v895
        %v1003 = vunpack.c.l.b16 %v896
        %v1004 = vunpack.c.l.b16 %v897
        %v1005 = vunpack.c.l.b16 %v898
        %v1006 = vunpack.c.l.b16 %v899
        %v1007 = vunpack.c.l.b16 %v900
        %v1008 = vunpack.c.l.b16 %v901
        %v1009 = vunpack.c.l.b16 %v902
        %v1010 = vunpack.c.l.b16 %v903
        %v1011 = vunpack.c.l.b16 %v904
        %v1012 = vunpack.c.l.b16 %v905
        %v1013 = vunpack.c.l.b16 %v906
        %v1014 = vunpack.c.l.b16 %v907
        %v1015 = vunpack.c.l.b16 %v908
        %v1016 = vunpack.c.l.b16 %v909
        %v1017 = vunpack.c.l.b16 %v910
        %v1018 = vunpack.c.l.b16 %v911
        %v1019 = vunpack.c.l.b16 %v912
        %v1020 = vunpack.c.l.b16 %v913
        %v1021 = vunpack.c.l.b16 %v914
        %v1022 = vunpack.c.l.b16 %v915
        %v1023 = vunpack.c.l.b16 %v916
        %v1024 = vunpack.c.l.b16 %v917
        %v1025 = vunpack.c.l.b16 %v918
        %v1026 = vunpack.c.l.b16 %v919
        %v1027 = vunpack.c.l.b16 %v920
        %v1028 = vunpack.c.l.b16 %v921
        %v1029 = vunpack.c.l.b16 %v922
        %v1030 = vunpack.c.l.b16 %v923
        %v1031 = vunpack.c.l.b16 %v924
        %v1032 = vunpack.c.l.b16 %v925
        %v1033 = vunpack.c.l.b16 %v926
        %v1034 = vunpack.c.l.b16 %v927
        %v1035 = vunpack.c.l.b16 %v928
        %v1036 = vunpack.c.l.b16 %v929
        %v1037 = vunpack.c.l.b16 %v930
        %v1038 = vunpack.c.l.b16 %v931
        %v1039 = vunpack.c.l.b16 %v932
        %v1040 = vunpack.c.l.b16 %v933
        %v1041 = vunpack.c.l.b16 %v934
        %v1042 = vunpack.c.l.b16 %v935
        %v1043 = vunpack.c.l.b16 %v936
        %v1044 = vunpack.c.l.b16 %v937
        %v1045 = vunpack.c.l.b16 %v938
        %v1046 = vunpack.c.l.b16 %v939
        %v1047 = vunpack.c.l.b16 %v940
        %v1048 = vunpack.c.l.b16 %v941
        %v1049 = vunpack.c.l.b16 %v942
        %v1050 = vpack.c.b16 %v1003, %v1002
        %v1051 = vpack.c.b16 %v1005, %v1004
        %v1052 = vpack.c.b16 %v1007, %v1006
        %v1053 = vpack.c.b16 %v1009, %v1008
        %v1054 = vpack.c.b16 %v1011, %v1010
        %v1055 = vpack.c.b16 %v1013, %v1012
        %v1056 = vpack.c.b16 %v1015, %v1014
        %v1057 = vpack.c.b16 %v1017, %v1016
        %v1058 = vpack.c.b16 %v1019, %v1018
        %v1059 = vpack.c.b16 %v1021, %v1020
        %v1060 = vpack.c.b16 %v1023, %v1022
        %v1061 = vpack.c.b16 %v1025, %v1024
        %v1062 = vpack.c.b16 %v1027, %v1026
        %v1063 = vpack.c.b16 %v1029, %v1028
        %v1064 = vpack.c.b16 %v1031, %v1030
        %v1065 = vpack.c.b16 %v1033, %v1032
        %v1066 = vpack.c.b16 %v1035, %v1034
        %v1067 = vpack.c.b16 %v1037, %v1036
        %v1068 = vpack.c.b16 %v1039, %v1038
        %v1069 = vpack.c.b16 %v1041, %v1040
        %v1070 = vpack.c.b16 %v1043, %v1042
        %v1071 = vpack.c.b16 %v1045, %v1044
        %v1072 = vpack.c.b16 %v1047, %v1046
        %v1073 = vpack.c.b16 %v1049, %v1048
        %1098 = vmatprep.subr.bf16.mxu0 0
        %1099 = vmatpush1.bf16.msra.mxu0 %v1050
        %1100 = vmatprep.subr.bf16.mxu0 0
        %1101 = vmatpush1.bf16.msra.mxu0 %v1051
        %1102 = vmatprep.subr.bf16.mxu0 0
        %1103 = vmatpush1.bf16.msra.mxu0 %v1052
        %1104 = vmatprep.subr.bf16.mxu0 0
        %1105 = vmatpush1.bf16.msra.mxu0 %v1053
        %1106 = vmatprep.subr.bf16.mxu0 0
        %1107 = vmatpush1.bf16.msra.mxu0 %v1054
        %1108 = vmatprep.subr.bf16.mxu0 0
        %1109 = vmatpush1.bf16.msra.mxu0 %v1055
        %1110 = vmatprep.subr.bf16.mxu0 0
        %1111 = vmatpush1.bf16.msra.mxu0 %v1056
        %1112 = vmatprep.subr.bf16.mxu0 0
        %1113 = vmatpush1.bf16.msra.mxu0 %v1057
        %1114 = vmatprep.subr.bf16.mxu0 0
        %1115 = vmatpush1.bf16.msra.mxu0 %v1058
        %1116 = vmatprep.subr.bf16.mxu0 0
        %1117 = vmatpush1.bf16.msra.mxu0 %v1059
        %1118 = vmatprep.subr.bf16.mxu0 0
        %1119 = vmatpush1.bf16.msra.mxu0 %v1060
        %1120 = vmatprep.subr.bf16.mxu0 0
        %1121 = vmatpush1.bf16.msra.mxu0 %v1061
        %1122 = vmatprep.subr.bf16.mxu0 0
        %1123 = vmatpush1.bf16.msra.mxu0 %v1062
        %1124 = vmatprep.subr.bf16.mxu0 0
        %1125 = vmatpush1.bf16.msra.mxu0 %v1063
        %1126 = vmatprep.subr.bf16.mxu0 0
        %1127 = vmatpush1.bf16.msra.mxu0 %v1064
        %1128 = vmatprep.subr.bf16.mxu0 0
        %1129 = vmatpush1.bf16.msra.mxu0 %v1065
        %1130 = vmatprep.mubr.bf16.mxu0 %v949
        %1131 = vmatmul.mubr.bf16.gmra.mrb[0].mxu0 %v948
        %v1132 = vpop.f32.mrb[0].mxu0
        %v1133 = vadd.f32 0.0, %v1132
        %v1134 = vpop.f32.mrb[0].mxu0
        %v1135 = vpop.f32.mrb[0].mxu0
        %v1136 = vpop.f32.mrb[0].mxu0
        %1137 = vdwg.mxu0
        %1138 = vmatprep.subr.bf16.mxu0 0
        %1139 = vmatpush1.bf16.msra.mxu0 %v1066
        %1140 = vmatprep.subr.bf16.mxu0 0
        %1141 = vmatpush1.bf16.msra.mxu0 %v1067
        %1142 = vmatprep.subr.bf16.mxu0 0
        %1143 = vmatpush1.bf16.msra.mxu0 %v1068
        %1144 = vmatprep.subr.bf16.mxu0 0
        %1145 = vmatpush1.bf16.msra.mxu0 %v1069
        %1146 = vmatprep.subr.bf16.mxu0 0
        %1147 = vmatpush1.bf16.msra.mxu0 %v1070
        %1148 = vmatprep.subr.bf16.mxu0 0
        %1149 = vmatpush1.bf16.msra.mxu0 %v1071
        %1150 = vmatprep.subr.bf16.mxu0 0
        %1151 = vmatpush1.bf16.msra.mxu0 %v1072
        %1152 = vmatprep.subr.bf16.mxu0 0
        %1153 = vmatpush1.bf16.msra.mxu0 %v1073
        %1154 = vmatprep.subr.bf16.mxu0 0
        %1155 = vmatpush1.bf16.msra.mxu0 0
        %1156 = vmatprep.subr.bf16.mxu0 0
        %1157 = vmatpush1.bf16.msra.mxu0 0
        %1158 = vmatprep.subr.bf16.mxu0 0
        %1159 = vmatpush1.bf16.msra.mxu0 0
        %1160 = vmatprep.subr.bf16.mxu0 0
        %1161 = vmatpush1.bf16.msra.mxu0 0
        %1162 = vmatprep.subr.bf16.mxu0 0
        %1163 = vmatpush1.bf16.msra.mxu0 0
        %1164 = vmatprep.subr.bf16.mxu0 0
        %1165 = vmatpush1.bf16.msra.mxu0 0
        %1166 = vmatprep.subr.bf16.mxu0 0
        %1167 = vmatpush1.bf16.msra.mxu0 0
        %1168 = vmatprep.subr.bf16.mxu0 0
        %1169 = vmatpush1.bf16.msra.mxu0 0
        %1170 = vmatprep.mubr.bf16.mxu0 0
        %1171 = vmatmul.mubr.bf16.gmra.mrb[0].mxu0 %v950
        %v1172 = vpop.f32.mrb[0].mxu0
        %v1173 = vadd.f32 %v1133, %v1172
        %v1174 = vpop.f32.mrb[0].mxu0
        %v1175 = vpop.f32.mrb[0].mxu0
        %v1176 = vpop.f32.mrb[0].mxu0
        %1177 = vdwg.mxu0
        %v1178 = vmul.f32 %v1173, 0.33333334
        %v1179 = vld [vmem:[%s5] sm:$0x1]
        %v1181 = vlaneseq
        %v1182 = vshrl.u32 %v1181, 7
        %v1183 = vsub.s32 0, %v1182
        %v1184 = vrot.slane %v1179, %v1183
        %v1186 = vadd.f32 %v1178, %v1184
        %v1187 = vadd.f32 %v766, %v1186
        %v1188 = vlaneseq
        %v1189 = vand.u32 %v1188, 127
        %vm1190 = vcmp.lt.s32.totalorder %v1189, 21
        %v1191 = vsel %vm1190, 1, 0
        %vm1192 = vcmp.eq.s32.totalorder %v1191, 1
        %v1193 = vsel %vm1192, %v764, -1e+30
        %1194 = vmax.xlane.f32.xlu0 %v1193
        %v1195 = vpop.xlane.xlu0 %1194
        %v1196 = vsub.f32 %v764, %v1195
        %v1197 = vmul.f32 %v1196, 1.442695
        %v1198 = vpow.pop %v1197
        %v1199 = vsel %vm1192, %v1198, 0.0
        %1200 = vadd.xlane.f32.xlu0 %v1199
        %v1201 = vpop.xlane.xlu0 %1200
        %v1202 = vrcp.pop %v1201
        %v1203 = vmul.f32 %v1199, %v1202
        %v1204 = vsel %vm1192, %v805, -1e+30
        %1205 = vmax.xlane.f32.xlu0 %v1204
        %v1206 = vpop.xlane.xlu0 %1205
        %v1207 = vsub.f32 %v805, %v1206
        %v1208 = vmul.f32 %v1207, 1.442695
        %v1209 = vpow.pop %v1208
        %v1210 = vsel %vm1192, %v1209, 0.0
        %1211 = vadd.xlane.f32.xlu0 %v1210
        %v1212 = vpop.xlane.xlu0 %1211
        %v1213 = vrcp.pop %v1212
        %v1214 = vmul.f32 %v1210, %v1213
        %v1215 = vsel %vm1192, %v807, -1e+30
        %1216 = vmax.xlane.f32.xlu0 %v1215
        %v1217 = vpop.xlane.xlu0 %1216
        %v1218 = vsub.f32 %v807, %v1217
        %v1219 = vmul.f32 %v1218, 1.442695
        %v1220 = vpow.pop %v1219
        %v1221 = vsel %vm1192, %v1220, 0.0
        %1222 = vadd.xlane.f32.xlu0 %v1221
        %v1223 = vpop.xlane.xlu0 %1222
        %v1224 = vrcp.pop %v1223
        %v1225 = vmul.f32 %v1221, %v1224
        %v1226 = vsel %vm1192, %v846, -1e+30
        %1227 = vmax.xlane.f32.xlu0 %v1226
        %v1228 = vpop.xlane.xlu0 %1227
        %v1229 = vsub.f32 %v846, %v1228
        %v1230 = vmul.f32 %v1229, 1.442695
        %v1231 = vpow.pop %v1230
        %v1232 = vsel %vm1192, %v1231, 0.0
        %1233 = vadd.xlane.f32.xlu0 %v1232
        %v1234 = vpop.xlane.xlu0 %1233
        %v1235 = vrcp.pop %v1234
        %v1236 = vmul.f32 %v1232, %v1235
        %1237 = vst [vmem:[%s535] sm:$0xff] %v1203
        %1238 = vst [vmem:[%s542] sm:$0xff] %v1187
        %1239 = vst [vmem:[%s549] sm:$0xff] %v1214
        %1240 = vst [vmem:[%s556] sm:$0xff] %v1225
        %1241 = vst [vmem:[%s563] sm:$0xff] %v1236
        %1242 = vst [vmem:[%s570] sm:$0xff] %v848
        %1243 = vst [vmem:[%s577] sm:$0xff] %v887
        %1244 = vst [vmem:[%s584] sm:$0xff] %v889
        %s1245 = sand.u32 %s191, 1
        %s1246 = scalar_lea.sflag [#allocation4], %s1245
        %s1247 = sand.u32 %s191, 1
        %s1248 = smul.addr %s1247, 8
        %s1249 = scalar_lea.vmem [#allocation10], %s1248
        %s1250 = sand.u32 %s47, 1
        %s1251 = scalar_lea.sflag [#allocation12], %s1250
        %s1252 = sand.u32 %s217, 1
        %s1253 = smul.addr %s1252, 8
        %s1254 = scalar_lea.vmem [#allocation11], %s1253
        %s1255 = sand.u32 %s47, 1
        %s1256 = scalar_lea.sflag [#allocation12], %s1255
        %s1257 = sand.u32 %s243, 1
        %s1258 = smul.addr %s1257, 8
        %s1259 = scalar_lea.vmem [#allocation13], %s1258
        %s1260 = sand.u32 %s47, 1
        %s1261 = scalar_lea.sflag [#allocation15], %s1260
        %s1262 = sand.u32 %s269, 1
        %s1263 = smul.addr %s1262, 8
        %s1264 = scalar_lea.vmem [#allocation14], %s1263
        %s1265 = sand.u32 %s47, 1
        %s1266 = scalar_lea.sflag [#allocation15], %s1265
        %s1267 = sand.u32 %s295, 1
        %s1268 = smul.addr %s1267, 8
        %s1269 = scalar_lea.vmem [#allocation16], %s1268
        %s1270 = sand.u32 %s47, 1
        %s1271 = scalar_lea.sflag [#allocation18], %s1270
        %s1272 = sand.u32 %s321, 1
        %s1273 = smul.addr %s1272, 8
        %s1274 = scalar_lea.vmem [#allocation17], %s1273
        %s1275 = sand.u32 %s47, 1
        %s1276 = scalar_lea.sflag [#allocation18], %s1275
        %s1277 = sand.u32 %s347, 1
        %s1278 = smul.addr %s1277, 8
        %s1279 = scalar_lea.vmem [#allocation19], %s1278
        %s1280 = sand.u32 %s373, 1
        %s1281 = scalar_lea.sflag [#allocation21], %s1280
        %s1282 = sand.u32 %s373, 1
        %s1283 = smul.addr %s1282, 8
        %s1284 = scalar_lea.vmem [#allocation20], %s1283
        // Predicated region
        $region61: #{tpu_custom_call.1} parent=43 // pred_check
          %p1285 = pneg %p201
        $region62: #{tpu_custom_call.1} parent=43 // pred_check_branch
          %1287 = sbr.rel (%p1285) target = $region64
        $region63: #{tpu_custom_call.1} parent=43 // pred_region
          %s1289 = ssub.s32 128, 128
          %1290 = vsyncadd %s1246, %s1289
          %s1291 = smul.addr %s47, 128
          %s1292 = scalar_lea.hbm %s6, %s1291
          %s1294 = sshll.u32 %s1249, 4
          %s1295 = int_to_ptr.vmem [resolvable:$true] %s1294
          %1297 = dma.vmem_to_hbm [thread:$0]  %s1295, 128, %s1292, %s1246
        $region64: #{tpu_custom_call.1} parent=43 // pred_fallthru
          _
        // Predicated region
        $region65: #{tpu_custom_call.1} parent=43 // pred_check
          %p1298 = pneg %p227
        $region66: #{tpu_custom_call.1} parent=43 // pred_check_branch
          %1300 = sbr.rel (%p1298) target = $region68
        $region67: #{tpu_custom_call.1} parent=43 // pred_region
          %s1302 = ssub.s32 128, 128
          %1303 = vsyncadd %s1251, %s1302
          %s1304 = smul.addr %s47, 128
          %s1305 = scalar_lea.hbm %s7, %s1304
          %s1307 = sshll.u32 %s1254, 4
          %s1308 = int_to_ptr.vmem [resolvable:$true] %s1307
          %1310 = dma.vmem_to_hbm [thread:$0]  %s1308, 128, %s1305, %s1251
        $region68: #{tpu_custom_call.1} parent=43 // pred_fallthru
          _
        // Predicated region
        $region69: #{tpu_custom_call.1} parent=43 // pred_check
          %p1311 = pneg %p253
        $region70: #{tpu_custom_call.1} parent=43 // pred_check_branch
          %1313 = sbr.rel (%p1311) target = $region72
        $region71: #{tpu_custom_call.1} parent=43 // pred_region
          %s1315 = ssub.s32 128, 128
          %1316 = vsyncadd %s1256, %s1315
          %s1317 = smul.addr %s47, 128
          %s1318 = scalar_lea.hbm %s8, %s1317
          %s1320 = sshll.u32 %s1259, 4
          %s1321 = int_to_ptr.vmem [resolvable:$true] %s1320
          %1323 = dma.vmem_to_hbm [thread:$0]  %s1321, 128, %s1318, %s1256
        $region72: #{tpu_custom_call.1} parent=43 // pred_fallthru
          _
        // Predicated region
        $region73: #{tpu_custom_call.1} parent=43 // pred_check
          %p1324 = pneg %p279
        $region74: #{tpu_custom_call.1} parent=43 // pred_check_branch
          %1326 = sbr.rel (%p1324) target = $region76
        $region75: #{tpu_custom_call.1} parent=43 // pred_region
          %s1328 = ssub.s32 128, 128
          %1329 = vsyncadd %s1261, %s1328
          %s1330 = smul.addr %s47, 128
          %s1331 = scalar_lea.hbm %s9, %s1330
          %s1333 = sshll.u32 %s1264, 4
          %s1334 = int_to_ptr.vmem [resolvable:$true] %s1333
          %1336 = dma.vmem_to_hbm [thread:$0]  %s1334, 128, %s1331, %s1261
        $region76: #{tpu_custom_call.1} parent=43 // pred_fallthru
          _
        // Predicated region
        $region77: #{tpu_custom_call.1} parent=43 // pred_check
          %p1337 = pneg %p305
        $region78: #{tpu_custom_call.1} parent=43 // pred_check_branch
          %1339 = sbr.rel (%p1337) target = $region80
        $region79: #{tpu_custom_call.1} parent=43 // pred_region
          %s1341 = ssub.s32 128, 128
          %1342 = vsyncadd %s1266, %s1341
          %s1343 = smul.addr %s47, 128
          %s1344 = scalar_lea.hbm %s10, %s1343
          %s1346 = sshll.u32 %s1269, 4
          %s1347 = int_to_ptr.vmem [resolvable:$true] %s1346
          %1349 = dma.vmem_to_hbm [thread:$0]  %s1347, 128, %s1344, %s1266
        $region80: #{tpu_custom_call.1} parent=43 // pred_fallthru
          _
        // Predicated region
        $region81: #{tpu_custom_call.1} parent=43 // pred_check
          %p1350 = pneg %p331
        $region82: #{tpu_custom_call.1} parent=43 // pred_check_branch
          %1352 = sbr.rel (%p1350) target = $region84
        $region83: #{tpu_custom_call.1} parent=43 // pred_region
          %s1354 = ssub.s32 128, 128
          %1355 = vsyncadd %s1271, %s1354
          %s1356 = smul.addr %s47, 128
          %s1357 = scalar_lea.hbm %s11, %s1356
          %s1359 = sshll.u32 %s1274, 4
          %s1360 = int_to_ptr.vmem [resolvable:$true] %s1359
          %1362 = dma.vmem_to_hbm [thread:$0]  %s1360, 128, %s1357, %s1271
        $region84: #{tpu_custom_call.1} parent=43 // pred_fallthru
          _
        // Predicated region
        $region85: #{tpu_custom_call.1} parent=43 // pred_check
          %p1363 = pneg %p357
        $region86: #{tpu_custom_call.1} parent=43 // pred_check_branch
          %1365 = sbr.rel (%p1363) target = $region88
        $region87: #{tpu_custom_call.1} parent=43 // pred_region
          %s1367 = ssub.s32 128, 128
          %1368 = vsyncadd %s1276, %s1367
          %s1369 = smul.addr %s47, 128
          %s1370 = scalar_lea.hbm %s12, %s1369
          %s1372 = sshll.u32 %s1279, 4
          %s1373 = int_to_ptr.vmem [resolvable:$true] %s1372
          %1375 = dma.vmem_to_hbm [thread:$0]  %s1373, 128, %s1370, %s1276
        $region88: #{tpu_custom_call.1} parent=43 // pred_fallthru
          _
        // Predicated region
        $region89: #{tpu_custom_call.1} parent=43 // pred_check
          %p1376 = pneg %p383
        $region90: #{tpu_custom_call.1} parent=43 // pred_check_branch
          %1378 = sbr.rel (%p1376) target = $region92
        $region91: #{tpu_custom_call.1} parent=43 // pred_region
          %s1380 = ssub.s32 128, 128
          %1381 = vsyncadd %s1281, %s1380
          %s1382 = smul.addr %s47, 128
          %s1383 = scalar_lea.hbm %s13, %s1382
          %s1385 = sshll.u32 %s1284, 4
          %s1386 = int_to_ptr.vmem [resolvable:$true] %s1385
          %1388 = dma.vmem_to_hbm [thread:$0]  %s1386, 128, %s1383, %s1281
        $region92: #{tpu_custom_call.1} parent=43 // pred_fallthru
          _
      $region44: #{tpu_custom_call.1} parent=5 // pred_fallthru
        _
      %p1389 = scmp.le.s32.totalorder 2, %s42
      // Predicated region
      $region93: #{tpu_custom_call.1} parent=5 // pred_check
        %p1390 = pneg %p1389
      $region94: #{tpu_custom_call.1} parent=5 // pred_check_branch
        %1392 = sbr.rel (%p1390) target = $region96
      $region95: #{tpu_custom_call.1} parent=5 // pred_region
        %s1393 = ssub.s32 %s42, 2
        // Predicated region
        $region97: #{tpu_custom_call.1} parent=95 // pred_check
          %p1394 = pneg %p207
        $region98: #{tpu_custom_call.1} parent=95 // pred_check_branch
          %1396 = sbr.rel (%p1394) target = $region100
        $region99: #{tpu_custom_call.1} parent=95 // pred_region
          %s1397 = sand.u32 %s192, 1
          %s1398 = scalar_lea.sflag [#allocation4], %s1397
          %s1399 = sand.u32 %s192, 1
          %s1400 = smul.addr %s1399, 8
          %s1401 = scalar_lea.vmem [#allocation10], %s1400
          %1402 = dma.done %s1398, 128
        $region100: #{tpu_custom_call.1} parent=95 // pred_fallthru
          _
        // Predicated region
        $region101: #{tpu_custom_call.1} parent=95 // pred_check
          %p1403 = pneg %p233
        $region102: #{tpu_custom_call.1} parent=95 // pred_check_branch
          %1405 = sbr.rel (%p1403) target = $region104
        $region103: #{tpu_custom_call.1} parent=95 // pred_region
          %s1406 = sand.u32 %s48, 1
          %s1407 = scalar_lea.sflag [#allocation12], %s1406
          %s1408 = sand.u32 %s218, 1
          %s1409 = smul.addr %s1408, 8
          %s1410 = scalar_lea.vmem [#allocation11], %s1409
          %1411 = dma.done %s1407, 128
        $region104: #{tpu_custom_call.1} parent=95 // pred_fallthru
          _
        // Predicated region
        $region105: #{tpu_custom_call.1} parent=95 // pred_check
          %p1412 = pneg %p259
        $region106: #{tpu_custom_call.1} parent=95 // pred_check_branch
          %1414 = sbr.rel (%p1412) target = $region108
        $region107: #{tpu_custom_call.1} parent=95 // pred_region
          %s1415 = sand.u32 %s48, 1
          %s1416 = scalar_lea.sflag [#allocation12], %s1415
          %s1417 = sand.u32 %s244, 1
          %s1418 = smul.addr %s1417, 8
          %s1419 = scalar_lea.vmem [#allocation13], %s1418
          %1420 = dma.done %s1416, 128
        $region108: #{tpu_custom_call.1} parent=95 // pred_fallthru
          _
        // Predicated region
        $region109: #{tpu_custom_call.1} parent=95 // pred_check
          %p1421 = pneg %p285
        $region110: #{tpu_custom_call.1} parent=95 // pred_check_branch
          %1423 = sbr.rel (%p1421) target = $region112
        $region111: #{tpu_custom_call.1} parent=95 // pred_region
          %s1424 = sand.u32 %s48, 1
          %s1425 = scalar_lea.sflag [#allocation15], %s1424
          %s1426 = sand.u32 %s270, 1
          %s1427 = smul.addr %s1426, 8
          %s1428 = scalar_lea.vmem [#allocation14], %s1427
          %1429 = dma.done %s1425, 128
        $region112: #{tpu_custom_call.1} parent=95 // pred_fallthru
          _
        // Predicated region
        $region113: #{tpu_custom_call.1} parent=95 // pred_check
          %p1430 = pneg %p311
        $region114: #{tpu_custom_call.1} parent=95 // pred_check_branch
          %1432 = sbr.rel (%p1430) target = $region116
        $region115: #{tpu_custom_call.1} parent=95 // pred_region
          %s1433 = sand.u32 %s48, 1
          %s1434 = scalar_lea.sflag [#allocation15], %s1433
          %s1435 = sand.u32 %s296, 1
          %s1436 = smul.addr %s1435, 8
          %s1437 = scalar_lea.vmem [#allocation16], %s1436
          %1438 = dma.done %s1434, 128
        $region116: #{tpu_custom_call.1} parent=95 // pred_fallthru
          _
        // Predicated region
        $region117: #{tpu_custom_call.1} parent=95 // pred_check
          %p1439 = pneg %p337
        $region118: #{tpu_custom_call.1} parent=95 // pred_check_branch
          %1441 = sbr.rel (%p1439) target = $region120
        $region119: #{tpu_custom_call.1} parent=95 // pred_region
          %s1442 = sand.u32 %s48, 1
          %s1443 = scalar_lea.sflag [#allocation18], %s1442
          %s1444 = sand.u32 %s322, 1
          %s1445 = smul.addr %s1444, 8
          %s1446 = scalar_lea.vmem [#allocation17], %s1445
          %1447 = dma.done %s1443, 128
        $region120: #{tpu_custom_call.1} parent=95 // pred_fallthru
          _
        // Predicated region
        $region121: #{tpu_custom_call.1} parent=95 // pred_check
          %p1448 = pneg %p363
        $region122: #{tpu_custom_call.1} parent=95 // pred_check_branch
          %1450 = sbr.rel (%p1448) target = $region124
        $region123: #{tpu_custom_call.1} parent=95 // pred_region
          %s1451 = sand.u32 %s48, 1
          %s1452 = scalar_lea.sflag [#allocation18], %s1451
          %s1453 = sand.u32 %s348, 1
          %s1454 = smul.addr %s1453, 8
          %s1455 = scalar_lea.vmem [#allocation19], %s1454
          %1456 = dma.done %s1452, 128
        $region124: #{tpu_custom_call.1} parent=95 // pred_fallthru
          _
        // Predicated region
        $region125: #{tpu_custom_call.1} parent=95 // pred_check
          %p1457 = pneg %p389
        $region126: #{tpu_custom_call.1} parent=95 // pred_check_branch
          %1459 = sbr.rel (%p1457) target = $region128
        $region127: #{tpu_custom_call.1} parent=95 // pred_region
          %s1460 = sand.u32 %s374, 1
          %s1461 = scalar_lea.sflag [#allocation21], %s1460
          %s1462 = sand.u32 %s374, 1
          %s1463 = smul.addr %s1462, 8
          %s1464 = scalar_lea.vmem [#allocation20], %s1463
          %1465 = dma.done %s1461, 128
        $region128: #{tpu_custom_call.1} parent=95 // pred_fallthru
          _
      $region96: #{tpu_custom_call.1} parent=5 // pred_fallthru
        _
    $region6: #{tpu_custom_call.1} parent=1 // loop_footer
      %s46 = sadd.s32 1, %s42
    $region7: #{tpu_custom_call.1} parent=1 // loop_footer_branch
      %41 = sbr.rel target = $region3
    $region8: #{tpu_custom_call.1} parent=1 // loop_exit
      _
    %1466 = vsyncpa [#allocation3], 1
    %s1467 = scalar_lea.sflag [#allocation3], 1
    %1468 = vsyncpa %s1467, 1
    %1469 = vsyncpa [#allocation6], 1
    %s1470 = scalar_lea.sflag [#allocation6], 1
    %1471 = vsyncpa %s1470, 1
    %1472 = vsyncpa [#allocation9], 1
    %1473 = vsyncpa [#allocation4], 1
    %s1474 = scalar_lea.sflag [#allocation4], 1
    %1475 = vsyncpa %s1474, 1
    %1476 = vsyncpa [#allocation12], 1
    %s1477 = scalar_lea.sflag [#allocation12], 1
    %1478 = vsyncpa %s1477, 1
    %1479 = vsyncpa [#allocation15], 1
    %s1480 = scalar_lea.sflag [#allocation15], 1
    %1481 = vsyncpa %s1480, 1
    %1482 = vsyncpa [#allocation18], 1
    %s1483 = scalar_lea.sflag [#allocation18], 1
    %1484 = vsyncpa %s1483, 1
    %1485 = vsyncpa [#allocation21], 1
    %s1486 = scalar_lea.sflag [#allocation21], 1
    %1487 = vsyncpa %s1486, 1

// kernel: tpu_custom_call.1
$region0: #{tpu_custom_call.1}
  #allocation0 [shape = 'u32[]', space=smem, size = 0x4, offset = 0x4, fixed_abs, tag = 'smem constant byte address 0x4 - core index']
  #allocation1 [shape = 'u32[144,128]{1,0:T(1,128)}', space=vmem, size = 0x12000, scoped, tag = 'internal scratch']
  %s0 = inlined_call_operand.hbm [shape: bf16[16,32], index: 0, kind: input, shape index: {}]
  %s1 = inlined_call_operand.hbm [shape: bf16[16,384], index: 1, kind: input, shape index: {}]
  %s2 = inlined_call_operand.hbm [shape: bf16[32,1024], index: 2, kind: input, shape index: {}]
  %s3 = inlined_call_operand.vmem [shape: f32[1,1024], index: 3, kind: input, shape index: {}]
  %s4 = inlined_call_operand.hbm [shape: bf16[384,128], index: 4, kind: input, shape index: {}]
  %s5 = inlined_call_operand.vmem [shape: f32[1,128], index: 5, kind: input, shape index: {}]
  %s6 = inlined_call_operand.hbm [shape: f32[16,128], index: 6, kind: output, shape index: {0}]
  %s7 = inlined_call_operand.hbm [shape: f32[16,128], index: 7, kind: output, shape index: {1}]
  %s8 = inlined_call_operand.hbm [shape: f32[16,128], index: 8, kind: output, shape index: {2}]
  %s9 = inlined_call_operand.hbm [shape: f32[16,128], index: 9, kind: output, shape index: {3}]
  %s10 = inlined_call_operand.hbm [shape: f32[16,128], index: 10, kind: output, shape index: {4}]
  %s11 = inlined_call_operand.hbm [shape: f32[16,128], index: 11, kind: output, shape index: {5}]
  %s12 = inlined_call_operand.hbm [shape: f32[16,128], index: 12, kind: output, shape index: {6}]
  %s13 = inlined_call_operand.hbm [shape: f32[16,128], index: 13, kind: output, shape index: {7}]
  %14 = xla_tuple %s6, %s7, %s8, %s9, %s10, %s11, %s12, %s13
  %s15 = sld [smem:[#allocation0]]
  $region129: #{tpu_custom_call.1} parent=0
    _
  %s17 = ssub.s32 1, %s15
  %s18 = scalar_select 0, %s17, %s15
  $region1: #{tpu_custom_call.1} parent=0
    #allocation2 [shape = 'u8[4096]{0}', space=vmem, size = 0x1000, scoped, tag = 'input window, operand 0']
    #allocation3 [shape = 's32[2]{0}', space=sflag, size = 0x8, scoped, tag = 'scoped memory for tpu_custom_call.1']
    #allocation4 [shape = 's32[2]{0}', space=sflag, size = 0x8, scoped, tag = 'scoped memory for tpu_custom_call.1']
    #allocation5 [shape = 'u8[12288]{0}', space=vmem, size = 0x3000, scoped, tag = 'input window, operand 1']
    #allocation6 [shape = 's32[2]{0}', space=sflag, size = 0x8, scoped, tag = 'scoped memory for tpu_custom_call.1']
    #allocation7 [shape = 'u8[65536]{0}', space=vmem, size = 0x10000, scoped, tag = 'input window, operand 2, single buffered']
    #allocation8 [shape = 'u8[98304]{0}', space=vmem, size = 0x18000, scoped, tag = 'input window, operand 4, single buffered']
    #allocation9 [shape = 's32[1]{0}', space=sflag, size = 0x4, scoped, tag = 'scoped memory for tpu_custom_call.1']
    #allocation10 [shape = 'u8[8192]{0}', space=vmem, size = 0x2000, scoped, tag = 'output window, operand 0']
    #allocation11 [shape = 'u8[8192]{0}', space=vmem, size = 0x2000, scoped, tag = 'output window, operand 1']
    #allocation12 [shape = 's32[2]{0}', space=sflag, size = 0x8, scoped, tag = 'scoped memory for tpu_custom_call.1']
    #allocation13 [shape = 'u8[8192]{0}', space=vmem, size = 0x2000, scoped, tag = 'output window, operand 2']
    #allocation14 [shape = 'u8[8192]{0}', space=vmem, size = 0x2000, scoped, tag = 'output window, operand 3']
    #allocation15 [shape = 's32[2]{0}', space=sflag, size = 0x8, scoped, tag = 'scoped memory for tpu_custom_call.1']
    #allocation16 [shape = 'u8[8192]{0}', space=vmem, size = 0x2000, scoped, tag = 'output window, operand 4']
    #allocation17 [shape = 'u8[8192]{0}', space=vmem, size = 0x2000, scoped, tag = 'output window, operand 5']
    #allocation18 [shape = 's32[2]{0}', space=sflag, size = 0x8, scoped, tag = 'scoped memory for tpu_custom_call.1']
    #allocation19 [shape = 'u8[8192]{0}', space=vmem, size = 0x2000, scoped, tag = 'output window, operand 6']
    #allocation20 [shape = 'u8[8192]{0}', space=vmem, size = 0x2000, scoped, tag = 'output window, operand 7']
    #allocation21 [shape = 's32[2]{0}', space=sflag, size = 0x8, scoped, tag = 'scoped memory for tpu_custom_call.1']
    %19 = vsyncpa [#allocation3], 0
    %s20 = scalar_lea.sflag [#allocation3], 1
    %21 = vsyncpa %s20, 0
    %22 = vsyncpa [#allocation6], 0
    %s23 = scalar_lea.sflag [#allocation6], 1
    %24 = vsyncpa %s23, 0
    %25 = vsyncpa [#allocation9], 0
    %26 = vsyncpa [#allocation4], 0
    %s27 = scalar_lea.sflag [#allocation4], 1
    %28 = vsyncpa %s27, 0
    %29 = vsyncpa [#allocation12], 0
    %s30 = scalar_lea.sflag [#allocation12], 1
    %31 = vsyncpa %s30, 0
    %32 = vsyncpa [#allocation15], 0
    %s33 = scalar_lea.sflag [#allocation15], 1
    %34 = vsyncpa %s33, 0
    %35 = vsyncpa [#allocation18], 0
    %s36 = scalar_lea.sflag [#allocation18], 1
    %37 = vsyncpa %s36, 0
    %38 = vsyncpa [#allocation21], 0
    %s39 = scalar_lea.sflag [#allocation21], 1
    %40 = vsyncpa %s39, 0
    loop: start=0, step=1, limit=4
    $region2: #{tpu_custom_call.1} parent=1 // loop_pre_header
      _
    $region3: #{tpu_custom_call.1} parent=1 // loop_header
      %s42 = sphi 0, %s46
      %p43 = scmp.ge.s32.totalorder %s42, 4
      %s52 = sphi 0, %s54
      %s55 = sphi 0, %s52
      %s56 = sphi 0, %s55
      %s72 = sphi 0, %s56
      %s78 = sphi 0, %s80
      %s81 = sphi 0, %s78
      %s82 = sphi 0, %s81
      %s98 = sphi 0, %s82
      %s102 = sphi 0, %s102
      %s104 = sphi 0, %s102
      %s105 = sphi 0, %s104
      %s119 = sphi 0, %s105
      %s123 = sphi 0, %s123
      %s125 = sphi 0, %s123
      %s126 = sphi 0, %s125
      %s140 = sphi 0, %s126
      %s144 = sphi 0, %s144
      %s146 = sphi 0, %s144
      %s147 = sphi 0, %s146
      %s161 = sphi 0, %s147
      %s165 = sphi 0, %s165
      %s167 = sphi 0, %s165
      %s168 = sphi 0, %s167
      %s182 = sphi 0, %s168
      %s188 = sphi 0, %s190
      %s191 = sphi 0, %s188
      %s192 = sphi 0, %s191
      %s208 = sphi 0, %s192
      %s214 = sphi 0, %s216
      %s217 = sphi 0, %s214
      %s218 = sphi 0, %s217
      %s234 = sphi 0, %s218
      %s240 = sphi 0, %s242
      %s243 = sphi 0, %s240
      %s244 = sphi 0, %s243
      %s260 = sphi 0, %s244
      %s266 = sphi 0, %s268
      %s269 = sphi 0, %s266
      %s270 = sphi 0, %s269
      %s286 = sphi 0, %s270
      %s292 = sphi 0, %s294
      %s295 = sphi 0, %s292
      %s296 = sphi 0, %s295
      %s312 = sphi 0, %s296
      %s318 = sphi 0, %s320
      %s321 = sphi 0, %s318
      %s322 = sphi 0, %s321
      %s338 = sphi 0, %s322
      %s344 = sphi 0, %s346
      %s347 = sphi 0, %s344
      %s348 = sphi 0, %s347
      %s364 = sphi 0, %s348
      %s370 = sphi 0, %s372
      %s373 = sphi 0, %s370
      %s374 = sphi 0, %s373
      %s390 = sphi 0, %s374
    $region4: #{tpu_custom_call.1} parent=1 // loop_header_branch
      %45 = sbr.rel (%p43) target = $region8
    $region5: #{tpu_custom_call.1} parent=1 // loop_body
      %s47 = ssub.s32 %s42, 1
      %s48 = ssub.s32 %s42, 2
      %s49 = sadd.s32 %s42, 1
      %s50 = ssub.s32 %s42, %s49
      %p51 = scmp.eq.s32.totalorder %s50, 0
      %s53 = sadd.s32 %s52, 1
      %s54 = scalar_select %p51, %s52, %s53
      %p57 = pneg %p51
      %p58 = scmp.eq.s32.totalorder %s42, 1
      %p59 = por %p57, %p58
      %p60 = scmp.ne.s32.totalorder %s52, %s55
      %p61 = scmp.eq.s32.totalorder %s42, 0
      %p62 = por %p60, %p61
      %p63 = scmp.ne.s32.totalorder %s52, %s55
      %p64 = scmp.eq.s32.totalorder %s47, 1
      %p65 = por %p63, %p64
      %p66 = scmp.ne.s32.totalorder %s55, %s56
      %p67 = scmp.eq.s32.totalorder %s47, 0
      %p68 = por %p66, %p67
      %p69 = scmp.ne.s32.totalorder %s55, %s56
      %p70 = scmp.eq.s32.totalorder %s48, 1
      %p71 = por %p69, %p70
      %p73 = scmp.ne.s32.totalorder %s56, %s72
      %p74 = scmp.eq.s32.totalorder %s48, 0
      %p75 = por %p73, %p74
      %s76 = ssub.s32 %s42, %s49
      %p77 = scmp.eq.s32.totalorder %s76, 0
      %s79 = sadd.s32 %s78, 1
      %s80 = scalar_select %p77, %s78, %s79
      %p83 = pneg %p77
      %p84 = scmp.eq.s32.totalorder %s42, 1
      %p85 = por %p83, %p84
      %p86 = scmp.ne.s32.totalorder %s78, %s81
      %p87 = scmp.eq.s32.totalorder %s42, 0
      %p88 = por %p86, %p87
      %p89 = scmp.ne.s32.totalorder %s78, %s81
      %p90 = scmp.eq.s32.totalorder %s47, 1
      %p91 = por %p89, %p90
      %p92 = scmp.ne.s32.totalorder %s81, %s82
      %p93 = scmp.eq.s32.totalorder %s47, 0
      %p94 = por %p92, %p93
      %p95 = scmp.ne.s32.totalorder %s81, %s82
      %p96 = scmp.eq.s32.totalorder %s48, 1
      %p97 = por %p95, %p96
      %p99 = scmp.ne.s32.totalorder %s82, %s98
      %p100 = scmp.eq.s32.totalorder %s48, 0
      %p101 = por %p99, %p100
      %s103 = sadd.s32 %s102, 1
      %p106 = scmp.eq.s32.totalorder %s42, 1
      %p107 = scmp.ne.s32.totalorder %s102, %s104
      %p108 = scmp.eq.s32.totalorder %s42, 0
      %p109 = por %p107, %p108
      %p110 = scmp.ne.s32.totalorder %s102, %s104
      %p111 = scmp.eq.s32.totalorder %s47, 1
      %p112 = por %p110, %p111
      %p113 = scmp.ne.s32.totalorder %s104, %s105
      %p114 = scmp.eq.s32.totalorder %s47, 0
      %p115 = por %p113, %p114
      %p116 = scmp.ne.s32.totalorder %s104, %s105
      %p117 = scmp.eq.s32.totalorder %s48, 1
      %p118 = por %p116, %p117
      %p120 = scmp.ne.s32.totalorder %s105, %s119
      %p121 = scmp.eq.s32.totalorder %s48, 0
      %p122 = por %p120, %p121
      %s124 = sadd.s32 %s123, 1
      %p127 = scmp.eq.s32.totalorder %s42, 1
      %p128 = scmp.ne.s32.totalorder %s123, %s125
      %p129 = scmp.eq.s32.totalorder %s42, 0
      %p130 = por %p128, %p129
      %p131 = scmp.ne.s32.totalorder %s123, %s125
      %p132 = scmp.eq.s32.totalorder %s47, 1
      %p133 = por %p131, %p132
      %p134 = scmp.ne.s32.totalorder %s125, %s126
      %p135 = scmp.eq.s32.totalorder %s47, 0
      %p136 = por %p134, %p135
      %p137 = scmp.ne.s32.totalorder %s125, %s126
      %p138 = scmp.eq.s32.totalorder %s48, 1
      %p139 = por %p137, %p138
      %p141 = scmp.ne.s32.totalorder %s126, %s140
      %p142 = scmp.eq.s32.totalorder %s48, 0
      %p143 = por %p141, %p142
      %s145 = sadd.s32 %s144, 1
      %p148 = scmp.eq.s32.totalorder %s42, 1
      %p149 = scmp.ne.s32.totalorder %s144, %s146
      %p150 = scmp.eq.s32.totalorder %s42, 0
      %p151 = por %p149, %p150
      %p152 = scmp.ne.s32.totalorder %s144, %s146
      %p153 = scmp.eq.s32.totalorder %s47, 1
      %p154 = por %p152, %p153
      %p155 = scmp.ne.s32.totalorder %s146, %s147
      %p156 = scmp.eq.s32.totalorder %s47, 0
      %p157 = por %p155, %p156
      %p158 = scmp.ne.s32.totalorder %s146, %s147
      %p159 = scmp.eq.s32.totalorder %s48, 1
      %p160 = por %p158, %p159
      %p162 = scmp.ne.s32.totalorder %s147, %s161
      %p163 = scmp.eq.s32.totalorder %s48, 0
      %p164 = por %p162, %p163
      %s166 = sadd.s32 %s165, 1
      %p169 = scmp.eq.s32.totalorder %s42, 1
      %p170 = scmp.ne.s32.totalorder %s165, %s167
      %p171 = scmp.eq.s32.totalorder %s42, 0
      %p172 = por %p170, %p171
      %p173 = scmp.ne.s32.totalorder %s165, %s167
      %p174 = scmp.eq.s32.totalorder %s47, 1
      %p175 = por %p173, %p174
      %p176 = scmp.ne.s32.totalorder %s167, %s168
      %p177 = scmp.eq.s32.totalorder %s47, 0
      %p178 = por %p176, %p177
      %p179 = scmp.ne.s32.totalorder %s167, %s168
      %p180 = scmp.eq.s32.totalorder %s48, 1
      %p181 = por %p179, %p180
      %p183 = scmp.ne.s32.totalorder %s168, %s182
      %p184 = scmp.eq.s32.totalorder %s48, 0
      %p185 = por %p183, %p184
      %s186 = ssub.s32 %s42, %s49
      %p187 = scmp.eq.s32.totalorder %s186, 0
      %s189 = sadd.s32 %s188, 1
      %s190 = scalar_select %p187, %s188, %s189
      %p193 = pneg %p187
      %p194 = scmp.eq.s32.totalorder %s42, 1
      %p195 = por %p193, %p194
      %p196 = scmp.ne.s32.totalorder %s188, %s191
      %p197 = scmp.eq.s32.totalorder %s42, 0
      %p198 = por %p196, %p197
      %p199 = scmp.ne.s32.totalorder %s188, %s191
      %p200 = scmp.eq.s32.totalorder %s47, 1
      %p201 = por %p199, %p200
      %p202 = scmp.ne.s32.totalorder %s191, %s192
      %p203 = scmp.eq.s32.totalorder %s47, 0
      %p204 = por %p202, %p203
      %p205 = scmp.ne.s32.totalorder %s191, %s192
      %p206 = scmp.eq.s32.totalorder %s48, 1
      %p207 = por %p205, %p206
      %p209 = scmp.ne.s32.totalorder %s192, %s208
      %p210 = scmp.eq.s32.totalorder %s48, 0
      %p211 = por %p209, %p210
      %s212 = ssub.s32 %s42, %s49
      %p213 = scmp.eq.s32.totalorder %s212, 0
      %s215 = sadd.s32 %s214, 1
      %s216 = scalar_select %p213, %s214, %s215
      %p219 = pneg %p213
      %p220 = scmp.eq.s32.totalorder %s42, 1
      %p221 = por %p219, %p220
      %p222 = scmp.ne.s32.totalorder %s214, %s217
      %p223 = scmp.eq.s32.totalorder %s42, 0
      %p224 = por %p222, %p223
      %p225 = scmp.ne.s32.totalorder %s214, %s217
      %p226 = scmp.eq.s32.totalorder %s47, 1
      %p227 = por %p225, %p226
      %p228 = scmp.ne.s32.totalorder %s217, %s218
      %p229 = scmp.eq.s32.totalorder %s47, 0
      %p230 = por %p228, %p229
      %p231 = scmp.ne.s32.totalorder %s217, %s218
      %p232 = scmp.eq.s32.totalorder %s48, 1
      %p233 = por %p231, %p232
      %p235 = scmp.ne.s32.totalorder %s218, %s234
      %p236 = scmp.eq.s32.totalorder %s48, 0
      %p237 = por %p235, %p236
      %s238 = ssub.s32 %s42, %s49
      %p239 = scmp.eq.s32.totalorder %s238, 0
      %s241 = sadd.s32 %s240, 1
      %s242 = scalar_select %p239, %s240, %s241
      %p245 = pneg %p239
      %p246 = scmp.eq.s32.totalorder %s42, 1
      %p247 = por %p245, %p246
      %p248 = scmp.ne.s32.totalorder %s240, %s243
      %p249 = scmp.eq.s32.totalorder %s42, 0
      %p250 = por %p248, %p249
      %p251 = scmp.ne.s32.totalorder %s240, %s243
      %p252 = scmp.eq.s32.totalorder %s47, 1
      %p253 = por %p251, %p252
      %p254 = scmp.ne.s32.totalorder %s243, %s244
      %p255 = scmp.eq.s32.totalorder %s47, 0
      %p256 = por %p254, %p255
      %p257 = scmp.ne.s32.totalorder %s243, %s244
      %p258 = scmp.eq.s32.totalorder %s48, 1
      %p259 = por %p257, %p258
      %p261 = scmp.ne.s32.totalorder %s244, %s260
      %p262 = scmp.eq.s32.totalorder %s48, 0
      %p263 = por %p261, %p262
      %s264 = ssub.s32 %s42, %s49
      %p265 = scmp.eq.s32.totalorder %s264, 0
      %s267 = sadd.s32 %s266, 1
      %s268 = scalar_select %p265, %s266, %s267
      %p271 = pneg %p265
      %p272 = scmp.eq.s32.totalorder %s42, 1
      %p273 = por %p271, %p272
      %p274 = scmp.ne.s32.totalorder %s266, %s269
      %p275 = scmp.eq.s32.totalorder %s42, 0
      %p276 = por %p274, %p275
      %p277 = scmp.ne.s32.totalorder %s266, %s269
      %p278 = scmp.eq.s32.totalorder %s47, 1
      %p279 = por %p277, %p278
      %p280 = scmp.ne.s32.totalorder %s269, %s270
      %p281 = scmp.eq.s32.totalorder %s47, 0
      %p282 = por %p280, %p281
      %p283 = scmp.ne.s32.totalorder %s269, %s270
      %p284 = scmp.eq.s32.totalorder %s48, 1
      %p285 = por %p283, %p284
      %p287 = scmp.ne.s32.totalorder %s270, %s286
      %p288 = scmp.eq.s32.totalorder %s48, 0
      %p289 = por %p287, %p288
      %s290 = ssub.s32 %s42, %s49
      %p291 = scmp.eq.s32.totalorder %s290, 0
      %s293 = sadd.s32 %s292, 1
      %s294 = scalar_select %p291, %s292, %s293
      %p297 = pneg %p291
      %p298 = scmp.eq.s32.totalorder %s42, 1
      %p299 = por %p297, %p298
      %p300 = scmp.ne.s32.totalorder %s292, %s295
      %p301 = scmp.eq.s32.totalorder %s42, 0
      %p302 = por %p300, %p301
      %p303 = scmp.ne.s32.totalorder %s292, %s295
      %p304 = scmp.eq.s32.totalorder %s47, 1
      %p305 = por %p303, %p304
      %p306 = scmp.ne.s32.totalorder %s295, %s296
      %p307 = scmp.eq.s32.totalorder %s47, 0
      %p308 = por %p306, %p307
      %p309 = scmp.ne.s32.totalorder %s295, %s296
      %p310 = scmp.eq.s32.totalorder %s48, 1
      %p311 = por %p309, %p310
      %p313 = scmp.ne.s32.totalorder %s296, %s312
      %p314 = scmp.eq.s32.totalorder %s48, 0
      %p315 = por %p313, %p314
      %s316 = ssub.s32 %s42, %s49
      %p317 = scmp.eq.s32.totalorder %s316, 0
      %s319 = sadd.s32 %s318, 1
      %s320 = scalar_select %p317, %s318, %s319
      %p323 = pneg %p317
      %p324 = scmp.eq.s32.totalorder %s42, 1
      %p325 = por %p323, %p324
      %p326 = scmp.ne.s32.totalorder %s318, %s321
      %p327 = scmp.eq.s32.totalorder %s42, 0
      %p328 = por %p326, %p327
      %p329 = scmp.ne.s32.totalorder %s318, %s321
      %p330 = scmp.eq.s32.totalorder %s47, 1
      %p331 = por %p329, %p330
      %p332 = scmp.ne.s32.totalorder %s321, %s322
      %p333 = scmp.eq.s32.totalorder %s47, 0
      %p334 = por %p332, %p333
      %p335 = scmp.ne.s32.totalorder %s321, %s322
      %p336 = scmp.eq.s32.totalorder %s48, 1
      %p337 = por %p335, %p336
      %p339 = scmp.ne.s32.totalorder %s322, %s338
      %p340 = scmp.eq.s32.totalorder %s48, 0
      %p341 = por %p339, %p340
      %s342 = ssub.s32 %s42, %s49
      %p343 = scmp.eq.s32.totalorder %s342, 0
      %s345 = sadd.s32 %s344, 1
      %s346 = scalar_select %p343, %s344, %s345
      %p349 = pneg %p343
      %p350 = scmp.eq.s32.totalorder %s42, 1
      %p351 = por %p349, %p350
      %p352 = scmp.ne.s32.totalorder %s344, %s347
      %p353 = scmp.eq.s32.totalorder %s42, 0
      %p354 = por %p352, %p353
      %p355 = scmp.ne.s32.totalorder %s344, %s347
      %p356 = scmp.eq.s32.totalorder %s47, 1
      %p357 = por %p355, %p356
      %p358 = scmp.ne.s32.totalorder %s347, %s348
      %p359 = scmp.eq.s32.totalorder %s47, 0
      %p360 = por %p358, %p359
      %p361 = scmp.ne.s32.totalorder %s347, %s348
      %p362 = scmp.eq.s32.totalorder %s48, 1
      %p363 = por %p361, %p362
      %p365 = scmp.ne.s32.totalorder %s348, %s364
      %p366 = scmp.eq.s32.totalorder %s48, 0
      %p367 = por %p365, %p366
      %s368 = ssub.s32 %s42, %s49
      %p369 = scmp.eq.s32.totalorder %s368, 0
      %s371 = sadd.s32 %s370, 1
      %s372 = scalar_select %p369, %s370, %s371
      %p375 = pneg %p369
      %p376 = scmp.eq.s32.totalorder %s42, 1
      %p377 = por %p375, %p376
      %p378 = scmp.ne.s32.totalorder %s370, %s373
      %p379 = scmp.eq.s32.totalorder %s42, 0
      %p380 = por %p378, %p379
      %p381 = scmp.ne.s32.totalorder %s370, %s373
      %p382 = scmp.eq.s32.totalorder %s47, 1
      %p383 = por %p381, %p382
      %p384 = scmp.ne.s32.totalorder %s373, %s374
      %p385 = scmp.eq.s32.totalorder %s47, 0
      %p386 = por %p384, %p385
      %p387 = scmp.ne.s32.totalorder %s373, %s374
      %p388 = scmp.eq.s32.totalorder %s48, 1
      %p389 = por %p387, %p388
      %p391 = scmp.ne.s32.totalorder %s374, %s390
      %p392 = scmp.eq.s32.totalorder %s48, 0
      %p393 = por %p391, %p392
      %p394 = scmp.le.s32.totalorder 1, %s42
      %p395 = scmp.lt.s32.totalorder %s42, 3
      %p396 = pnand %p394, %p395
      %p397 = pneg %p396
      // Predicated region
      $region9: #{tpu_custom_call.1} parent=5 // pred_check
        _
      $region10: #{tpu_custom_call.1} parent=5 // pred_check_branch
        %399 = sbr.rel (%p396) target = $region12
      $region11: #{tpu_custom_call.1} parent=5 // pred_region
        %s400 = ssub.s32 %s42, 1
        // Predicated region
        $region13: #{tpu_custom_call.1} parent=11 // pred_check
          %p401 = pneg %p115
        $region14: #{tpu_custom_call.1} parent=11 // pred_check_branch
          %403 = sbr.rel (%p401) target = $region16
        $region15: #{tpu_custom_call.1} parent=11 // pred_region
          %s405 = ssub.s32 2048, 2048
          %406 = vsyncadd [#allocation6], %s405
          %s407 = sshll.u32 [#allocation7], 4
          %s408 = int_to_ptr.vmem [resolvable:$true] %s407
          %413 = dma.hbm_to_vmem [thread:$0]  %s2, 2048, %s408, [#allocation6], 512, 512, 32
        $region16: #{tpu_custom_call.1} parent=11 // pred_fallthru
          _
        // Predicated region
        $region17: #{tpu_custom_call.1} parent=11 // pred_check
          %p414 = pneg %p136
        $region18: #{tpu_custom_call.1} parent=11 // pred_check_branch
          %416 = sbr.rel (%p414) target = $region20
        $region19: #{tpu_custom_call.1} parent=11 // pred_region
          _
        $region20: #{tpu_custom_call.1} parent=11 // pred_fallthru
          _
        // Predicated region
        $region21: #{tpu_custom_call.1} parent=11 // pred_check
          %p417 = pneg %p157
        $region22: #{tpu_custom_call.1} parent=11 // pred_check_branch
          %419 = sbr.rel (%p417) target = $region24
        $region23: #{tpu_custom_call.1} parent=11 // pred_region
          %s421 = ssub.s32 3072, 3072
          %422 = vsyncadd [#allocation9], %s421
          %s423 = sshll.u32 [#allocation8], 4
          %s424 = int_to_ptr.vmem [resolvable:$true] %s423
          %429 = dma.hbm_to_vmem [thread:$0]  %s4, 3072, %s424, [#allocation9], 64, 64, 4
        $region24: #{tpu_custom_call.1} parent=11 // pred_fallthru
          _
        // Predicated region
        $region25: #{tpu_custom_call.1} parent=11 // pred_check
          %p430 = pneg %p178
        $region26: #{tpu_custom_call.1} parent=11 // pred_check_branch
          %432 = sbr.rel (%p430) target = $region28
        $region27: #{tpu_custom_call.1} parent=11 // pred_region
          _
        $region28: #{tpu_custom_call.1} parent=11 // pred_fallthru
          _
      $region12: #{tpu_custom_call.1} parent=5 // pred_fallthru
        _
      %p433 = scmp.lt.s32.totalorder %s42, 2
      // Predicated region
      $region29: #{tpu_custom_call.1} parent=5 // pred_check
        %p434 = pneg %p433
      $region30: #{tpu_custom_call.1} parent=5 // pred_check_branch
        %436 = sbr.rel (%p434) target = $region32
      $region31: #{tpu_custom_call.1} parent=5 // pred_region
        // Predicated region
        $region33: #{tpu_custom_call.1} parent=31 // pred_check
          %p437 = pneg %p62
        $region34: #{tpu_custom_call.1} parent=31 // pred_check_branch
          %439 = sbr.rel (%p437) target = $region36
        $region35: #{tpu_custom_call.1} parent=31 // pred_region
          %s440 = sand.u32 %s52, 1
          %s441 = scalar_lea.sflag [#allocation3], %s440
          %s442 = sand.u32 %s52, 1
          %s443 = smul.addr %s442, 4
          %s444 = scalar_lea.vmem [#allocation2], %s443
          %s446 = ssub.s32 64, 64
          %447 = vsyncadd %s441, %s446
          %s448 = smul.addr %s42, 64
          %s449 = scalar_lea.hbm %s0, %s448
          %s451 = sshll.u32 %s444, 4
          %s452 = int_to_ptr.vmem [resolvable:$true] %s451
          %454 = dma.hbm_to_vmem [thread:$0]  %s449, 64, %s452, %s441
        $region36: #{tpu_custom_call.1} parent=31 // pred_fallthru
          _
        // Predicated region
        $region37: #{tpu_custom_call.1} parent=31 // pred_check
          %p455 = pneg %p88
        $region38: #{tpu_custom_call.1} parent=31 // pred_check_branch
          %457 = sbr.rel (%p455) target = $region40
        $region39: #{tpu_custom_call.1} parent=31 // pred_region
          %s458 = sand.u32 %s42, 1
          %s459 = scalar_lea.sflag [#allocation6], %s458
          %s460 = sand.u32 %s78, 1
          %s461 = smul.addr %s460, 12
          %s462 = scalar_lea.vmem [#allocation5], %s461
          %s464 = ssub.s32 192, 192
          %465 = vsyncadd %s459, %s464
          %s466 = smul.addr %s42, 3
          %s467 = smul.addr %s466, 64
          %s468 = scalar_lea.hbm %s1, %s467
          %s470 = sshll.u32 %s462, 4
          %s471 = int_to_ptr.vmem [resolvable:$true] %s470
          %473 = dma.hbm_to_vmem [thread:$0]  %s468, 192, %s471, %s459
        $region40: #{tpu_custom_call.1} parent=31 // pred_fallthru
          _
      $region32: #{tpu_custom_call.1} parent=5 // pred_fallthru
        _
      %p474 = scmp.le.s32.totalorder 1, %s42
      %p475 = scmp.lt.s32.totalorder %s42, 3
      %p476 = pnand %p474, %p475
      %p477 = pneg %p476
      // Predicated region
      $region41: #{tpu_custom_call.1} parent=5 // pred_check
        _
      $region42: #{tpu_custom_call.1} parent=5 // pred_check_branch
        %479 = sbr.rel (%p476) target = $region44
      $region43: #{tpu_custom_call.1} parent=5 // pred_region
        %s480 = ssub.s32 %s42, 1
        %s481 = sand.u32 %s55, 1
        %s482 = scalar_lea.sflag [#allocation3], %s481
        %s483 = sand.u32 %s55, 1
        %s484 = smul.addr %s483, 4
        %s485 = scalar_lea.vmem [#allocation2], %s484
        // Predicated region
        $region45: #{tpu_custom_call.1} parent=43 // pred_check
          %p486 = pneg %p68
        $region46: #{tpu_custom_call.1} parent=43 // pred_check_branch
          %488 = sbr.rel (%p486) target = $region48
        $region47: #{tpu_custom_call.1} parent=43 // pred_region
          %489 = dma.done %s482, 64
        $region48: #{tpu_custom_call.1} parent=43 // pred_fallthru
          _
        %s490 = sand.u32 %s47, 1
        %s491 = scalar_lea.sflag [#allocation6], %s490
        %s492 = sand.u32 %s81, 1
        %s493 = smul.addr %s492, 12
        %s494 = scalar_lea.vmem [#allocation5], %s493
        // Predicated region
        $region49: #{tpu_custom_call.1} parent=43 // pred_check
          %p495 = pneg %p94
        $region50: #{tpu_custom_call.1} parent=43 // pred_check_branch
          %497 = sbr.rel (%p495) target = $region52
        $region51: #{tpu_custom_call.1} parent=43 // pred_region
          %498 = dma.done %s491, 192
        $region52: #{tpu_custom_call.1} parent=43 // pred_fallthru
          _
        // Predicated region
        $region53: #{tpu_custom_call.1} parent=43 // pred_check
          %p499 = pneg %p115
        $region54: #{tpu_custom_call.1} parent=43 // pred_check_branch
          %501 = sbr.rel (%p499) target = $region56
        $region55: #{tpu_custom_call.1} parent=43 // pred_region
          %502 = dma.done [#allocation6], 2048
        $region56: #{tpu_custom_call.1} parent=43 // pred_fallthru
          _
        // Predicated region
        $region57: #{tpu_custom_call.1} parent=43 // pred_check
          %p503 = pneg %p157
        $region58: #{tpu_custom_call.1} parent=43 // pred_check_branch
          %505 = sbr.rel (%p503) target = $region60
        $region59: #{tpu_custom_call.1} parent=43 // pred_region
          %506 = dma.done [#allocation9], 3072
        $region60: #{tpu_custom_call.1} parent=43 // pred_fallthru
          _
        %s507 = sand.u32 %s55, 1
        %s508 = scalar_lea.sflag [#allocation3], %s507
        %s509 = sand.u32 %s55, 1
        %s510 = smul.addr %s509, 4
        %s511 = scalar_lea.vmem [#allocation2], %s510
        %p512 = pneg %p68
        %p513 = pneg %p65
        %s514 = sand.u32 %s47, 1
        %s515 = scalar_lea.sflag [#allocation6], %s514
        %s516 = sand.u32 %s81, 1
        %s517 = smul.addr %s516, 12
        %s518 = scalar_lea.vmem [#allocation5], %s517
        %p519 = pneg %p94
        %p520 = pneg %p91
        %p521 = pneg %p115
        %p522 = pneg %p112
        %p523 = pneg %p136
        %p524 = pneg %p133
        %p525 = pneg %p157
        %p526 = pneg %p154
        %p527 = pneg %p178
        %p528 = pneg %p175
        %p529 = pneg %p204
        %p530 = pneg %p201
        %s531 = sand.u32 %s191, 1
        %s532 = scalar_lea.sflag [#allocation4], %s531
        %s533 = sand.u32 %s191, 1
        %s534 = smul.addr %s533, 8
        %s535 = scalar_lea.vmem [#allocation10], %s534
        %p536 = pneg %p230
        %p537 = pneg %p227
        %s538 = sand.u32 %s47, 1
        %s539 = scalar_lea.sflag [#allocation12], %s538
        %s540 = sand.u32 %s217, 1
        %s541 = smul.addr %s540, 8
        %s542 = scalar_lea.vmem [#allocation11], %s541
        %p543 = pneg %p256
        %p544 = pneg %p253
        %s545 = sand.u32 %s47, 1
        %s546 = scalar_lea.sflag [#allocation12], %s545
        %s547 = sand.u32 %s243, 1
        %s548 = smul.addr %s547, 8
        %s549 = scalar_lea.vmem [#allocation13], %s548
        %p550 = pneg %p282
        %p551 = pneg %p279
        %s552 = sand.u32 %s47, 1
        %s553 = scalar_lea.sflag [#allocation15], %s552
        %s554 = sand.u32 %s269, 1
        %s555 = smul.addr %s554, 8
        %s556 = scalar_lea.vmem [#allocation14], %s555
        %p557 = pneg %p308
        %p558 = pneg %p305
        %s559 = sand.u32 %s47, 1
        %s560 = scalar_lea.sflag [#allocation15], %s559
        %s561 = sand.u32 %s295, 1
        %s562 = smul.addr %s561, 8
        %s563 = scalar_lea.vmem [#allocation16], %s562
        %p564 = pneg %p334
        %p565 = pneg %p331
        %s566 = sand.u32 %s47, 1
        %s567 = scalar_lea.sflag [#allocation18], %s566
        %s568 = sand.u32 %s321, 1
        %s569 = smul.addr %s568, 8
        %s570 = scalar_lea.vmem [#allocation17], %s569
        %p571 = pneg %p360
        %p572 = pneg %p357
        %s573 = sand.u32 %s47, 1
        %s574 = scalar_lea.sflag [#allocation18], %s573
        %s575 = sand.u32 %s347, 1
        %s576 = smul.addr %s575, 8
        %s577 = scalar_lea.vmem [#allocation19], %s576
        %p578 = pneg %p386
        %p579 = pneg %p383
        %s580 = sand.u32 %s373, 1
        %s581 = scalar_lea.sflag [#allocation21], %s580
        %s582 = sand.u32 %s373, 1
        %s583 = smul.addr %s582, 8
        %s584 = scalar_lea.vmem [#allocation20], %s583
        %v586 = vld [vmem:[%s485] sm:$0xf]
        %v587 = vld [vmem:[#allocation7] sm:$0xff]
        %v588 = vld [vmem:[#allocation7 + $0x8] sm:$0xff]
        %v589 = vld [vmem:[#allocation7 + $0x10] sm:$0xff]
        %v590 = vld [vmem:[#allocation7 + $0x18] sm:$0xff]
        %v591 = vld [vmem:[#allocation7 + $0x20] sm:$0xff]
        %v592 = vld [vmem:[#allocation7 + $0x28] sm:$0xff]
        %v593 = vld [vmem:[#allocation7 + $0x30] sm:$0xff]
        %v594 = vld [vmem:[#allocation7 + $0x38] sm:$0xff]
        %v595 = vld [vmem:[#allocation7 + $0x40] sm:$0xff]
        %v596 = vld [vmem:[#allocation7 + $0x48] sm:$0xff]
        %v597 = vld [vmem:[#allocation7 + $0x50] sm:$0xff]
        %v598 = vld [vmem:[#allocation7 + $0x58] sm:$0xff]
        %v599 = vld [vmem:[#allocation7 + $0x60] sm:$0xff]
        %v600 = vld [vmem:[#allocation7 + $0x68] sm:$0xff]
        %v601 = vld [vmem:[#allocation7 + $0x70] sm:$0xff]
        %v602 = vld [vmem:[#allocation7 + $0x78] sm:$0xff]
        %v603 = vld [vmem:[%s3] sm:$0xff]
        %v605 = vlaneseq
        %v606 = vshrl.u32 %v605, 7
        %v607 = vsub.s32 0, %v606
        %v608 = vrot.slane %v603, %v607
        %v609 = vlaneseq
        %v610 = vshrl.u32 %v609, 7
        %v611 = vsub.s32 1, %v610
        %v612 = vrot.slane %v603, %v611
        %v613 = vlaneseq
        %v614 = vshrl.u32 %v613, 7
        %v615 = vsub.s32 2, %v614
        %v616 = vrot.slane %v603, %v615
        %v617 = vlaneseq
        %v618 = vshrl.u32 %v617, 7
        %v619 = vsub.s32 3, %v618
        %v620 = vrot.slane %v603, %v619
        %v621 = vlaneseq
        %v622 = vshrl.u32 %v621, 7
        %v623 = vsub.s32 4, %v622
        %v624 = vrot.slane %v603, %v623
        %v625 = vlaneseq
        %v626 = vshrl.u32 %v625, 7
        %v627 = vsub.s32 5, %v626
        %v628 = vrot.slane %v603, %v627
        %v629 = vlaneseq
        %v630 = vshrl.u32 %v629, 7
        %v631 = vsub.s32 6, %v630
        %v632 = vrot.slane %v603, %v631
        %v633 = vlaneseq
        %v634 = vshrl.u32 %v633, 7
        %v635 = vsub.s32 7, %v634
        %v636 = vrot.slane %v603, %v635
        %v661 = vunpack.c.l.b16 %v587
        %v662 = vunpack.c.h.b16 %v587
        %v663 = vunpack.c.l.b16 %v588
        %v664 = vunpack.c.h.b16 %v588
        %v665 = vunpack.c.l.b16 %v589
        %v666 = vunpack.c.h.b16 %v589
        %v667 = vunpack.c.l.b16 %v590
        %v668 = vunpack.c.h.b16 %v590
        %v669 = vunpack.c.l.b16 %v591
        %v670 = vunpack.c.h.b16 %v591
        %v671 = vunpack.c.l.b16 %v592
        %v672 = vunpack.c.h.b16 %v592
        %v673 = vunpack.c.l.b16 %v593
        %v674 = vunpack.c.h.b16 %v593
        %v675 = vunpack.c.l.b16 %v594
        %v676 = vunpack.c.h.b16 %v594
        %v677 = vunpack.c.l.b16 %v595
        %v678 = vunpack.c.h.b16 %v595
        %v679 = vunpack.c.l.b16 %v596
        %v680 = vunpack.c.h.b16 %v596
        %v681 = vunpack.c.l.b16 %v597
        %v682 = vunpack.c.h.b16 %v597
        %v683 = vunpack.c.l.b16 %v598
        %v684 = vunpack.c.h.b16 %v598
        %v685 = vunpack.c.l.b16 %v599
        %v686 = vunpack.c.h.b16 %v599
        %v687 = vunpack.c.l.b16 %v600
        %v688 = vunpack.c.h.b16 %v600
        %v689 = vunpack.c.l.b16 %v601
        %v690 = vunpack.c.h.b16 %v601
        %v691 = vunpack.c.l.b16 %v602
        %v692 = vunpack.c.h.b16 %v602
        %v693 = vpack.c.b16 %v669, %v661
        %v694 = vpack.c.b16 %v670, %v662
        %v695 = vpack.c.b16 %v671, %v663
        %v696 = vpack.c.b16 %v672, %v664
        %v697 = vpack.c.b16 %v673, %v665
        %v698 = vpack.c.b16 %v674, %v666
        %v699 = vpack.c.b16 %v675, %v667
        %v700 = vpack.c.b16 %v676, %v668
        %v701 = vpack.c.b16 %v685, %v677
        %v702 = vpack.c.b16 %v686, %v678
        %v703 = vpack.c.b16 %v687, %v679
        %v704 = vpack.c.b16 %v688, %v680
        %v705 = vpack.c.b16 %v689, %v681
        %v706 = vpack.c.b16 %v690, %v682
        %v707 = vpack.c.b16 %v691, %v683
        %v708 = vpack.c.b16 %v692, %v684
        %vm725 = vcmask 261120
        %v727 = vsel %vm725, %v586, 0
        %729 = vmatprep.subr.bf16.mxu0 %v694
        %730 = vmatpush1.bf16.msra.mxu0 %v693
        %731 = vmatprep.subr.bf16.mxu0 %v702
        %732 = vmatpush1.bf16.msra.mxu0 %v701
        %733 = vmatprep.subr.bf16.mxu0 0
        %734 = vmatpush1.bf16.msra.mxu0 0
        %735 = vmatprep.subr.bf16.mxu0 0
        %736 = vmatpush1.bf16.msra.mxu0 0
        %737 = vmatprep.subr.bf16.mxu0 0
        %738 = vmatpush1.bf16.msra.mxu0 0
        %739 = vmatprep.subr.bf16.mxu0 0
        %740 = vmatpush1.bf16.msra.mxu0 0
        %741 = vmatprep.subr.bf16.mxu0 0
        %742 = vmatpush1.bf16.msra.mxu0 0
        %743 = vmatprep.subr.bf16.mxu0 0
        %744 = vmatpush1.bf16.msra.mxu0 0
        %745 = vmatprep.subr.bf16.mxu0 0
        %746 = vmatpush1.bf16.msra.mxu0 0
        %747 = vmatprep.subr.bf16.mxu0 0
        %748 = vmatpush1.bf16.msra.mxu0 0
        %749 = vmatprep.subr.bf16.mxu0 0
        %750 = vmatpush1.bf16.msra.mxu0 0
        %751 = vmatprep.subr.bf16.mxu0 0
        %752 = vmatpush1.bf16.msra.mxu0 0
        %753 = vmatprep.subr.bf16.mxu0 0
        %754 = vmatpush1.bf16.msra.mxu0 0
        %755 = vmatprep.subr.bf16.mxu0 0
        %756 = vmatpush1.bf16.msra.mxu0 0
        %757 = vmatprep.subr.bf16.mxu0 0
        %758 = vmatpush1.bf16.msra.mxu0 0
        %759 = vmatprep.subr.bf16.mxu0 0
        %760 = vmatpush1.bf16.msra.mxu0 0
        %761 = vmatprep.mubr.bf16.mxu0 0
        %762 = vmatmul.mubr.bf16.gmra.mrb[0].mxu0 %v727
        %v763 = vpop.f32.mrb[0].mxu0
        %v764 = vadd.f32 %v608, %v763
        %v765 = vpop.f32.mrb[0].mxu0
        %v766 = vadd.f32 %v612, %v765
        %v767 = vpop.f32.mrb[0].mxu0
        %v768 = vpop.f32.mrb[0].mxu0
        %769 = vdwg.mxu0
        %770 = vmatprep.subr.bf16.mxu0 %v696
        %771 = vmatpush1.bf16.msra.mxu0 %v695
        %772 = vmatprep.subr.bf16.mxu0 %v704
        %773 = vmatpush1.bf16.msra.mxu0 %v703
        %774 = vmatprep.subr.bf16.mxu0 0
        %775 = vmatpush1.bf16.msra.mxu0 0
        %776 = vmatprep.subr.bf16.mxu0 0
        %777 = vmatpush1.bf16.msra.mxu0 0
        %778 = vmatprep.subr.bf16.mxu0 0
        %779 = vmatpush1.bf16.msra.mxu0 0
        %780 = vmatprep.subr.bf16.mxu0 0
        %781 = vmatpush1.bf16.msra.mxu0 0
        %782 = vmatprep.subr.bf16.mxu0 0
        %783 = vmatpush1.bf16.msra.mxu0 0
        %784 = vmatprep.subr.bf16.mxu0 0
        %785 = vmatpush1.bf16.msra.mxu0 0
        %786 = vmatprep.subr.bf16.mxu0 0
        %787 = vmatpush1.bf16.msra.mxu0 0
        %788 = vmatprep.subr.bf16.mxu0 0
        %789 = vmatpush1.bf16.msra.mxu0 0
        %790 = vmatprep.subr.bf16.mxu0 0
        %791 = vmatpush1.bf16.msra.mxu0 0
        %792 = vmatprep.subr.bf16.mxu0 0
        %793 = vmatpush1.bf16.msra.mxu0 0
        %794 = vmatprep.subr.bf16.mxu0 0
        %795 = vmatpush1.bf16.msra.mxu0 0
        %796 = vmatprep.subr.bf16.mxu0 0
        %797 = vmatpush1.bf16.msra.mxu0 0
        %798 = vmatprep.subr.bf16.mxu0 0
        %799 = vmatpush1.bf16.msra.mxu0 0
        %800 = vmatprep.subr.bf16.mxu0 0
        %801 = vmatpush1.bf16.msra.mxu0 0
        %802 = vmatprep.mubr.bf16.mxu0 0
        %803 = vmatmul.mubr.bf16.gmra.mrb[0].mxu0 %v727
        %v804 = vpop.f32.mrb[0].mxu0
        %v805 = vadd.f32 %v616, %v804
        %v806 = vpop.f32.mrb[0].mxu0
        %v807 = vadd.f32 %v620, %v806
        %v808 = vpop.f32.mrb[0].mxu0
        %v809 = vpop.f32.mrb[0].mxu0
        %810 = vdwg.mxu0
        %811 = vmatprep.subr.bf16.mxu0 %v698
        %812 = vmatpush1.bf16.msra.mxu0 %v697
        %813 = vmatprep.subr.bf16.mxu0 %v706
        %814 = vmatpush1.bf16.msra.mxu0 %v705
        %815 = vmatprep.subr.bf16.mxu0 0
        %816 = vmatpush1.bf16.msra.mxu0 0
        %817 = vmatprep.subr.bf16.mxu0 0
        %818 = vmatpush1.bf16.msra.mxu0 0
        %819 = vmatprep.subr.bf16.mxu0 0
        %820 = vmatpush1.bf16.msra.mxu0 0
        %821 = vmatprep.subr.bf16.mxu0 0
        %822 = vmatpush1.bf16.msra.mxu0 0
        %823 = vmatprep.subr.bf16.mxu0 0
        %824 = vmatpush1.bf16.msra.mxu0 0
        %825 = vmatprep.subr.bf16.mxu0 0
        %826 = vmatpush1.bf16.msra.mxu0 0
        %827 = vmatprep.subr.bf16.mxu0 0
        %828 = vmatpush1.bf16.msra.mxu0 0
        %829 = vmatprep.subr.bf16.mxu0 0
        %830 = vmatpush1.bf16.msra.mxu0 0
        %831 = vmatprep.subr.bf16.mxu0 0
        %832 = vmatpush1.bf16.msra.mxu0 0
        %833 = vmatprep.subr.bf16.mxu0 0
        %834 = vmatpush1.bf16.msra.mxu0 0
        %835 = vmatprep.subr.bf16.mxu0 0
        %836 = vmatpush1.bf16.msra.mxu0 0
        %837 = vmatprep.subr.bf16.mxu0 0
        %838 = vmatpush1.bf16.msra.mxu0 0
        %839 = vmatprep.subr.bf16.mxu0 0
        %840 = vmatpush1.bf16.msra.mxu0 0
        %841 = vmatprep.subr.bf16.mxu0 0
        %842 = vmatpush1.bf16.msra.mxu0 0
        %843 = vmatprep.mubr.bf16.mxu0 0
        %844 = vmatmul.mubr.bf16.gmra.mrb[0].mxu0 %v727
        %v845 = vpop.f32.mrb[0].mxu0
        %v846 = vadd.f32 %v624, %v845
        %v847 = vpop.f32.mrb[0].mxu0
        %v848 = vadd.f32 %v628, %v847
        %v849 = vpop.f32.mrb[0].mxu0
        %v850 = vpop.f32.mrb[0].mxu0
        %851 = vdwg.mxu0
        %852 = vmatprep.subr.bf16.mxu0 %v700
        %853 = vmatpush1.bf16.msra.mxu0 %v699
        %854 = vmatprep.subr.bf16.mxu0 %v708
        %855 = vmatpush1.bf16.msra.mxu0 %v707
        %856 = vmatprep.subr.bf16.mxu0 0
        %857 = vmatpush1.bf16.msra.mxu0 0
        %858 = vmatprep.subr.bf16.mxu0 0
        %859 = vmatpush1.bf16.msra.mxu0 0
        %860 = vmatprep.subr.bf16.mxu0 0
        %861 = vmatpush1.bf16.msra.mxu0 0
        %862 = vmatprep.subr.bf16.mxu0 0
        %863 = vmatpush1.bf16.msra.mxu0 0
        %864 = vmatprep.subr.bf16.mxu0 0
        %865 = vmatpush1.bf16.msra.mxu0 0
        %866 = vmatprep.subr.bf16.mxu0 0
        %867 = vmatpush1.bf16.msra.mxu0 0
        %868 = vmatprep.subr.bf16.mxu0 0
        %869 = vmatpush1.bf16.msra.mxu0 0
        %870 = vmatprep.subr.bf16.mxu0 0
        %871 = vmatpush1.bf16.msra.mxu0 0
        %872 = vmatprep.subr.bf16.mxu0 0
        %873 = vmatpush1.bf16.msra.mxu0 0
        %874 = vmatprep.subr.bf16.mxu0 0
        %875 = vmatpush1.bf16.msra.mxu0 0
        %876 = vmatprep.subr.bf16.mxu0 0
        %877 = vmatpush1.bf16.msra.mxu0 0
        %878 = vmatprep.subr.bf16.mxu0 0
        %879 = vmatpush1.bf16.msra.mxu0 0
        %880 = vmatprep.subr.bf16.mxu0 0
        %881 = vmatpush1.bf16.msra.mxu0 0
        %882 = vmatprep.subr.bf16.mxu0 0
        %883 = vmatpush1.bf16.msra.mxu0 0
        %884 = vmatprep.mubr.bf16.mxu0 0
        %885 = vmatmul.mubr.bf16.gmra.mrb[0].mxu0 %v727
        %v886 = vpop.f32.mrb[0].mxu0
        %v887 = vadd.f32 %v632, %v886
        %v888 = vpop.f32.mrb[0].mxu0
        %v889 = vadd.f32 %v636, %v888
        %v890 = vpop.f32.mrb[0].mxu0
        %v891 = vpop.f32.mrb[0].mxu0
        %892 = vdwg.mxu0
        %v893 = vld [vmem:[%s494] sm:$0xff]
        %v894 = vld [vmem:[%s494 + $0x8] sm:$0xf]
        %v895 = vld [vmem:[#allocation8] sm:$0xf]
        %v896 = vld [vmem:[#allocation8 + $0x4] sm:$0xf]
        %v897 = vld [vmem:[#allocation8 + $0x8] sm:$0xf]
        %v898 = vld [vmem:[#allocation8 + $0xc] sm:$0xf]
        %v899 = vld [vmem:[#allocation8 + $0x10] sm:$0xf]
        %v900 = vld [vmem:[#allocation8 + $0x14] sm:$0xf]
        %v901 = vld [vmem:[#allocation8 + $0x18] sm:$0xf]
        %v902 = vld [vmem:[#allocation8 + $0x1c] sm:$0xf]
        %v903 = vld [vmem:[#allocation8 + $0x20] sm:$0xf]
        %v904 = vld [vmem:[#allocation8 + $0x24] sm:$0xf]
        %v905 = vld [vmem:[#allocation8 + $0x28] sm:$0xf]
        %v906 = vld [vmem:[#allocation8 + $0x2c] sm:$0xf]
        %v907 = vld [vmem:[#allocation8 + $0x30] sm:$0xf]
        %v908 = vld [vmem:[#allocation8 + $0x34] sm:$0xf]
        %v909 = vld [vmem:[#allocation8 + $0x38] sm:$0xf]
        %v910 = vld [vmem:[#allocation8 + $0x3c] sm:$0xf]
        %v911 = vld [vmem:[#allocation8 + $0x40] sm:$0xf]
        %v912 = vld [vmem:[#allocation8 + $0x44] sm:$0xf]
        %v913 = vld [vmem:[#allocation8 + $0x48] sm:$0xf]
        %v914 = vld [vmem:[#allocation8 + $0x4c] sm:$0xf]
        %v915 = vld [vmem:[#allocation8 + $0x50] sm:$0xf]
        %v916 = vld [vmem:[#allocation8 + $0x54] sm:$0xf]
        %v917 = vld [vmem:[#allocation8 + $0x58] sm:$0xf]
        %v918 = vld [vmem:[#allocation8 + $0x5c] sm:$0xf]
        %v919 = vld [vmem:[#allocation8 + $0x60] sm:$0xf]
        %v920 = vld [vmem:[#allocation8 + $0x64] sm:$0xf]
        %v921 = vld [vmem:[#allocation8 + $0x68] sm:$0xf]
        %v922 = vld [vmem:[#allocation8 + $0x6c] sm:$0xf]
        %v923 = vld [vmem:[#allocation8 + $0x70] sm:$0xf]
        %v924 = vld [vmem:[#allocation8 + $0x74] sm:$0xf]
        %v925 = vld [vmem:[#allocation8 + $0x78] sm:$0xf]
        %v926 = vld [vmem:[#allocation8 + $0x7c] sm:$0xf]
        %v927 = vld [vmem:[#allocation8 + $0x80] sm:$0xf]
        %v928 = vld [vmem:[#allocation8 + $0x84] sm:$0xf]
        %v929 = vld [vmem:[#allocation8 + $0x88] sm:$0xf]
        %v930 = vld [vmem:[#allocation8 + $0x8c] sm:$0xf]
        %v931 = vld [vmem:[#allocation8 + $0x90] sm:$0xf]
        %v932 = vld [vmem:[#allocation8 + $0x94] sm:$0xf]
        %v933 = vld [vmem:[#allocation8 + $0x98] sm:$0xf]
        %v934 = vld [vmem:[#allocation8 + $0x9c] sm:$0xf]
        %v935 = vld [vmem:[#allocation8 + $0xa0] sm:$0xf]
        %v936 = vld [vmem:[#allocation8 + $0xa4] sm:$0xf]
        %v937 = vld [vmem:[#allocation8 + $0xa8] sm:$0xf]
        %v938 = vld [vmem:[#allocation8 + $0xac] sm:$0xf]
        %v939 = vld [vmem:[#allocation8 + $0xb0] sm:$0xf]
        %v940 = vld [vmem:[#allocation8 + $0xb4] sm:$0xf]
        %v941 = vld [vmem:[#allocation8 + $0xb8] sm:$0xf]
        %v942 = vld [vmem:[#allocation8 + $0xbc] sm:$0xf]
        %v945 = vunpack.c.l.b16 %v893
        %v946 = vunpack.c.h.b16 %v893
        %v947 = vunpack.c.l.b16 %v894
        %v948 = vpack.c.b16 %v945, %v945
        %v949 = vpack.c.b16 %v946, %v946
        %v950 = vpack.c.b16 %v947, %v947
        %v1002 = vunpack.c.l.b16 %v895
        %v1003 = vunpack.c.l.b16 %v896
        %v1004 = vunpack.c.l.b16 %v897
        %v1005 = vunpack.c.l.b16 %v898
        %v1006 = vunpack.c.l.b16 %v899
        %v1007 = vunpack.c.l.b16 %v900
        %v1008 = vunpack.c.l.b16 %v901
        %v1009 = vunpack.c.l.b16 %v902
        %v1010 = vunpack.c.l.b16 %v903
        %v1011 = vunpack.c.l.b16 %v904
        %v1012 = vunpack.c.l.b16 %v905
        %v1013 = vunpack.c.l.b16 %v906
        %v1014 = vunpack.c.l.b16 %v907
        %v1015 = vunpack.c.l.b16 %v908
        %v1016 = vunpack.c.l.b16 %v909
        %v1017 = vunpack.c.l.b16 %v910
        %v1018 = vunpack.c.l.b16 %v911
        %v1019 = vunpack.c.l.b16 %v912
        %v1020 = vunpack.c.l.b16 %v913
        %v1021 = vunpack.c.l.b16 %v914
        %v1022 = vunpack.c.l.b16 %v915
        %v1023 = vunpack.c.l.b16 %v916
        %v1024 = vunpack.c.l.b16 %v917
        %v1025 = vunpack.c.l.b16 %v918
        %v1026 = vunpack.c.l.b16 %v919
        %v1027 = vunpack.c.l.b16 %v920
        %v1028 = vunpack.c.l.b16 %v921
        %v1029 = vunpack.c.l.b16 %v922
        %v1030 = vunpack.c.l.b16 %v923
        %v1031 = vunpack.c.l.b16 %v924
        %v1032 = vunpack.c.l.b16 %v925
        %v1033 = vunpack.c.l.b16 %v926
        %v1034 = vunpack.c.l.b16 %v927
        %v1035 = vunpack.c.l.b16 %v928
        %v1036 = vunpack.c.l.b16 %v929
        %v1037 = vunpack.c.l.b16 %v930
        %v1038 = vunpack.c.l.b16 %v931
        %v1039 = vunpack.c.l.b16 %v932
        %v1040 = vunpack.c.l.b16 %v933
        %v1041 = vunpack.c.l.b16 %v934
        %v1042 = vunpack.c.l.b16 %v935
        %v1043 = vunpack.c.l.b16 %v936
        %v1044 = vunpack.c.l.b16 %v937
        %v1045 = vunpack.c.l.b16 %v938
        %v1046 = vunpack.c.l.b16 %v939
        %v1047 = vunpack.c.l.b16 %v940
        %v1048 = vunpack.c.l.b16 %v941
        %v1049 = vunpack.c.l.b16 %v942
        %v1050 = vpack.c.b16 %v1003, %v1002
        %v1051 = vpack.c.b16 %v1005, %v1004
        %v1052 = vpack.c.b16 %v1007, %v1006
        %v1053 = vpack.c.b16 %v1009, %v1008
        %v1054 = vpack.c.b16 %v1011, %v1010
        %v1055 = vpack.c.b16 %v1013, %v1012
        %v1056 = vpack.c.b16 %v1015, %v1014
        %v1057 = vpack.c.b16 %v1017, %v1016
        %v1058 = vpack.c.b16 %v1019, %v1018
        %v1059 = vpack.c.b16 %v1021, %v1020
        %v1060 = vpack.c.b16 %v1023, %v1022
        %v1061 = vpack.c.b16 %v1025, %v1024
        %v1062 = vpack.c.b16 %v1027, %v1026
        %v1063 = vpack.c.b16 %v1029, %v1028
        %v1064 = vpack.c.b16 %v1031, %v1030
        %v1065 = vpack.c.b16 %v1033, %v1032
        %v1066 = vpack.c.b16 %v1035, %v1034
        %v1067 = vpack.c.b16 %v1037, %v1036
        %v1068 = vpack.c.b16 %v1039, %v1038
        %v1069 = vpack.c.b16 %v1041, %v1040
        %v1070 = vpack.c.b16 %v1043, %v1042
        %v1071 = vpack.c.b16 %v1045, %v1044
        %v1072 = vpack.c.b16 %v1047, %v1046
        %v1073 = vpack.c.b16 %v1049, %v1048
        %1098 = vmatprep.subr.bf16.mxu0 0
        %1099 = vmatpush1.bf16.msra.mxu0 %v1050
        %1100 = vmatprep.subr.bf16.mxu0 0
        %1101 = vmatpush1.bf16.msra.mxu0 %v1051
        %1102 = vmatprep.subr.bf16.mxu0 0
        %1103 = vmatpush1.bf16.msra.mxu0 %v1052
        %1104 = vmatprep.subr.bf16.mxu0 0
        %1105 = vmatpush1.bf16.msra.mxu0 %v1053
        %1106 = vmatprep.subr.bf16.mxu0 0
        %1107 = vmatpush1.bf16.msra.mxu0 %v1054
        %1108 = vmatprep.subr.bf16.mxu0 0
        %1109 = vmatpush1.bf16.msra.mxu0 %v1055
        %1110 = vmatprep.subr.bf16.mxu0 0
        %1111 = vmatpush1.bf16.msra.mxu0 %v1056
        %1112 = vmatprep.subr.bf16.mxu0 0
        %1113 = vmatpush1.bf16.msra.mxu0 %v1057
        %1114 = vmatprep.subr.bf16.mxu0 0
        %1115 = vmatpush1.bf16.msra.mxu0 %v1058
        %1116 = vmatprep.subr.bf16.mxu0 0
        %1117 = vmatpush1.bf16.msra.mxu0 %v1059
        %1118 = vmatprep.subr.bf16.mxu0 0
        %1119 = vmatpush1.bf16.msra.mxu0 %v1060
        %1120 = vmatprep.subr.bf16.mxu0 0
        %1121 = vmatpush1.bf16.msra.mxu0 %v1061
        %1122 = vmatprep.subr.bf16.mxu0 0
        %1123 = vmatpush1.bf16.msra.mxu0 %v1062
        %1124 = vmatprep.subr.bf16.mxu0 0
        %1125 = vmatpush1.bf16.msra.mxu0 %v1063
        %1126 = vmatprep.subr.bf16.mxu0 0
        %1127 = vmatpush1.bf16.msra.mxu0 %v1064
        %1128 = vmatprep.subr.bf16.mxu0 0
        %1129 = vmatpush1.bf16.msra.mxu0 %v1065
        %1130 = vmatprep.mubr.bf16.mxu0 %v949
        %1131 = vmatmul.mubr.bf16.gmra.mrb[0].mxu0 %v948
        %v1132 = vpop.f32.mrb[0].mxu0
        %v1133 = vadd.f32 0.0, %v1132
        %v1134 = vpop.f32.mrb[0].mxu0
        %v1135 = vpop.f32.mrb[0].mxu0
        %v1136 = vpop.f32.mrb[0].mxu0
        %1137 = vdwg.mxu0
        %1138 = vmatprep.subr.bf16.mxu0 0
        %1139 = vmatpush1.bf16.msra.mxu0 %v1066
        %1140 = vmatprep.subr.bf16.mxu0 0
        %1141 = vmatpush1.bf16.msra.mxu0 %v1067
        %1142 = vmatprep.subr.bf16.mxu0 0
        %1143 = vmatpush1.bf16.msra.mxu0 %v1068
        %1144 = vmatprep.subr.bf16.mxu0 0
        %1145 = vmatpush1.bf16.msra.mxu0 %v1069
        %1146 = vmatprep.subr.bf16.mxu0 0
        %1147 = vmatpush1.bf16.msra.mxu0 %v1070
        %1148 = vmatprep.subr.bf16.mxu0 0
        %1149 = vmatpush1.bf16.msra.mxu0 %v1071
        %1150 = vmatprep.subr.bf16.mxu0 0
        %1151 = vmatpush1.bf16.msra.mxu0 %v1072
        %1152 = vmatprep.subr.bf16.mxu0 0
        %1153 = vmatpush1.bf16.msra.mxu0 %v1073
        %1154 = vmatprep.subr.bf16.mxu0 0
        %1155 = vmatpush1.bf16.msra.mxu0 0
        %1156 = vmatprep.subr.bf16.mxu0 0
        %1157 = vmatpush1.bf16.msra.mxu0 0
        %1158 = vmatprep.subr.bf16.mxu0 0
        %1159 = vmatpush1.bf16.msra.mxu0 0
        %1160 = vmatprep.subr.bf16.mxu0 0
        %1161 = vmatpush1.bf16.msra.mxu0 0
        %1162 = vmatprep.subr.bf16.mxu0 0
        %1163 = vmatpush1.bf16.msra.mxu0 0
        %1164 = vmatprep.subr.bf16.mxu0 0
        %1165 = vmatpush1.bf16.msra.mxu0 0
        %1166 = vmatprep.subr.bf16.mxu0 0
        %1167 = vmatpush1.bf16.msra.mxu0 0
        %1168 = vmatprep.subr.bf16.mxu0 0
        %1169 = vmatpush1.bf16.msra.mxu0 0
        %1170 = vmatprep.mubr.bf16.mxu0 0
        %1171 = vmatmul.mubr.bf16.gmra.mrb[0].mxu0 %v950
        %v1172 = vpop.f32.mrb[0].mxu0
        %v1173 = vadd.f32 %v1133, %v1172
        %v1174 = vpop.f32.mrb[0].mxu0
        %v1175 = vpop.f32.mrb[0].mxu0
        %v1176 = vpop.f32.mrb[0].mxu0
        %1177 = vdwg.mxu0
        %v1178 = vmul.f32 %v1173, 0.33333334
        %v1179 = vld [vmem:[%s5] sm:$0x1]
        %v1181 = vlaneseq
        %v1182 = vshrl.u32 %v1181, 7
        %v1183 = vsub.s32 0, %v1182
        %v1184 = vrot.slane %v1179, %v1183
        %v1186 = vadd.f32 %v1178, %v1184
        %v1187 = vadd.f32 %v766, %v1186
        %v1188 = vlaneseq
        %v1189 = vand.u32 %v1188, 127
        %vm1190 = vcmp.lt.s32.totalorder %v1189, 21
        %v1191 = vsel %vm1190, 1, 0
        %vm1192 = vcmp.eq.s32.totalorder %v1191, 1
        %v1193 = vsel %vm1192, %v764, -1e+30
        %1194 = vmax.xlane.f32.xlu0 %v1193
        %v1195 = vpop.xlane.xlu0 %1194
        %v1196 = vsub.f32 %v764, %v1195
        %v1197 = vmul.f32 %v1196, 1.442695
        %v1198 = vpow.pop %v1197
        %v1199 = vsel %vm1192, %v1198, 0.0
        %1200 = vadd.xlane.f32.xlu0 %v1199
        %v1201 = vpop.xlane.xlu0 %1200
        %v1202 = vrcp.pop %v1201
        %v1203 = vmul.f32 %v1199, %v1202
        %v1204 = vsel %vm1192, %v805, -1e+30
        %1205 = vmax.xlane.f32.xlu0 %v1204
        %v1206 = vpop.xlane.xlu0 %1205
        %v1207 = vsub.f32 %v805, %v1206
        %v1208 = vmul.f32 %v1207, 1.442695
        %v1209 = vpow.pop %v1208
        %v1210 = vsel %vm1192, %v1209, 0.0
        %1211 = vadd.xlane.f32.xlu0 %v1210
        %v1212 = vpop.xlane.xlu0 %1211
        %v1213 = vrcp.pop %v1212
        %v1214 = vmul.f32 %v1210, %v1213
        %v1215 = vsel %vm1192, %v807, -1e+30
        %1216 = vmax.xlane.f32.xlu0 %v1215
        %v1217 = vpop.xlane.xlu0 %1216
        %v1218 = vsub.f32 %v807, %v1217
        %v1219 = vmul.f32 %v1218, 1.442695
        %v1220 = vpow.pop %v1219
        %v1221 = vsel %vm1192, %v1220, 0.0
        %1222 = vadd.xlane.f32.xlu0 %v1221
        %v1223 = vpop.xlane.xlu0 %1222
        %v1224 = vrcp.pop %v1223
        %v1225 = vmul.f32 %v1221, %v1224
        %v1226 = vsel %vm1192, %v846, -1e+30
        %1227 = vmax.xlane.f32.xlu0 %v1226
        %v1228 = vpop.xlane.xlu0 %1227
        %v1229 = vsub.f32 %v846, %v1228
        %v1230 = vmul.f32 %v1229, 1.442695
        %v1231 = vpow.pop %v1230
        %v1232 = vsel %vm1192, %v1231, 0.0
        %1233 = vadd.xlane.f32.xlu0 %v1232
        %v1234 = vpop.xlane.xlu0 %1233
        %v1235 = vrcp.pop %v1234
        %v1236 = vmul.f32 %v1232, %v1235
        %1237 = vst [vmem:[%s535] sm:$0xff] %v1203
        %1238 = vst [vmem:[%s542] sm:$0xff] %v1187
        %1239 = vst [vmem:[%s549] sm:$0xff] %v1214
        %1240 = vst [vmem:[%s556] sm:$0xff] %v1225
        %1241 = vst [vmem:[%s563] sm:$0xff] %v1236
        %1242 = vst [vmem:[%s570] sm:$0xff] %v848
        %1243 = vst [vmem:[%s577] sm:$0xff] %v887
        %1244 = vst [vmem:[%s584] sm:$0xff] %v889
        %s1245 = sand.u32 %s191, 1
        %s1246 = scalar_lea.sflag [#allocation4], %s1245
        %s1247 = sand.u32 %s191, 1
        %s1248 = smul.addr %s1247, 8
        %s1249 = scalar_lea.vmem [#allocation10], %s1248
        %s1250 = sand.u32 %s47, 1
        %s1251 = scalar_lea.sflag [#allocation12], %s1250
        %s1252 = sand.u32 %s217, 1
        %s1253 = smul.addr %s1252, 8
        %s1254 = scalar_lea.vmem [#allocation11], %s1253
        %s1255 = sand.u32 %s47, 1
        %s1256 = scalar_lea.sflag [#allocation12], %s1255
        %s1257 = sand.u32 %s243, 1
        %s1258 = smul.addr %s1257, 8
        %s1259 = scalar_lea.vmem [#allocation13], %s1258
        %s1260 = sand.u32 %s47, 1
        %s1261 = scalar_lea.sflag [#allocation15], %s1260
        %s1262 = sand.u32 %s269, 1
        %s1263 = smul.addr %s1262, 8
        %s1264 = scalar_lea.vmem [#allocation14], %s1263
        %s1265 = sand.u32 %s47, 1
        %s1266 = scalar_lea.sflag [#allocation15], %s1265
        %s1267 = sand.u32 %s295, 1
        %s1268 = smul.addr %s1267, 8
        %s1269 = scalar_lea.vmem [#allocation16], %s1268
        %s1270 = sand.u32 %s47, 1
        %s1271 = scalar_lea.sflag [#allocation18], %s1270
        %s1272 = sand.u32 %s321, 1
        %s1273 = smul.addr %s1272, 8
        %s1274 = scalar_lea.vmem [#allocation17], %s1273
        %s1275 = sand.u32 %s47, 1
        %s1276 = scalar_lea.sflag [#allocation18], %s1275
        %s1277 = sand.u32 %s347, 1
        %s1278 = smul.addr %s1277, 8
        %s1279 = scalar_lea.vmem [#allocation19], %s1278
        %s1280 = sand.u32 %s373, 1
        %s1281 = scalar_lea.sflag [#allocation21], %s1280
        %s1282 = sand.u32 %s373, 1
        %s1283 = smul.addr %s1282, 8
        %s1284 = scalar_lea.vmem [#allocation20], %s1283
        // Predicated region
        $region61: #{tpu_custom_call.1} parent=43 // pred_check
          %p1285 = pneg %p201
        $region62: #{tpu_custom_call.1} parent=43 // pred_check_branch
          %1287 = sbr.rel (%p1285) target = $region64
        $region63: #{tpu_custom_call.1} parent=43 // pred_region
          %s1289 = ssub.s32 128, 128
          %1290 = vsyncadd %s1246, %s1289
          %s1291 = smul.addr %s47, 128
          %s1292 = scalar_lea.hbm %s6, %s1291
          %s1294 = sshll.u32 %s1249, 4
          %s1295 = int_to_ptr.vmem [resolvable:$true] %s1294
          %1297 = dma.vmem_to_hbm [thread:$0]  %s1295, 128, %s1292, %s1246
        $region64: #{tpu_custom_call.1} parent=43 // pred_fallthru
          _
        // Predicated region
        $region65: #{tpu_custom_call.1} parent=43 // pred_check
          %p1298 = pneg %p227
        $region66: #{tpu_custom_call.1} parent=43 // pred_check_branch
          %1300 = sbr.rel (%p1298) target = $region68
        $region67: #{tpu_custom_call.1} parent=43 // pred_region
          %s1302 = ssub.s32 128, 128
          %1303 = vsyncadd %s1251, %s1302
          %s1304 = smul.addr %s47, 128
          %s1305 = scalar_lea.hbm %s7, %s1304
          %s1307 = sshll.u32 %s1254, 4
          %s1308 = int_to_ptr.vmem [resolvable:$true] %s1307
          %1310 = dma.vmem_to_hbm [thread:$0]  %s1308, 128, %s1305, %s1251
        $region68: #{tpu_custom_call.1} parent=43 // pred_fallthru
          _
        // Predicated region
        $region69: #{tpu_custom_call.1} parent=43 // pred_check
          %p1311 = pneg %p253
        $region70: #{tpu_custom_call.1} parent=43 // pred_check_branch
          %1313 = sbr.rel (%p1311) target = $region72
        $region71: #{tpu_custom_call.1} parent=43 // pred_region
          %s1315 = ssub.s32 128, 128
          %1316 = vsyncadd %s1256, %s1315
          %s1317 = smul.addr %s47, 128
          %s1318 = scalar_lea.hbm %s8, %s1317
          %s1320 = sshll.u32 %s1259, 4
          %s1321 = int_to_ptr.vmem [resolvable:$true] %s1320
          %1323 = dma.vmem_to_hbm [thread:$0]  %s1321, 128, %s1318, %s1256
        $region72: #{tpu_custom_call.1} parent=43 // pred_fallthru
          _
        // Predicated region
        $region73: #{tpu_custom_call.1} parent=43 // pred_check
          %p1324 = pneg %p279
        $region74: #{tpu_custom_call.1} parent=43 // pred_check_branch
          %1326 = sbr.rel (%p1324) target = $region76
        $region75: #{tpu_custom_call.1} parent=43 // pred_region
          %s1328 = ssub.s32 128, 128
          %1329 = vsyncadd %s1261, %s1328
          %s1330 = smul.addr %s47, 128
          %s1331 = scalar_lea.hbm %s9, %s1330
          %s1333 = sshll.u32 %s1264, 4
          %s1334 = int_to_ptr.vmem [resolvable:$true] %s1333
          %1336 = dma.vmem_to_hbm [thread:$0]  %s1334, 128, %s1331, %s1261
        $region76: #{tpu_custom_call.1} parent=43 // pred_fallthru
          _
        // Predicated region
        $region77: #{tpu_custom_call.1} parent=43 // pred_check
          %p1337 = pneg %p305
        $region78: #{tpu_custom_call.1} parent=43 // pred_check_branch
          %1339 = sbr.rel (%p1337) target = $region80
        $region79: #{tpu_custom_call.1} parent=43 // pred_region
          %s1341 = ssub.s32 128, 128
          %1342 = vsyncadd %s1266, %s1341
          %s1343 = smul.addr %s47, 128
          %s1344 = scalar_lea.hbm %s10, %s1343
          %s1346 = sshll.u32 %s1269, 4
          %s1347 = int_to_ptr.vmem [resolvable:$true] %s1346
          %1349 = dma.vmem_to_hbm [thread:$0]  %s1347, 128, %s1344, %s1266
        $region80: #{tpu_custom_call.1} parent=43 // pred_fallthru
          _
        // Predicated region
        $region81: #{tpu_custom_call.1} parent=43 // pred_check
          %p1350 = pneg %p331
        $region82: #{tpu_custom_call.1} parent=43 // pred_check_branch
          %1352 = sbr.rel (%p1350) target = $region84
        $region83: #{tpu_custom_call.1} parent=43 // pred_region
          %s1354 = ssub.s32 128, 128
          %1355 = vsyncadd %s1271, %s1354
          %s1356 = smul.addr %s47, 128
          %s1357 = scalar_lea.hbm %s11, %s1356
          %s1359 = sshll.u32 %s1274, 4
          %s1360 = int_to_ptr.vmem [resolvable:$true] %s1359
          %1362 = dma.vmem_to_hbm [thread:$0]  %s1360, 128, %s1357, %s1271
        $region84: #{tpu_custom_call.1} parent=43 // pred_fallthru
          _
        // Predicated region
        $region85: #{tpu_custom_call.1} parent=43 // pred_check
          %p1363 = pneg %p357
        $region86: #{tpu_custom_call.1} parent=43 // pred_check_branch
          %1365 = sbr.rel (%p1363) target = $region88
        $region87: #{tpu_custom_call.1} parent=43 // pred_region
          %s1367 = ssub.s32 128, 128
          %1368 = vsyncadd %s1276, %s1367
          %s1369 = smul.addr %s47, 128
          %s1370 = scalar_lea.hbm %s12, %s1369
          %s1372 = sshll.u32 %s1279, 4
          %s1373 = int_to_ptr.vmem [resolvable:$true] %s1372
          %1375 = dma.vmem_to_hbm [thread:$0]  %s1373, 128, %s1370, %s1276
        $region88: #{tpu_custom_call.1} parent=43 // pred_fallthru
          _
        // Predicated region
        $region89: #{tpu_custom_call.1} parent=43 // pred_check
          %p1376 = pneg %p383
        $region90: #{tpu_custom_call.1} parent=43 // pred_check_branch
          %1378 = sbr.rel (%p1376) target = $region92
        $region91: #{tpu_custom_call.1} parent=43 // pred_region
          %s1380 = ssub.s32 128, 128
          %1381 = vsyncadd %s1281, %s1380
          %s1382 = smul.addr %s47, 128
          %s1383 = scalar_lea.hbm %s13, %s1382
          %s1385 = sshll.u32 %s1284, 4
          %s1386 = int_to_ptr.vmem [resolvable:$true] %s1385
          %1388 = dma.vmem_to_hbm [thread:$0]  %s1386, 128, %s1383, %s1281
        $region92: #{tpu_custom_call.1} parent=43 // pred_fallthru
          _
      $region44: #{tpu_custom_call.1} parent=5 // pred_fallthru
        _
      %p1389 = scmp.le.s32.totalorder 2, %s42
      // Predicated region
      $region93: #{tpu_custom_call.1} parent=5 // pred_check
        %p1390 = pneg %p1389
      $region94: #{tpu_custom_call.1} parent=5 // pred_check_branch
        %1392 = sbr.rel (%p1390) target = $region96
      $region95: #{tpu_custom_call.1} parent=5 // pred_region
        %s1393 = ssub.s32 %s42, 2
        // Predicated region
        $region97: #{tpu_custom_call.1} parent=95 // pred_check
          %p1394 = pneg %p207
        $region98: #{tpu_custom_call.1} parent=95 // pred_check_branch
          %1396 = sbr.rel (%p1394) target = $region100
        $region99: #{tpu_custom_call.1} parent=95 // pred_region
          %s1397 = sand.u32 %s192, 1
          %s1398 = scalar_lea.sflag [#allocation4], %s1397
          %s1399 = sand.u32 %s192, 1
          %s1400 = smul.addr %s1399, 8
          %s1401 = scalar_lea.vmem [#allocation10], %s1400
          %1402 = dma.done %s1398, 128
        $region100: #{tpu_custom_call.1} parent=95 // pred_fallthru
          _
        // Predicated region
        $region101: #{tpu_custom_call.1} parent=95 // pred_check
          %p1403 = pneg %p233
        $region102: #{tpu_custom_call.1} parent=95 // pred_check_branch
          %1405 = sbr.rel (%p1403) target = $region104
        $region103: #{tpu_custom_call.1} parent=95 // pred_region
          %s1406 = sand.u32 %s48, 1
          %s1407 = scalar_lea.sflag [#allocation12], %s1406
          %s1408 = sand.u32 %s218, 1
          %s1409 = smul.addr %s1408, 8
          %s1410 = scalar_lea.vmem [#allocation11], %s1409
          %1411 = dma.done %s1407, 128
        $region104: #{tpu_custom_call.1} parent=95 // pred_fallthru
          _
        // Predicated region
        $region105: #{tpu_custom_call.1} parent=95 // pred_check
          %p1412 = pneg %p259
        $region106: #{tpu_custom_call.1} parent=95 // pred_check_branch
          %1414 = sbr.rel (%p1412) target = $region108
        $region107: #{tpu_custom_call.1} parent=95 // pred_region
          %s1415 = sand.u32 %s48, 1
          %s1416 = scalar_lea.sflag [#allocation12], %s1415
          %s1417 = sand.u32 %s244, 1
          %s1418 = smul.addr %s1417, 8
          %s1419 = scalar_lea.vmem [#allocation13], %s1418
          %1420 = dma.done %s1416, 128
        $region108: #{tpu_custom_call.1} parent=95 // pred_fallthru
          _
        // Predicated region
        $region109: #{tpu_custom_call.1} parent=95 // pred_check
          %p1421 = pneg %p285
        $region110: #{tpu_custom_call.1} parent=95 // pred_check_branch
          %1423 = sbr.rel (%p1421) target = $region112
        $region111: #{tpu_custom_call.1} parent=95 // pred_region
          %s1424 = sand.u32 %s48, 1
          %s1425 = scalar_lea.sflag [#allocation15], %s1424
          %s1426 = sand.u32 %s270, 1
          %s1427 = smul.addr %s1426, 8
          %s1428 = scalar_lea.vmem [#allocation14], %s1427
          %1429 = dma.done %s1425, 128
        $region112: #{tpu_custom_call.1} parent=95 // pred_fallthru
          _
        // Predicated region
        $region113: #{tpu_custom_call.1} parent=95 // pred_check
          %p1430 = pneg %p311
        $region114: #{tpu_custom_call.1} parent=95 // pred_check_branch
          %1432 = sbr.rel (%p1430) target = $region116
        $region115: #{tpu_custom_call.1} parent=95 // pred_region
          %s1433 = sand.u32 %s48, 1
          %s1434 = scalar_lea.sflag [#allocation15], %s1433
          %s1435 = sand.u32 %s296, 1
          %s1436 = smul.addr %s1435, 8
          %s1437 = scalar_lea.vmem [#allocation16], %s1436
          %1438 = dma.done %s1434, 128
        $region116: #{tpu_custom_call.1} parent=95 // pred_fallthru
          _
        // Predicated region
        $region117: #{tpu_custom_call.1} parent=95 // pred_check
          %p1439 = pneg %p337
        $region118: #{tpu_custom_call.1} parent=95 // pred_check_branch
          %1441 = sbr.rel (%p1439) target = $region120
        $region119: #{tpu_custom_call.1} parent=95 // pred_region
          %s1442 = sand.u32 %s48, 1
          %s1443 = scalar_lea.sflag [#allocation18], %s1442
          %s1444 = sand.u32 %s322, 1
          %s1445 = smul.addr %s1444, 8
          %s1446 = scalar_lea.vmem [#allocation17], %s1445
          %1447 = dma.done %s1443, 128
        $region120: #{tpu_custom_call.1} parent=95 // pred_fallthru
          _
        // Predicated region
        $region121: #{tpu_custom_call.1} parent=95 // pred_check
          %p1448 = pneg %p363
        $region122: #{tpu_custom_call.1} parent=95 // pred_check_branch
          %1450 = sbr.rel (%p1448) target = $region124
        $region123: #{tpu_custom_call.1} parent=95 // pred_region
          %s1451 = sand.u32 %s48, 1
          %s1452 = scalar_lea.sflag [#allocation18], %s1451
          %s1453 = sand.u32 %s348, 1
          %s1454 = smul.addr %s1453, 8
          %s1455 = scalar_lea.vmem [#allocation19], %s1454
          %1456 = dma.done %s1452, 128
        $region124: #{tpu_custom_call.1} parent=95 // pred_fallthru
          _
        // Predicated region
        $region125: #{tpu_custom_call.1} parent=95 // pred_check
          %p1457 = pneg %p389
        $region126: #{tpu_custom_call.1} parent=95 // pred_check_branch
          %1459 = sbr.rel (%p1457) target = $region128
        $region127: #{tpu_custom_call.1} parent=95 // pred_region
          %s1460 = sand.u32 %s374, 1
          %s1461 = scalar_lea.sflag [#allocation21], %s1460
          %s1462 = sand.u32 %s374, 1
          %s1463 = smul.addr %s1462, 8
          %s1464 = scalar_lea.vmem [#allocation20], %s1463
          %1465 = dma.done %s1461, 128
        $region128: #{tpu_custom_call.1} parent=95 // pred_fallthru
          _
      $region96: #{tpu_custom_call.1} parent=5 // pred_fallthru
        _
    $region6: #{tpu_custom_call.1} parent=1 // loop_footer
      %s46 = sadd.s32 1, %s42
    $region7: #{tpu_custom_call.1} parent=1 // loop_footer_branch
      %41 = sbr.rel target = $region3
    $region8: #{tpu_custom_call.1} parent=1 // loop_exit
      _
    %1466 = vsyncpa [#allocation3], 1
    %s1467 = scalar_lea.sflag [#allocation3], 1
    %1468 = vsyncpa %s1467, 1
    %1469 = vsyncpa [#allocation6], 1
    %s1470 = scalar_lea.sflag [#allocation6], 1
    %1471 = vsyncpa %s1470, 1
    %1472 = vsyncpa [#allocation9], 1
    %1473 = vsyncpa [#allocation4], 1
    %s1474 = scalar_lea.sflag [#allocation4], 1
    %1475 = vsyncpa %s1474, 1
    %1476 = vsyncpa [#allocation12], 1
    %s1477 = scalar_lea.sflag [#allocation12], 1
    %1478 = vsyncpa %s1477, 1
    %1479 = vsyncpa [#allocation15], 1
    %s1480 = scalar_lea.sflag [#allocation15], 1
    %1481 = vsyncpa %s1480, 1
    %1482 = vsyncpa [#allocation18], 1
    %s1483 = scalar_lea.sflag [#allocation18], 1
    %1484 = vsyncpa %s1483, 1
    %1485 = vsyncpa [#allocation21], 1
    %s1486 = scalar_lea.sflag [#allocation21], 1
    %1487 = vsyncpa %s1486, 1

</llo_original>
